<compile_context>
chip_gen: v6e
topology: v6e:2x2x1
jax: 0.10.0
libtpu: 0.0.40
codegen_flags: <defaults>
</compile_context>

<pallas_src>
import functools

import jax
import jax.numpy as jnp
from jax.experimental import pallas as pl
from jax.experimental.pallas import tpu as pltpu

# ----------------------------- small synthetic config -----------------------------
B = 2        # batch
T = 8        # question length
V = 16       # number of image region features
E = 32       # WORD_EMBED_SIZE
H = 32       # HIDDEN_SIZE
FRCN = 64    # FRCN feature channels
BA = 64      # BA_HIDDEN_SIZE
G = 2        # GLIMPSE
FLAT = 64    # FLAT_OUT_SIZE
TOKENS = 50  # token_size
ANS = 10     # answer_size
K_ATT = 3    # BCNet k used inside BiAttention (h_dim * k = 3H)
K3 = K_ATT * H          # 96
OUT_PAD = 128           # lane-dense padded output width (>= ANS)

# ---- weight slab (bf16) row offsets: each entry column-padded to 128 lanes ----
W_WIH = 0                     # (E, 3H)   GRU input proj, gate order r|z|n
W_ADP = W_WIH + E             # (FRCN, H) adapter linear
W_WVATT = W_ADP + FRCN        # (H, 3H)   BiAttention v_net
W_WQATT = W_WVATT + H         # (H, 3H)   BiAttention q_net
W_WVG = W_WQATT + H           # (H, G*BA) both glimpses' v_net, lane-packed
W_WQG = W_WVG + H             # G stacked (H, BA) glimpse q_nets
W_WP = W_WQG + G * H          # G stacked (BA, H) q_prj
W_CLS1 = W_WP + G * BA        # (H, FLAT)
W_CLS2 = W_CLS1 + H           # (FLAT, 128)  cols >= ANS are zero
W_ROWS = W_CLS2 + FLAT        # 480

# ---- f32 aux slab row offsets: GRU recurrent weight + biases (one per row) + h_mat ----
F_WHH = 0                     # (H, 3H)
F_BIH = F_WHH + H
F_BHH = F_BIH + 1
F_BADP = F_BHH + 1
F_BVATT = F_BADP + 1
F_BQATT = F_BVATT + 1
F_BVG = F_BQATT + 1           # (1, G*BA)
F_BQG = F_BVG + 1             # G rows
F_BP = F_BQG + G              # G rows
F_BC1 = F_BP + G
F_BC2 = F_BC1 + 1
F_HMAT = F_BC2 + 1            # G rows
F_ROWS = ((F_HMAT + G + 7) // 8) * 8   # 48

VMEM_SPEC = pl.BlockSpec(memory_space=pltpu.MemorySpace.VMEM)


# ----------------------------- fused Pallas kernel -----------------------------
def fused_net_kernel(emb_ref, frcn_ref, w_ref, f_ref, o_ref, *, B, T, V):
    f32 = jnp.float32
    bf16 = jnp.bfloat16

    # ---------------- 1-layer GRU (PyTorch gate order r, z, n) ----------------
    wih = w_ref[W_WIH:W_WIH + E, :3 * H]                 # (E, 3H) bf16
    bih = f_ref[F_BIH:F_BIH + 1, :3 * H]                 # (1, 3H) f32
    # Hoisted input projection: one matmul for all timesteps, reshaped once to (T,B,3H).
    gates_x = (jnp.dot(emb_ref[...], wih, preferred_element_type=f32)
               + bih).reshape(T, B, 3 * H)

    whh = f_ref[F_WHH:F_WHH + H, :3 * H]                 # (H, 3H) f32 (recurrence stays f32)
    bhh = f_ref[F_BHH:F_BHH + 1, :3 * H]                 # (1, 3H)

    h = jnp.zeros((B, H), dtype=f32)
    hs = []
    for t in range(T):                                   # fully unrolled (T static, tiny)
        gx = gates_x[t]                                  # (B, 3H) -- whole-tile index, no slicing
        gh = jnp.dot(h, whh, preferred_element_type=f32) + bhh
        rz = jax.nn.sigmoid(gx[:, :2 * H] + gh[:, :2 * H])   # fused r,z sigmoid: 1 EUP push
        r = rz[:, :H]
        z = rz[:, H:]
        n = jnp.tanh(gx[:, 2 * H:] + r * gh[:, 2 * H:])
        h = (1.0 - z) * n + z * h
        hs.append(h)
    q3 = jnp.stack(hs, axis=1)                           # (B, T, H) f32

    # ---------------- Adapter: Linear(FRCN -> H) on every region ----------------
    adp_w = w_ref[W_ADP:W_ADP + FRCN, :H]
    adp_b = f_ref[F_BADP:F_BADP + 1, :H]
    v2 = jnp.dot(frcn_ref[...], adp_w, preferred_element_type=f32) + adp_b   # (B*V, H) f32
    v2_bf = v2.astype(bf16)
    v3 = v2.reshape(B, V, H)

    # ---------------- BiAttention: both glimpses in ONE batched einsum ----------------
    wv_att = w_ref[W_WVATT:W_WVATT + H, :K3]
    bv_att = f_ref[F_BVATT:F_BVATT + 1, :K3]
    wq_att = w_ref[W_WQATT:W_WQATT + H, :K3]
    bq_att = f_ref[F_BQATT:F_BQATT + 1, :K3]

    v_att = jnp.maximum(jnp.dot(v2_bf, wv_att, preferred_element_type=f32) + bv_att, 0.0)
    q2_bf = q3.reshape(B * T, H).astype(bf16)
    q_att = jnp.maximum(jnp.dot(q2_bf, wq_att, preferred_element_type=f32) + bq_att, 0.0)
    v_att3 = v_att.reshape(B, V, K3)                      # (B, V, 3H) f32
    q_att3 = q_att.reshape(B, T, K3)                      # (B, T, 3H) f32

    hmat = f_ref[F_HMAT:F_HMAT + G, :K3]                  # (G, 3H) f32
    vh_bf = (v_att3[None, :, :, :] * hmat[:, None, None, :]).astype(bf16).reshape(G * B, V, K3)
    qh_bf = jnp.broadcast_to(q_att3.astype(bf16)[None], (G, B, T, K3)).reshape(G * B, T, K3)
    # h_bias is a per-glimpse constant on every logit of that glimpse; it cancels exactly in
    # the per-(batch,glimpse) softmax below, so it is dropped (no approximation).
    logits = jnp.einsum('nvk,nqk->nvq', vh_bf, qh_bf,
                        preferred_element_type=f32)        # (G*B, V, T)

    # v_mask (openvqa BiAttention, v_mask=True): mask regions whose post-adapter feature row
    # abs-sums to zero (mask is built from the `v` passed to BiAttention = adapter output).
    vmask = jnp.sum(jnp.abs(v3), axis=2) == 0.0            # (B, V)
    maskn = jnp.broadcast_to(vmask[None, :, :], (G, B, V)).reshape(G * B, V)
    logits = jnp.where(maskn[:, :, None], -1e30, logits)   # finite fill: no NaN if fully masked

    # ONE lane-dense softmax over the flattened (V*T)=128 logits per (glimpse, batch) row.
    flat = logits.reshape(G * B, V * T)                    # (4, 128)
    m = jnp.max(flat, axis=1, keepdims=True)
    e = jnp.exp(flat - m)
    att_flat = e * pl.reciprocal(jnp.sum(e, axis=1, keepdims=True), approx=True)
    att = att_flat.astype(bf16).reshape(G, B, V, T)        # per-glimpse attention maps

    # ---------------- per-glimpse BCNet(k=1).forward_with_weights + q_prj residual ----------------
    wv_g = w_ref[W_WVG:W_WVG + H, :G * BA]                 # both glimpses, lane-packed (32,128)
    bv_g = f_ref[F_BVG:F_BVG + 1, :G * BA]
    v_g_all = jnp.maximum(jnp.dot(v2_bf, wv_g, preferred_element_type=f32) + bv_g,
                          0.0).reshape(B, V, G * BA)

    q_cur = q3
    for g in range(G):                                     # residual chain -> inherently sequential
        wq_g = w_ref[W_WQG + g * H:W_WQG + (g + 1) * H, :BA]
        bq_g = f_ref[F_BQG + g:F_BQG + g + 1, :BA]
        q_g = jnp.maximum(
            jnp.dot(q_cur.reshape(B * T, H).astype(bf16), wq_g,
                    preferred_element_type=f32) + bq_g, 0.0).reshape(B, T, BA)
        # bi[b, d] = sum_{v,q} v_g[b,v,d] * att[g,b,v,q] * q_g[b,q,d]
        tmp = jnp.einsum('bvq,bqd->bvd', att[g], q_g.astype(bf16),
                         preferred_element_type=f32)       # (B, V, BA)
        bi = jnp.sum(v_g_all[:, :, g * BA:(g + 1) * BA] * tmp, axis=1)   # (B, BA)
        wp = w_ref[W_WP + g * BA:W_WP + (g + 1) * BA, :H]
        bp = f_ref[F_BP + g:F_BP + g + 1, :H]
        proj = jnp.dot(bi.astype(bf16), wp, preferred_element_type=f32) + bp  # (B, H)
        q_cur = q_cur + proj[:, None, :]                   # broadcast over Q

    # ---------------- classifier: Linear(H->FLAT)+ReLU, Linear(FLAT->ANS) on sum over T ----------------
    x_cls = jnp.sum(q_cur, axis=1)                         # (B, H)
    w1 = w_ref[W_CLS1:W_CLS1 + H, :FLAT]
    b1 = f_ref[F_BC1:F_BC1 + 1, :FLAT]
    h1 = jnp.maximum(jnp.dot(x_cls.astype(bf16), w1, preferred_element_type=f32) + b1, 0.0)
    w2 = w_ref[W_CLS2:W_CLS2 + FLAT, :]                    # (FLAT, 128): cols >= ANS are zero
    b2 = f_ref[F_BC2:F_BC2 + 1, :]                         # (1, 128):   cols >= ANS are zero
    # lane-dense (B, 128) store; wrapper slices [:, :ANS]
    o_ref[...] = jnp.dot(h1.astype(bf16), w2, preferred_element_type=f32) + b2


# ----------------------------- forward (jit: glue + one pallas_call) -----------------------------
def net_forward(packed, frcn_feat, grid_feat, bbox_feat, ques_ix):
    del grid_feat, bbox_feat  # unused for the vqa/ BAN path with USE_BBOX_FEAT=False
    # lang_feat_mask = make_mask(ques_ix.unsqueeze(2)) is computed but never used in PyTorch.

    # TODO(synk): embedding gather kept in plain JAX (data-dependent gather; fused by XLA under jit).
    emb = packed["embedding"][ques_ix]                               # (B, T, E) f32
    Bn, Tn, En = emb.shape
    Vn = frcn_feat.shape[1]

    emb_tm = jnp.transpose(emb, (1, 0, 2)).reshape(Tn * Bn, En).astype(jnp.bfloat16)
    frcn_flat = frcn_feat.reshape(Bn * Vn, -1).astype(jnp.bfloat16)

    kernel = functools.partial(fused_net_kernel, B=Bn, T=Tn, V=Vn)
    out_pad = pl.pallas_call(
        kernel,
        out_shape=jax.ShapeDtypeStruct((Bn, OUT_PAD), jnp.float32),
        in_specs=[VMEM_SPEC] * 4,
        out_specs=VMEM_SPEC,
    )(emb_tm, frcn_flat, packed["wslab"], packed["fslab"])
    return out_pad[:, :ANS]


net_forward_jit = jax.jit(net_forward)


# ----------------------------- deterministic parameter init -----------------------------
def init_params(key):
    ks = iter(jax.random.split(key, 40))

    def u(shape, scale=0.1):
        return jax.random.uniform(next(ks), shape, jnp.float32, -scale, scale)

    p = {}
    p["embedding"] = u((TOKENS, E), 0.5)
    # GRU (PyTorch shapes; gate order r, z, n)
    p["wih"] = u((3 * H, E))
    p["whh"] = u((3 * H, H))
    p["bih"] = u((3 * H,))
    p["bhh"] = u((3 * H,))
    # adapter linear (weight_norm ~ plain linear at init)
    p["adapter_w_t"] = u((FRCN, H))
    p["adapter_b"] = u((1, H))
    # BiAttention BCNet(k=3): v_net/q_net Linear(H -> 3H) + ReLU, h_mat (G,1,3H), h_bias (G,1,1)
    p["wv_att_t"] = u((H, K3))
    p["bv_att"] = u((1, K3))
    p["wq_att_t"] = u((H, K3))
    p["bq_att"] = u((1, K3))
    p["h_mat"] = jax.random.normal(next(ks), (G, 1, K3), jnp.float32)
    p["h_bias"] = jax.random.normal(next(ks), (G, 1, 1), jnp.float32)  # cancels in softmax
    # per-glimpse BCNet(k=1): v_net/q_net Linear(H -> BA) + ReLU; q_prj Linear(BA -> H), no act
    p["wv_g_t"] = u((G, H, BA))
    p["bv_g"] = u((G, 1, BA))
    p["wq_g_t"] = u((G, H, BA))
    p["bq_g"] = u((G, 1, BA))
    p["wp_t"] = u((G, BA, H))
    p["bp_g"] = u((G, 1, H))
    # classifier
    p["cls_w1_t"] = u((H, FLAT))
    p["cls_b1"] = u((1, FLAT))
    p["cls_w2_t"] = u((FLAT, ANS))
    p["cls_b2"] = u((1, ANS))
    return p


def _padcols(w, width=128):
    w = jnp.asarray(w, jnp.float32)
    return jnp.pad(w, ((0, 0), (0, width - w.shape[1])))


def _padrow(v, width=128):
    v = jnp.asarray(v, jnp.float32).reshape(-1)
    return jnp.pad(v, (0, width - v.shape[0]))[None, :]


def prepare_params(p):
    """One-time host-side repack into two lane-dense VMEM slabs (+ embedding table)."""
    wih_t = jnp.asarray(p["wih"]).T                       # (E, 3H), gate order r|z|n
    whh_t = jnp.asarray(p["whh"]).T                       # (H, 3H)
    # pack both glimpses' v_net weights lane-dense: (H, G*BA) = (32, 128)
    wv_g_packed = jnp.transpose(p["wv_g_t"], (1, 0, 2)).reshape(H, G * BA)
    wq_g_stack = p["wq_g_t"].reshape(G * H, BA)           # glimpse-stacked along rows
    wp_stack = p["wp_t"].reshape(G * BA, H)

    wslab = jnp.concatenate([
        _padcols(wih_t), _padcols(p["adapter_w_t"]),
        _padcols(p["wv_att_t"]), _padcols(p["wq_att_t"]),
        _padcols(wv_g_packed), _padcols(wq_g_stack),
        _padcols(wp_stack), _padcols(p["cls_w1_t"]), _padcols(p["cls_w2_t"]),
    ], axis=0)
    assert wslab.shape == (W_ROWS, 128), wslab.shape

    frows = [
        _padcols(whh_t),                                  # rows 0..H-1
        _padrow(p["bih"]), _padrow(p["bhh"]), _padrow(p["adapter_b"]),
        _padrow(p["bv_att"]), _padrow(p["bq_att"]),
        _padrow(p["bv_g"]),                               # (G*BA,) matches wv_g_packed columns
        _padrow(p["bq_g"][0]), _padrow(p["bq_g"][1]),
        _padrow(p["bp_g"][0]), _padrow(p["bp_g"][1]),
        _padrow(p["cls_b1"]), _padrow(p["cls_b2"]),
        _padrow(p["h_mat"][0]), _padrow(p["h_mat"][1]),
        # note: p["h_bias"] intentionally not packed (exact no-op under the softmax)
    ]
    fslab = jnp.concatenate(frows, axis=0)
    fslab = jnp.pad(fslab, ((0, F_ROWS - fslab.shape[0]), (0, 0)))
    assert fslab.shape == (F_ROWS, 128), fslab.shape

    return {
        "embedding": jnp.asarray(p["embedding"], jnp.float32),
        "wslab": wslab.astype(jnp.bfloat16),              # bf16 matmul weights, f32 accumulate
        "fslab": fslab,                                   # f32: recurrent weight / biases / h_mat
    }


# ----------------------------- main -----------------------------
if __name__ == "__main__":
    root = jax.random.PRNGKey(0)
    kp, kf, kg, kb, kq = jax.random.split(root, 5)

    params = prepare_params(init_params(kp))

    frcn_feat = jax.random.normal(kf, (B, V, FRCN), jnp.float32)
    grid_feat = jax.random.normal(kg, (B, 4, 8), jnp.float32)   # unused by BAN vqa path
    bbox_feat = jax.random.normal(kb, (B, V, 5), jnp.float32)   # unused (USE_BBOX_FEAT=False)
    ques_ix = jax.random.randint(kq, (B, T), 1, TOKENS, dtype=jnp.int32)
    ques_ix = ques_ix.at[:, -2:].set(0)  # trailing padding tokens

    out = net_forward_jit(params, frcn_feat, grid_feat, bbox_feat, ques_ix)
    out = jax.block_until_ready(out)

    assert out.shape == (B, ANS), out.shape
    assert bool(jnp.all(jnp.isfinite(out)))
    print("KERNEL_OK")
</pallas_src>

<mosaic_0001>
module attributes {stable_mosaic.version = 11 : i64} {
  func.func @fused_net_kernel(%arg0: memref<16x32xbf16, #tpu.memory_space<vmem>>, %arg1: memref<32x64xbf16, #tpu.memory_space<vmem>>, %arg2: memref<480x128xbf16, #tpu.memory_space<vmem>>, %arg3: memref<48x128xf32, #tpu.memory_space<vmem>>, %arg4: memref<2x128xf32, #tpu.memory_space<vmem>>) attributes {dimension_semantics = [], scalar_prefetch = 0 : i64, scratch_operands = 0 : i64, tpu.core_type = #tpu.core_type<tc>} {
    %c0 = arith.constant 0 : index
    %c0_0 = arith.constant 0 : index
    %0 = vector.load %arg2[%c0, %c0_0] : memref<480x128xbf16, #tpu.memory_space<vmem>>, vector<32x96xbf16>
    %c32 = arith.constant 32 : index
    %c0_1 = arith.constant 0 : index
    %1 = vector.load %arg3[%c32, %c0_1] : memref<48x128xf32, #tpu.memory_space<vmem>>, vector<1x96xf32>
    %c0_2 = arith.constant 0 : index
    %c0_3 = arith.constant 0 : index
    %2 = vector.load %arg0[%c0_2, %c0_3] : memref<16x32xbf16, #tpu.memory_space<vmem>>, vector<16x32xbf16>
    %cst = arith.constant dense<0.000000e+00> : vector<16x96xf32>
    %3 = tpu.matmul %2, %0, %cst {dimension_numbers = #tpu.dot_dimension_numbers<[1], [0], [0], [1], [0, 0, 1, 1], [], []>} : vector<16x32xbf16>, vector<32x96xbf16>, vector<16x96xf32> -> vector<16x96xf32>
    %4 = vector.broadcast %1 : vector<1x96xf32> to vector<16x96xf32>
    %5 = arith.addf %3, %4 : vector<16x96xf32>
    %6 = vector.shape_cast %5 : vector<16x96xf32> to vector<8x2x96xf32>
    %c0_4 = arith.constant 0 : index
    %c0_5 = arith.constant 0 : index
    %7 = vector.load %arg3[%c0_4, %c0_5] : memref<48x128xf32, #tpu.memory_space<vmem>>, vector<32x96xf32>
    %c33 = arith.constant 33 : index
    %c0_6 = arith.constant 0 : index
    %8 = vector.load %arg3[%c33, %c0_6] : memref<48x128xf32, #tpu.memory_space<vmem>>, vector<1x96xf32>
    %cst_7 = arith.constant 0.000000e+00 : f32
    %9 = vector.broadcast %cst_7 : f32 to vector<2x32xf32>
    %10 = vector.extract_strided_slice %6 {offsets = [0, 0, 0], sizes = [1, 2, 96], strides = [1, 1, 1]} : vector<8x2x96xf32> to vector<1x2x96xf32>
    %11 = vector.shape_cast %10 : vector<1x2x96xf32> to vector<2x96xf32>
    %cst_8 = arith.constant dense<0.000000e+00> : vector<2x96xf32>
    %12 = tpu.matmul %9, %7, %cst_8 {dimension_numbers = #tpu.dot_dimension_numbers<[1], [0], [0], [1], [0, 0, 1, 1], [], []>} : vector<2x32xf32>, vector<32x96xf32>, vector<2x96xf32> -> vector<2x96xf32>
    %13 = vector.broadcast %8 : vector<1x96xf32> to vector<2x96xf32>
    %14 = arith.addf %12, %13 : vector<2x96xf32>
    %15 = vector.extract_strided_slice %11 {offsets = [0, 0], sizes = [2, 64], strides = [1, 1]} : vector<2x96xf32> to vector<2x64xf32>
    %16 = vector.extract_strided_slice %14 {offsets = [0, 0], sizes = [2, 64], strides = [1, 1]} : vector<2x96xf32> to vector<2x64xf32>
    %17 = arith.addf %15, %16 : vector<2x64xf32>
    %18 = arith.negf %17 : vector<2x64xf32>
    %19 = math.exp %18 : vector<2x64xf32>
    %cst_9 = arith.constant 1.000000e+00 : f32
    %20 = vector.broadcast %cst_9 : f32 to vector<2x64xf32>
    %21 = arith.addf %20, %19 : vector<2x64xf32>
    %22 = arith.divf %20, %21 : vector<2x64xf32>
    %23 = vector.extract_strided_slice %22 {offsets = [0, 0], sizes = [2, 32], strides = [1, 1]} : vector<2x64xf32> to vector<2x32xf32>
    %24 = vector.extract_strided_slice %22 {offsets = [0, 32], sizes = [2, 32], strides = [1, 1]} : vector<2x64xf32> to vector<2x32xf32>
    %25 = vector.extract_strided_slice %11 {offsets = [0, 64], sizes = [2, 32], strides = [1, 1]} : vector<2x96xf32> to vector<2x32xf32>
    %26 = vector.extract_strided_slice %14 {offsets = [0, 64], sizes = [2, 32], strides = [1, 1]} : vector<2x96xf32> to vector<2x32xf32>
    %27 = arith.mulf %23, %26 : vector<2x32xf32>
    %28 = arith.addf %25, %27 : vector<2x32xf32>
    %29 = math.tanh %28 : vector<2x32xf32>
    %cst_10 = arith.constant 1.000000e+00 : f32
    %30 = vector.broadcast %cst_10 : f32 to vector<2x32xf32>
    %31 = arith.subf %30, %24 : vector<2x32xf32>
    %32 = arith.mulf %31, %29 : vector<2x32xf32>
    %33 = arith.mulf %24, %9 : vector<2x32xf32>
    %34 = arith.addf %32, %33 : vector<2x32xf32>
    %35 = vector.extract_strided_slice %6 {offsets = [1, 0, 0], sizes = [1, 2, 96], strides = [1, 1, 1]} : vector<8x2x96xf32> to vector<1x2x96xf32>
    %36 = vector.shape_cast %35 : vector<1x2x96xf32> to vector<2x96xf32>
    %cst_11 = arith.constant dense<0.000000e+00> : vector<2x96xf32>
    %37 = tpu.matmul %34, %7, %cst_11 {dimension_numbers = #tpu.dot_dimension_numbers<[1], [0], [0], [1], [0, 0, 1, 1], [], []>} : vector<2x32xf32>, vector<32x96xf32>, vector<2x96xf32> -> vector<2x96xf32>
    %38 = vector.broadcast %8 : vector<1x96xf32> to vector<2x96xf32>
    %39 = arith.addf %37, %38 : vector<2x96xf32>
    %40 = vector.extract_strided_slice %36 {offsets = [0, 0], sizes = [2, 64], strides = [1, 1]} : vector<2x96xf32> to vector<2x64xf32>
    %41 = vector.extract_strided_slice %39 {offsets = [0, 0], sizes = [2, 64], strides = [1, 1]} : vector<2x96xf32> to vector<2x64xf32>
    %42 = arith.addf %40, %41 : vector<2x64xf32>
    %43 = arith.negf %42 : vector<2x64xf32>
    %44 = math.exp %43 : vector<2x64xf32>
    %cst_12 = arith.constant 1.000000e+00 : f32
    %45 = vector.broadcast %cst_12 : f32 to vector<2x64xf32>
    %46 = arith.addf %45, %44 : vector<2x64xf32>
    %47 = arith.divf %45, %46 : vector<2x64xf32>
    %48 = vector.extract_strided_slice %47 {offsets = [0, 0], sizes = [2, 32], strides = [1, 1]} : vector<2x64xf32> to vector<2x32xf32>
    %49 = vector.extract_strided_slice %47 {offsets = [0, 32], sizes = [2, 32], strides = [1, 1]} : vector<2x64xf32> to vector<2x32xf32>
    %50 = vector.extract_strided_slice %36 {offsets = [0, 64], sizes = [2, 32], strides = [1, 1]} : vector<2x96xf32> to vector<2x32xf32>
    %51 = vector.extract_strided_slice %39 {offsets = [0, 64], sizes = [2, 32], strides = [1, 1]} : vector<2x96xf32> to vector<2x32xf32>
    %52 = arith.mulf %48, %51 : vector<2x32xf32>
    %53 = arith.addf %50, %52 : vector<2x32xf32>
    %54 = math.tanh %53 : vector<2x32xf32>
    %cst_13 = arith.constant 1.000000e+00 : f32
    %55 = vector.broadcast %cst_13 : f32 to vector<2x32xf32>
    %56 = arith.subf %55, %49 : vector<2x32xf32>
    %57 = arith.mulf %56, %54 : vector<2x32xf32>
    %58 = arith.mulf %49, %34 : vector<2x32xf32>
    %59 = arith.addf %57, %58 : vector<2x32xf32>
    %60 = vector.extract_strided_slice %6 {offsets = [2, 0, 0], sizes = [1, 2, 96], strides = [1, 1, 1]} : vector<8x2x96xf32> to vector<1x2x96xf32>
    %61 = vector.shape_cast %60 : vector<1x2x96xf32> to vector<2x96xf32>
    %cst_14 = arith.constant dense<0.000000e+00> : vector<2x96xf32>
    %62 = tpu.matmul %59, %7, %cst_14 {dimension_numbers = #tpu.dot_dimension_numbers<[1], [0], [0], [1], [0, 0, 1, 1], [], []>} : vector<2x32xf32>, vector<32x96xf32>, vector<2x96xf32> -> vector<2x96xf32>
    %63 = vector.broadcast %8 : vector<1x96xf32> to vector<2x96xf32>
    %64 = arith.addf %62, %63 : vector<2x96xf32>
    %65 = vector.extract_strided_slice %61 {offsets = [0, 0], sizes = [2, 64], strides = [1, 1]} : vector<2x96xf32> to vector<2x64xf32>
    %66 = vector.extract_strided_slice %64 {offsets = [0, 0], sizes = [2, 64], strides = [1, 1]} : vector<2x96xf32> to vector<2x64xf32>
    %67 = arith.addf %65, %66 : vector<2x64xf32>
    %68 = arith.negf %67 : vector<2x64xf32>
    %69 = math.exp %68 : vector<2x64xf32>
    %cst_15 = arith.constant 1.000000e+00 : f32
    %70 = vector.broadcast %cst_15 : f32 to vector<2x64xf32>
    %71 = arith.addf %70, %69 : vector<2x64xf32>
    %72 = arith.divf %70, %71 : vector<2x64xf32>
    %73 = vector.extract_strided_slice %72 {offsets = [0, 0], sizes = [2, 32], strides = [1, 1]} : vector<2x64xf32> to vector<2x32xf32>
    %74 = vector.extract_strided_slice %72 {offsets = [0, 32], sizes = [2, 32], strides = [1, 1]} : vector<2x64xf32> to vector<2x32xf32>
    %75 = vector.extract_strided_slice %61 {offsets = [0, 64], sizes = [2, 32], strides = [1, 1]} : vector<2x96xf32> to vector<2x32xf32>
    %76 = vector.extract_strided_slice %64 {offsets = [0, 64], sizes = [2, 32], strides = [1, 1]} : vector<2x96xf32> to vector<2x32xf32>
    %77 = arith.mulf %73, %76 : vector<2x32xf32>
    %78 = arith.addf %75, %77 : vector<2x32xf32>
    %79 = math.tanh %78 : vector<2x32xf32>
    %cst_16 = arith.constant 1.000000e+00 : f32
    %80 = vector.broadcast %cst_16 : f32 to vector<2x32xf32>
    %81 = arith.subf %80, %74 : vector<2x32xf32>
    %82 = arith.mulf %81, %79 : vector<2x32xf32>
    %83 = arith.mulf %74, %59 : vector<2x32xf32>
    %84 = arith.addf %82, %83 : vector<2x32xf32>
    %85 = vector.extract_strided_slice %6 {offsets = [3, 0, 0], sizes = [1, 2, 96], strides = [1, 1, 1]} : vector<8x2x96xf32> to vector<1x2x96xf32>
    %86 = vector.shape_cast %85 : vector<1x2x96xf32> to vector<2x96xf32>
    %cst_17 = arith.constant dense<0.000000e+00> : vector<2x96xf32>
    %87 = tpu.matmul %84, %7, %cst_17 {dimension_numbers = #tpu.dot_dimension_numbers<[1], [0], [0], [1], [0, 0, 1, 1], [], []>} : vector<2x32xf32>, vector<32x96xf32>, vector<2x96xf32> -> vector<2x96xf32>
    %88 = vector.broadcast %8 : vector<1x96xf32> to vector<2x96xf32>
    %89 = arith.addf %87, %88 : vector<2x96xf32>
    %90 = vector.extract_strided_slice %86 {offsets = [0, 0], sizes = [2, 64], strides = [1, 1]} : vector<2x96xf32> to vector<2x64xf32>
    %91 = vector.extract_strided_slice %89 {offsets = [0, 0], sizes = [2, 64], strides = [1, 1]} : vector<2x96xf32> to vector<2x64xf32>
    %92 = arith.addf %90, %91 : vector<2x64xf32>
    %93 = arith.negf %92 : vector<2x64xf32>
    %94 = math.exp %93 : vector<2x64xf32>
    %cst_18 = arith.constant 1.000000e+00 : f32
    %95 = vector.broadcast %cst_18 : f32 to vector<2x64xf32>
    %96 = arith.addf %95, %94 : vector<2x64xf32>
    %97 = arith.divf %95, %96 : vector<2x64xf32>
    %98 = vector.extract_strided_slice %97 {offsets = [0, 0], sizes = [2, 32], strides = [1, 1]} : vector<2x64xf32> to vector<2x32xf32>
    %99 = vector.extract_strided_slice %97 {offsets = [0, 32], sizes = [2, 32], strides = [1, 1]} : vector<2x64xf32> to vector<2x32xf32>
    %100 = vector.extract_strided_slice %86 {offsets = [0, 64], sizes = [2, 32], strides = [1, 1]} : vector<2x96xf32> to vector<2x32xf32>
    %101 = vector.extract_strided_slice %89 {offsets = [0, 64], sizes = [2, 32], strides = [1, 1]} : vector<2x96xf32> to vector<2x32xf32>
    %102 = arith.mulf %98, %101 : vector<2x32xf32>
    %103 = arith.addf %100, %102 : vector<2x32xf32>
    %104 = math.tanh %103 : vector<2x32xf32>
    %cst_19 = arith.constant 1.000000e+00 : f32
    %105 = vector.broadcast %cst_19 : f32 to vector<2x32xf32>
    %106 = arith.subf %105, %99 : vector<2x32xf32>
    %107 = arith.mulf %106, %104 : vector<2x32xf32>
    %108 = arith.mulf %99, %84 : vector<2x32xf32>
    %109 = arith.addf %107, %108 : vector<2x32xf32>
    %110 = vector.extract_strided_slice %6 {offsets = [4, 0, 0], sizes = [1, 2, 96], strides = [1, 1, 1]} : vector<8x2x96xf32> to vector<1x2x96xf32>
    %111 = vector.shape_cast %110 : vector<1x2x96xf32> to vector<2x96xf32>
    %cst_20 = arith.constant dense<0.000000e+00> : vector<2x96xf32>
    %112 = tpu.matmul %109, %7, %cst_20 {dimension_numbers = #tpu.dot_dimension_numbers<[1], [0], [0], [1], [0, 0, 1, 1], [], []>} : vector<2x32xf32>, vector<32x96xf32>, vector<2x96xf32> -> vector<2x96xf32>
    %113 = vector.broadcast %8 : vector<1x96xf32> to vector<2x96xf32>
    %114 = arith.addf %112, %113 : vector<2x96xf32>
    %115 = vector.extract_strided_slice %111 {offsets = [0, 0], sizes = [2, 64], strides = [1, 1]} : vector<2x96xf32> to vector<2x64xf32>
    %116 = vector.extract_strided_slice %114 {offsets = [0, 0], sizes = [2, 64], strides = [1, 1]} : vector<2x96xf32> to vector<2x64xf32>
    %117 = arith.addf %115, %116 : vector<2x64xf32>
    %118 = arith.negf %117 : vector<2x64xf32>
    %119 = math.exp %118 : vector<2x64xf32>
    %cst_21 = arith.constant 1.000000e+00 : f32
    %120 = vector.broadcast %cst_21 : f32 to vector<2x64xf32>
    %121 = arith.addf %120, %119 : vector<2x64xf32>
    %122 = arith.divf %120, %121 : vector<2x64xf32>
    %123 = vector.extract_strided_slice %122 {offsets = [0, 0], sizes = [2, 32], strides = [1, 1]} : vector<2x64xf32> to vector<2x32xf32>
    %124 = vector.extract_strided_slice %122 {offsets = [0, 32], sizes = [2, 32], strides = [1, 1]} : vector<2x64xf32> to vector<2x32xf32>
    %125 = vector.extract_strided_slice %111 {offsets = [0, 64], sizes = [2, 32], strides = [1, 1]} : vector<2x96xf32> to vector<2x32xf32>
    %126 = vector.extract_strided_slice %114 {offsets = [0, 64], sizes = [2, 32], strides = [1, 1]} : vector<2x96xf32> to vector<2x32xf32>
    %127 = arith.mulf %123, %126 : vector<2x32xf32>
    %128 = arith.addf %125, %127 : vector<2x32xf32>
    %129 = math.tanh %128 : vector<2x32xf32>
    %cst_22 = arith.constant 1.000000e+00 : f32
    %130 = vector.broadcast %cst_22 : f32 to vector<2x32xf32>
    %131 = arith.subf %130, %124 : vector<2x32xf32>
    %132 = arith.mulf %131, %129 : vector<2x32xf32>
    %133 = arith.mulf %124, %109 : vector<2x32xf32>
    %134 = arith.addf %132, %133 : vector<2x32xf32>
    %135 = vector.extract_strided_slice %6 {offsets = [5, 0, 0], sizes = [1, 2, 96], strides = [1, 1, 1]} : vector<8x2x96xf32> to vector<1x2x96xf32>
    %136 = vector.shape_cast %135 : vector<1x2x96xf32> to vector<2x96xf32>
    %cst_23 = arith.constant dense<0.000000e+00> : vector<2x96xf32>
    %137 = tpu.matmul %134, %7, %cst_23 {dimension_numbers = #tpu.dot_dimension_numbers<[1], [0], [0], [1], [0, 0, 1, 1], [], []>} : vector<2x32xf32>, vector<32x96xf32>, vector<2x96xf32> -> vector<2x96xf32>
    %138 = vector.broadcast %8 : vector<1x96xf32> to vector<2x96xf32>
    %139 = arith.addf %137, %138 : vector<2x96xf32>
    %140 = vector.extract_strided_slice %136 {offsets = [0, 0], sizes = [2, 64], strides = [1, 1]} : vector<2x96xf32> to vector<2x64xf32>
    %141 = vector.extract_strided_slice %139 {offsets = [0, 0], sizes = [2, 64], strides = [1, 1]} : vector<2x96xf32> to vector<2x64xf32>
    %142 = arith.addf %140, %141 : vector<2x64xf32>
    %143 = arith.negf %142 : vector<2x64xf32>
    %144 = math.exp %143 : vector<2x64xf32>
    %cst_24 = arith.constant 1.000000e+00 : f32
    %145 = vector.broadcast %cst_24 : f32 to vector<2x64xf32>
    %146 = arith.addf %145, %144 : vector<2x64xf32>
    %147 = arith.divf %145, %146 : vector<2x64xf32>
    %148 = vector.extract_strided_slice %147 {offsets = [0, 0], sizes = [2, 32], strides = [1, 1]} : vector<2x64xf32> to vector<2x32xf32>
    %149 = vector.extract_strided_slice %147 {offsets = [0, 32], sizes = [2, 32], strides = [1, 1]} : vector<2x64xf32> to vector<2x32xf32>
    %150 = vector.extract_strided_slice %136 {offsets = [0, 64], sizes = [2, 32], strides = [1, 1]} : vector<2x96xf32> to vector<2x32xf32>
    %151 = vector.extract_strided_slice %139 {offsets = [0, 64], sizes = [2, 32], strides = [1, 1]} : vector<2x96xf32> to vector<2x32xf32>
    %152 = arith.mulf %148, %151 : vector<2x32xf32>
    %153 = arith.addf %150, %152 : vector<2x32xf32>
    %154 = math.tanh %153 : vector<2x32xf32>
    %cst_25 = arith.constant 1.000000e+00 : f32
    %155 = vector.broadcast %cst_25 : f32 to vector<2x32xf32>
    %156 = arith.subf %155, %149 : vector<2x32xf32>
    %157 = arith.mulf %156, %154 : vector<2x32xf32>
    %158 = arith.mulf %149, %134 : vector<2x32xf32>
    %159 = arith.addf %157, %158 : vector<2x32xf32>
    %160 = vector.extract_strided_slice %6 {offsets = [6, 0, 0], sizes = [1, 2, 96], strides = [1, 1, 1]} : vector<8x2x96xf32> to vector<1x2x96xf32>
    %161 = vector.shape_cast %160 : vector<1x2x96xf32> to vector<2x96xf32>
    %cst_26 = arith.constant dense<0.000000e+00> : vector<2x96xf32>
    %162 = tpu.matmul %159, %7, %cst_26 {dimension_numbers = #tpu.dot_dimension_numbers<[1], [0], [0], [1], [0, 0, 1, 1], [], []>} : vector<2x32xf32>, vector<32x96xf32>, vector<2x96xf32> -> vector<2x96xf32>
    %163 = vector.broadcast %8 : vector<1x96xf32> to vector<2x96xf32>
    %164 = arith.addf %162, %163 : vector<2x96xf32>
    %165 = vector.extract_strided_slice %161 {offsets = [0, 0], sizes = [2, 64], strides = [1, 1]} : vector<2x96xf32> to vector<2x64xf32>
    %166 = vector.extract_strided_slice %164 {offsets = [0, 0], sizes = [2, 64], strides = [1, 1]} : vector<2x96xf32> to vector<2x64xf32>
    %167 = arith.addf %165, %166 : vector<2x64xf32>
    %168 = arith.negf %167 : vector<2x64xf32>
    %169 = math.exp %168 : vector<2x64xf32>
    %cst_27 = arith.constant 1.000000e+00 : f32
    %170 = vector.broadcast %cst_27 : f32 to vector<2x64xf32>
    %171 = arith.addf %170, %169 : vector<2x64xf32>
    %172 = arith.divf %170, %171 : vector<2x64xf32>
    %173 = vector.extract_strided_slice %172 {offsets = [0, 0], sizes = [2, 32], strides = [1, 1]} : vector<2x64xf32> to vector<2x32xf32>
    %174 = vector.extract_strided_slice %172 {offsets = [0, 32], sizes = [2, 32], strides = [1, 1]} : vector<2x64xf32> to vector<2x32xf32>
    %175 = vector.extract_strided_slice %161 {offsets = [0, 64], sizes = [2, 32], strides = [1, 1]} : vector<2x96xf32> to vector<2x32xf32>
    %176 = vector.extract_strided_slice %164 {offsets = [0, 64], sizes = [2, 32], strides = [1, 1]} : vector<2x96xf32> to vector<2x32xf32>
    %177 = arith.mulf %173, %176 : vector<2x32xf32>
    %178 = arith.addf %175, %177 : vector<2x32xf32>
    %179 = math.tanh %178 : vector<2x32xf32>
    %cst_28 = arith.constant 1.000000e+00 : f32
    %180 = vector.broadcast %cst_28 : f32 to vector<2x32xf32>
    %181 = arith.subf %180, %174 : vector<2x32xf32>
    %182 = arith.mulf %181, %179 : vector<2x32xf32>
    %183 = arith.mulf %174, %159 : vector<2x32xf32>
    %184 = arith.addf %182, %183 : vector<2x32xf32>
    %185 = vector.extract_strided_slice %6 {offsets = [7, 0, 0], sizes = [1, 2, 96], strides = [1, 1, 1]} : vector<8x2x96xf32> to vector<1x2x96xf32>
    %186 = vector.shape_cast %185 : vector<1x2x96xf32> to vector<2x96xf32>
    %cst_29 = arith.constant dense<0.000000e+00> : vector<2x96xf32>
    %187 = tpu.matmul %184, %7, %cst_29 {dimension_numbers = #tpu.dot_dimension_numbers<[1], [0], [0], [1], [0, 0, 1, 1], [], []>} : vector<2x32xf32>, vector<32x96xf32>, vector<2x96xf32> -> vector<2x96xf32>
    %188 = vector.broadcast %8 : vector<1x96xf32> to vector<2x96xf32>
    %189 = arith.addf %187, %188 : vector<2x96xf32>
    %190 = vector.extract_strided_slice %186 {offsets = [0, 0], sizes = [2, 64], strides = [1, 1]} : vector<2x96xf32> to vector<2x64xf32>
    %191 = vector.extract_strided_slice %189 {offsets = [0, 0], sizes = [2, 64], strides = [1, 1]} : vector<2x96xf32> to vector<2x64xf32>
    %192 = arith.addf %190, %191 : vector<2x64xf32>
    %193 = arith.negf %192 : vector<2x64xf32>
    %194 = math.exp %193 : vector<2x64xf32>
    %cst_30 = arith.constant 1.000000e+00 : f32
    %195 = vector.broadcast %cst_30 : f32 to vector<2x64xf32>
    %196 = arith.addf %195, %194 : vector<2x64xf32>
    %197 = arith.divf %195, %196 : vector<2x64xf32>
    %198 = vector.extract_strided_slice %197 {offsets = [0, 0], sizes = [2, 32], strides = [1, 1]} : vector<2x64xf32> to vector<2x32xf32>
    %199 = vector.extract_strided_slice %197 {offsets = [0, 32], sizes = [2, 32], strides = [1, 1]} : vector<2x64xf32> to vector<2x32xf32>
    %200 = vector.extract_strided_slice %186 {offsets = [0, 64], sizes = [2, 32], strides = [1, 1]} : vector<2x96xf32> to vector<2x32xf32>
    %201 = vector.extract_strided_slice %189 {offsets = [0, 64], sizes = [2, 32], strides = [1, 1]} : vector<2x96xf32> to vector<2x32xf32>
    %202 = arith.mulf %198, %201 : vector<2x32xf32>
    %203 = arith.addf %200, %202 : vector<2x32xf32>
    %204 = math.tanh %203 : vector<2x32xf32>
    %cst_31 = arith.constant 1.000000e+00 : f32
    %205 = vector.broadcast %cst_31 : f32 to vector<2x32xf32>
    %206 = arith.subf %205, %199 : vector<2x32xf32>
    %207 = arith.mulf %206, %204 : vector<2x32xf32>
    %208 = arith.mulf %199, %184 : vector<2x32xf32>
    %209 = arith.addf %207, %208 : vector<2x32xf32>
    %210 = vector.shape_cast %34 : vector<2x32xf32> to vector<2x1x32xf32>
    %211 = vector.shape_cast %59 : vector<2x32xf32> to vector<2x1x32xf32>
    %212 = vector.shape_cast %84 : vector<2x32xf32> to vector<2x1x32xf32>
    %213 = vector.shape_cast %109 : vector<2x32xf32> to vector<2x1x32xf32>
    %214 = vector.shape_cast %134 : vector<2x32xf32> to vector<2x1x32xf32>
    %215 = vector.shape_cast %159 : vector<2x32xf32> to vector<2x1x32xf32>
    %216 = vector.shape_cast %184 : vector<2x32xf32> to vector<2x1x32xf32>
    %217 = vector.shape_cast %209 : vector<2x32xf32> to vector<2x1x32xf32>
    %218 = tpu.concatenate %210, %211, %212, %213, %214, %215, %216, %217 in 1 : vector<2x1x32xf32>, vector<2x1x32xf32>, vector<2x1x32xf32>, vector<2x1x32xf32>, vector<2x1x32xf32>, vector<2x1x32xf32>, vector<2x1x32xf32>, vector<2x1x32xf32> -> vector<2x8x32xf32>
    %c32_32 = arith.constant 32 : index
    %c0_33 = arith.constant 0 : index
    %219 = vector.load %arg2[%c32_32, %c0_33] : memref<480x128xbf16, #tpu.memory_space<vmem>>, vector<64x32xbf16>
    %c34 = arith.constant 34 : index
    %c0_34 = arith.constant 0 : index
    %220 = vector.load %arg3[%c34, %c0_34] : memref<48x128xf32, #tpu.memory_space<vmem>>, vector<1x32xf32>
    %c0_35 = arith.constant 0 : index
    %c0_36 = arith.constant 0 : index
    %221 = vector.load %arg1[%c0_35, %c0_36] : memref<32x64xbf16, #tpu.memory_space<vmem>>, vector<32x64xbf16>
    %cst_37 = arith.constant dense<0.000000e+00> : vector<32x32xf32>
    %222 = tpu.matmul %221, %219, %cst_37 {dimension_numbers = #tpu.dot_dimension_numbers<[1], [0], [0], [1], [0, 0, 1, 1], [], []>} : vector<32x64xbf16>, vector<64x32xbf16>, vector<32x32xf32> -> vector<32x32xf32>
    %223 = vector.broadcast %220 : vector<1x32xf32> to vector<32x32xf32>
    %224 = arith.addf %222, %223 : vector<32x32xf32>
    %225 = arith.truncf %224 : vector<32x32xf32> to vector<32x32xbf16>
    %226 = vector.shape_cast %224 : vector<32x32xf32> to vector<2x16x32xf32>
    %c96 = arith.constant 96 : index
    %c0_38 = arith.constant 0 : index
    %227 = vector.load %arg2[%c96, %c0_38] : memref<480x128xbf16, #tpu.memory_space<vmem>>, vector<32x96xbf16>
    %c35 = arith.constant 35 : index
    %c0_39 = arith.constant 0 : index
    %228 = vector.load %arg3[%c35, %c0_39] : memref<48x128xf32, #tpu.memory_space<vmem>>, vector<1x96xf32>
    %c128 = arith.constant 128 : index
    %c0_40 = arith.constant 0 : index
    %229 = vector.load %arg2[%c128, %c0_40] : memref<480x128xbf16, #tpu.memory_space<vmem>>, vector<32x96xbf16>
    %c36 = arith.constant 36 : index
    %c0_41 = arith.constant 0 : index
    %230 = vector.load %arg3[%c36, %c0_41] : memref<48x128xf32, #tpu.memory_space<vmem>>, vector<1x96xf32>
    %cst_42 = arith.constant dense<0.000000e+00> : vector<32x96xf32>
    %231 = tpu.matmul %225, %227, %cst_42 {dimension_numbers = #tpu.dot_dimension_numbers<[1], [0], [0], [1], [0, 0, 1, 1], [], []>} : vector<32x32xbf16>, vector<32x96xbf16>, vector<32x96xf32> -> vector<32x96xf32>
    %232 = vector.broadcast %228 : vector<1x96xf32> to vector<32x96xf32>
    %233 = arith.addf %231, %232 : vector<32x96xf32>
    %cst_43 = arith.constant 0.000000e+00 : f32
    %234 = vector.broadcast %cst_43 : f32 to vector<32x96xf32>
    %235 = arith.maximumf %233, %234 : vector<32x96xf32>
    %236 = vector.shape_cast %218 : vector<2x8x32xf32> to vector<16x32xf32>
    %237 = arith.truncf %236 : vector<16x32xf32> to vector<16x32xbf16>
    %cst_44 = arith.constant dense<0.000000e+00> : vector<16x96xf32>
    %238 = tpu.matmul %237, %229, %cst_44 {dimension_numbers = #tpu.dot_dimension_numbers<[1], [0], [0], [1], [0, 0, 1, 1], [], []>} : vector<16x32xbf16>, vector<32x96xbf16>, vector<16x96xf32> -> vector<16x96xf32>
    %239 = vector.broadcast %230 : vector<1x96xf32> to vector<16x96xf32>
    %240 = arith.addf %238, %239 : vector<16x96xf32>
    %cst_45 = arith.constant 0.000000e+00 : f32
    %241 = vector.broadcast %cst_45 : f32 to vector<16x96xf32>
    %242 = arith.maximumf %240, %241 : vector<16x96xf32>
    %243 = vector.shape_cast %235 : vector<32x96xf32> to vector<2x16x96xf32>
    %244 = vector.shape_cast %242 : vector<16x96xf32> to vector<2x8x96xf32>
    %c44 = arith.constant 44 : index
    %c0_46 = arith.constant 0 : index
    %245 = vector.load %arg3[%c44, %c0_46] : memref<48x128xf32, #tpu.memory_space<vmem>>, vector<2x96xf32>
    %246 = vector.shape_cast %243 : vector<2x16x96xf32> to vector<1x2x16x96xf32>
    %247 = vector.shape_cast %245 : vector<2x96xf32> to vector<2x1x1x96xf32>
    %248 = vector.broadcast %246 : vector<1x2x16x96xf32> to vector<2x2x16x96xf32>
    %249 = vector.broadcast %247 : vector<2x1x1x96xf32> to vector<2x2x16x96xf32>
    %250 = arith.mulf %248, %249 : vector<2x2x16x96xf32>
    %251 = arith.truncf %250 : vector<2x2x16x96xf32> to vector<2x2x16x96xbf16>
    %252 = vector.shape_cast %251 : vector<2x2x16x96xbf16> to vector<4x16x96xbf16>
    %253 = arith.truncf %244 : vector<2x8x96xf32> to vector<2x8x96xbf16>
    %254 = vector.shape_cast %253 : vector<2x8x96xbf16> to vector<1x2x8x96xbf16>
    %255 = vector.shape_cast %254 : vector<1x2x8x96xbf16> to vector<1x2x8x96xbf16>
    %256 = vector.broadcast %255 : vector<1x2x8x96xbf16> to vector<2x2x8x96xbf16>
    %257 = vector.shape_cast %256 : vector<2x2x8x96xbf16> to vector<4x8x96xbf16>
    "tpu.trace_start"() <{level = 10 : i32, message = "nvk,nqk->nvq"}> : () -> ()
    %cst_47 = arith.constant dense<0.000000e+00> : vector<4x16x8xf32>
    %258 = tpu.matmul %252, %257, %cst_47 {dimension_numbers = #tpu.dot_dimension_numbers<[2], [2], [1], [1], [0, 0, 0, 1, 1, 1], [0], [0]>} : vector<4x16x96xbf16>, vector<4x8x96xbf16>, vector<4x16x8xf32> -> vector<4x16x8xf32>
    "tpu.trace_stop"() : () -> ()
    %259 = math.absf %226 : vector<2x16x32xf32>
    %cst_48 = arith.constant dense<0.000000e+00> : vector<2x16xf32>
    %260 = vector.multi_reduction <add>, %259, %cst_48 [2] : vector<2x16x32xf32> to vector<2x16xf32>
    %cst_49 = arith.constant 0.000000e+00 : f32
    %261 = vector.broadcast %cst_49 : f32 to vector<2x16xf32>
    %262 = arith.cmpf oeq, %260, %261 : vector<2x16xf32>
    %263 = vector.shape_cast %262 : vector<2x16xi1> to vector<1x2x16xi1>
    %264 = vector.shape_cast %263 : vector<1x2x16xi1> to vector<1x2x16xi1>
    %265 = vector.broadcast %264 : vector<1x2x16xi1> to vector<2x2x16xi1>
    %266 = vector.shape_cast %265 : vector<2x2x16xi1> to vector<4x16xi1>
    %267 = vector.shape_cast %266 : vector<4x16xi1> to vector<4x16x1xi1>
    %cst_50 = arith.constant -1.000000e+30 : f32
    %268 = vector.shape_cast %267 : vector<4x16x1xi1> to vector<4x16x1xi1>
    %269 = vector.broadcast %268 : vector<4x16x1xi1> to vector<4x16x8xi1>
    %270 = vector.broadcast %cst_50 : f32 to vector<4x16x8xf32>
    %271 = arith.select %269, %270, %258 : vector<4x16x8xi1>, vector<4x16x8xf32>
    %272 = vector.shape_cast %271 : vector<4x16x8xf32> to vector<4x128xf32>
    %cst_51 = arith.constant dense<0xFF800000> : vector<4xf32>
    %273 = vector.multi_reduction <maximumf>, %272, %cst_51 [1] : vector<4x128xf32> to vector<4xf32>
    %274 = vector.shape_cast %273 : vector<4xf32> to vector<4x1xf32>
    %275 = vector.broadcast %274 : vector<4x1xf32> to vector<4x128xf32>
    %276 = arith.subf %272, %275 : vector<4x128xf32>
    %277 = math.exp %276 : vector<4x128xf32>
    %cst_52 = arith.constant dense<0.000000e+00> : vector<4xf32>
    %278 = vector.multi_reduction <add>, %277, %cst_52 [1] : vector<4x128xf32> to vector<4xf32>
    %279 = vector.shape_cast %278 : vector<4xf32> to vector<4x1xf32>
    %280 = tpu.reciprocal %279 {approx = true} : vector<4x1xf32> -> vector<4x1xf32>
    %281 = vector.broadcast %280 : vector<4x1xf32> to vector<4x128xf32>
    %282 = arith.mulf %277, %281 : vector<4x128xf32>
    %283 = arith.truncf %282 : vector<4x128xf32> to vector<4x128xbf16>
    %284 = vector.shape_cast %283 : vector<4x128xbf16> to vector<2x2x16x8xbf16>
    %c160 = arith.constant 160 : index
    %c0_53 = arith.constant 0 : index
    %285 = vector.load %arg2[%c160, %c0_53] : memref<480x128xbf16, #tpu.memory_space<vmem>>, vector<32x128xbf16>
    %c37 = arith.constant 37 : index
    %c0_54 = arith.constant 0 : index
    %286 = vector.load %arg3[%c37, %c0_54] : memref<48x128xf32, #tpu.memory_space<vmem>>, vector<1x128xf32>
    %cst_55 = arith.constant dense<0.000000e+00> : vector<32x128xf32>
    %287 = tpu.matmul %225, %285, %cst_55 {dimension_numbers = #tpu.dot_dimension_numbers<[1], [0], [0], [1], [0, 0, 1, 1], [], []>} : vector<32x32xbf16>, vector<32x128xbf16>, vector<32x128xf32> -> vector<32x128xf32>
    %288 = vector.broadcast %286 : vector<1x128xf32> to vector<32x128xf32>
    %289 = arith.addf %287, %288 : vector<32x128xf32>
    %cst_56 = arith.constant 0.000000e+00 : f32
    %290 = vector.broadcast %cst_56 : f32 to vector<32x128xf32>
    %291 = arith.maximumf %289, %290 : vector<32x128xf32>
    %292 = vector.shape_cast %291 : vector<32x128xf32> to vector<2x16x128xf32>
    %c192 = arith.constant 192 : index
    %c0_57 = arith.constant 0 : index
    %293 = vector.load %arg2[%c192, %c0_57] : memref<480x128xbf16, #tpu.memory_space<vmem>>, vector<32x64xbf16>
    %c38 = arith.constant 38 : index
    %c0_58 = arith.constant 0 : index
    %294 = vector.load %arg3[%c38, %c0_58] : memref<48x128xf32, #tpu.memory_space<vmem>>, vector<1x64xf32>
    %295 = vector.shape_cast %218 : vector<2x8x32xf32> to vector<16x32xf32>
    %296 = arith.truncf %295 : vector<16x32xf32> to vector<16x32xbf16>
    %cst_59 = arith.constant dense<0.000000e+00> : vector<16x64xf32>
    %297 = tpu.matmul %296, %293, %cst_59 {dimension_numbers = #tpu.dot_dimension_numbers<[1], [0], [0], [1], [0, 0, 1, 1], [], []>} : vector<16x32xbf16>, vector<32x64xbf16>, vector<16x64xf32> -> vector<16x64xf32>
    %298 = vector.broadcast %294 : vector<1x64xf32> to vector<16x64xf32>
    %299 = arith.addf %297, %298 : vector<16x64xf32>
    %cst_60 = arith.constant 0.000000e+00 : f32
    %300 = vector.broadcast %cst_60 : f32 to vector<16x64xf32>
    %301 = arith.maximumf %299, %300 : vector<16x64xf32>
    %302 = vector.shape_cast %301 : vector<16x64xf32> to vector<2x8x64xf32>
    %303 = vector.extract_strided_slice %284 {offsets = [0, 0, 0, 0], sizes = [1, 2, 16, 8], strides = [1, 1, 1, 1]} : vector<2x2x16x8xbf16> to vector<1x2x16x8xbf16>
    %304 = vector.shape_cast %303 : vector<1x2x16x8xbf16> to vector<2x16x8xbf16>
    %305 = arith.truncf %302 : vector<2x8x64xf32> to vector<2x8x64xbf16>
    "tpu.trace_start"() <{level = 10 : i32, message = "bvq,bqd->bvd"}> : () -> ()
    %cst_61 = arith.constant dense<0.000000e+00> : vector<2x16x64xf32>
    %306 = tpu.matmul %304, %305, %cst_61 {dimension_numbers = #tpu.dot_dimension_numbers<[2], [1], [1], [2], [0, 0, 0, 1, 1, 2], [0], [0]>} : vector<2x16x8xbf16>, vector<2x8x64xbf16>, vector<2x16x64xf32> -> vector<2x16x64xf32>
    "tpu.trace_stop"() : () -> ()
    %307 = vector.extract_strided_slice %292 {offsets = [0, 0, 0], sizes = [2, 16, 64], strides = [1, 1, 1]} : vector<2x16x128xf32> to vector<2x16x64xf32>
    %308 = arith.mulf %307, %306 : vector<2x16x64xf32>
    %cst_62 = arith.constant dense<0.000000e+00> : vector<2x64xf32>
    %309 = vector.multi_reduction <add>, %308, %cst_62 [1] : vector<2x16x64xf32> to vector<2x64xf32>
    %c256 = arith.constant 256 : index
    %c0_63 = arith.constant 0 : index
    %310 = vector.load %arg2[%c256, %c0_63] : memref<480x128xbf16, #tpu.memory_space<vmem>>, vector<64x32xbf16>
    %c40 = arith.constant 40 : index
    %c0_64 = arith.constant 0 : index
    %311 = vector.load %arg3[%c40, %c0_64] : memref<48x128xf32, #tpu.memory_space<vmem>>, vector<1x32xf32>
    %312 = arith.truncf %309 : vector<2x64xf32> to vector<2x64xbf16>
    %cst_65 = arith.constant dense<0.000000e+00> : vector<2x32xf32>
    %313 = tpu.matmul %312, %310, %cst_65 {dimension_numbers = #tpu.dot_dimension_numbers<[1], [0], [0], [1], [0, 0, 1, 1], [], []>} : vector<2x64xbf16>, vector<64x32xbf16>, vector<2x32xf32> -> vector<2x32xf32>
    %314 = vector.broadcast %311 : vector<1x32xf32> to vector<2x32xf32>
    %315 = arith.addf %313, %314 : vector<2x32xf32>
    %316 = vector.shape_cast %315 : vector<2x32xf32> to vector<2x1x32xf32>
    %317 = vector.broadcast %316 : vector<2x1x32xf32> to vector<2x8x32xf32>
    %318 = arith.addf %218, %317 : vector<2x8x32xf32>
    %c224 = arith.constant 224 : index
    %c0_66 = arith.constant 0 : index
    %319 = vector.load %arg2[%c224, %c0_66] : memref<480x128xbf16, #tpu.memory_space<vmem>>, vector<32x64xbf16>
    %c39 = arith.constant 39 : index
    %c0_67 = arith.constant 0 : index
    %320 = vector.load %arg3[%c39, %c0_67] : memref<48x128xf32, #tpu.memory_space<vmem>>, vector<1x64xf32>
    %321 = vector.shape_cast %318 : vector<2x8x32xf32> to vector<16x32xf32>
    %322 = arith.truncf %321 : vector<16x32xf32> to vector<16x32xbf16>
    %cst_68 = arith.constant dense<0.000000e+00> : vector<16x64xf32>
    %323 = tpu.matmul %322, %319, %cst_68 {dimension_numbers = #tpu.dot_dimension_numbers<[1], [0], [0], [1], [0, 0, 1, 1], [], []>} : vector<16x32xbf16>, vector<32x64xbf16>, vector<16x64xf32> -> vector<16x64xf32>
    %324 = vector.broadcast %320 : vector<1x64xf32> to vector<16x64xf32>
    %325 = arith.addf %323, %324 : vector<16x64xf32>
    %cst_69 = arith.constant 0.000000e+00 : f32
    %326 = vector.broadcast %cst_69 : f32 to vector<16x64xf32>
    %327 = arith.maximumf %325, %326 : vector<16x64xf32>
    %328 = vector.shape_cast %327 : vector<16x64xf32> to vector<2x8x64xf32>
    %329 = vector.extract_strided_slice %284 {offsets = [1, 0, 0, 0], sizes = [1, 2, 16, 8], strides = [1, 1, 1, 1]} : vector<2x2x16x8xbf16> to vector<1x2x16x8xbf16>
    %330 = vector.shape_cast %329 : vector<1x2x16x8xbf16> to vector<2x16x8xbf16>
    %331 = arith.truncf %328 : vector<2x8x64xf32> to vector<2x8x64xbf16>
    "tpu.trace_start"() <{level = 10 : i32, message = "bvq,bqd->bvd"}> : () -> ()
    %cst_70 = arith.constant dense<0.000000e+00> : vector<2x16x64xf32>
    %332 = tpu.matmul %330, %331, %cst_70 {dimension_numbers = #tpu.dot_dimension_numbers<[2], [1], [1], [2], [0, 0, 0, 1, 1, 2], [0], [0]>} : vector<2x16x8xbf16>, vector<2x8x64xbf16>, vector<2x16x64xf32> -> vector<2x16x64xf32>
    "tpu.trace_stop"() : () -> ()
    %333 = vector.extract_strided_slice %292 {offsets = [0, 0, 64], sizes = [2, 16, 64], strides = [1, 1, 1]} : vector<2x16x128xf32> to vector<2x16x64xf32>
    %334 = arith.mulf %333, %332 : vector<2x16x64xf32>
    %cst_71 = arith.constant dense<0.000000e+00> : vector<2x64xf32>
    %335 = vector.multi_reduction <add>, %334, %cst_71 [1] : vector<2x16x64xf32> to vector<2x64xf32>
    %c320 = arith.constant 320 : index
    %c0_72 = arith.constant 0 : index
    %336 = vector.load %arg2[%c320, %c0_72] : memref<480x128xbf16, #tpu.memory_space<vmem>>, vector<64x32xbf16>
    %c41 = arith.constant 41 : index
    %c0_73 = arith.constant 0 : index
    %337 = vector.load %arg3[%c41, %c0_73] : memref<48x128xf32, #tpu.memory_space<vmem>>, vector<1x32xf32>
    %338 = arith.truncf %335 : vector<2x64xf32> to vector<2x64xbf16>
    %cst_74 = arith.constant dense<0.000000e+00> : vector<2x32xf32>
    %339 = tpu.matmul %338, %336, %cst_74 {dimension_numbers = #tpu.dot_dimension_numbers<[1], [0], [0], [1], [0, 0, 1, 1], [], []>} : vector<2x64xbf16>, vector<64x32xbf16>, vector<2x32xf32> -> vector<2x32xf32>
    %340 = vector.broadcast %337 : vector<1x32xf32> to vector<2x32xf32>
    %341 = arith.addf %339, %340 : vector<2x32xf32>
    %342 = vector.shape_cast %341 : vector<2x32xf32> to vector<2x1x32xf32>
    %343 = vector.broadcast %342 : vector<2x1x32xf32> to vector<2x8x32xf32>
    %344 = arith.addf %318, %343 : vector<2x8x32xf32>
    %cst_75 = arith.constant dense<0.000000e+00> : vector<2x32xf32>
    %345 = vector.multi_reduction <add>, %344, %cst_75 [1] : vector<2x8x32xf32> to vector<2x32xf32>
    %c384 = arith.constant 384 : index
    %c0_76 = arith.constant 0 : index
    %346 = vector.load %arg2[%c384, %c0_76] : memref<480x128xbf16, #tpu.memory_space<vmem>>, vector<32x64xbf16>
    %c42 = arith.constant 42 : index
    %c0_77 = arith.constant 0 : index
    %347 = vector.load %arg3[%c42, %c0_77] : memref<48x128xf32, #tpu.memory_space<vmem>>, vector<1x64xf32>
    %348 = arith.truncf %345 : vector<2x32xf32> to vector<2x32xbf16>
    %cst_78 = arith.constant dense<0.000000e+00> : vector<2x64xf32>
    %349 = tpu.matmul %348, %346, %cst_78 {dimension_numbers = #tpu.dot_dimension_numbers<[1], [0], [0], [1], [0, 0, 1, 1], [], []>} : vector<2x32xbf16>, vector<32x64xbf16>, vector<2x64xf32> -> vector<2x64xf32>
    %350 = vector.broadcast %347 : vector<1x64xf32> to vector<2x64xf32>
    %351 = arith.addf %349, %350 : vector<2x64xf32>
    %cst_79 = arith.constant 0.000000e+00 : f32
    %352 = vector.broadcast %cst_79 : f32 to vector<2x64xf32>
    %353 = arith.maximumf %351, %352 : vector<2x64xf32>
    %c416 = arith.constant 416 : index
    %c0_80 = arith.constant 0 : index
    %354 = vector.load %arg2[%c416, %c0_80] : memref<480x128xbf16, #tpu.memory_space<vmem>>, vector<64x128xbf16>
    %c43 = arith.constant 43 : index
    %c0_81 = arith.constant 0 : index
    %355 = vector.load %arg3[%c43, %c0_81] : memref<48x128xf32, #tpu.memory_space<vmem>>, vector<1x128xf32>
    %356 = arith.truncf %353 : vector<2x64xf32> to vector<2x64xbf16>
    %cst_82 = arith.constant dense<0.000000e+00> : vector<2x128xf32>
    %357 = tpu.matmul %356, %354, %cst_82 {dimension_numbers = #tpu.dot_dimension_numbers<[1], [0], [0], [1], [0, 0, 1, 1], [], []>} : vector<2x64xbf16>, vector<64x128xbf16>, vector<2x128xf32> -> vector<2x128xf32>
    %358 = vector.broadcast %355 : vector<1x128xf32> to vector<2x128xf32>
    %359 = arith.addf %357, %358 : vector<2x128xf32>
    %c0_83 = arith.constant 0 : index
    %c0_84 = arith.constant 0 : index
    %360 = vector.load %arg4[%c0_83, %c0_84] : memref<2x128xf32, #tpu.memory_space<vmem>>, vector<2x128xf32>
    tpu.vector_store %arg4[%c0_83, %c0_84], %359 {strides = array<i32>} : memref<2x128xf32, #tpu.memory_space<vmem>>, vector<2x128xf32>,
    return
  }
}

</mosaic_0001>

<llo_original>
// kernel: net_forward.1
$region0: #{net_forward.1}
  #allocation0 [shape = 'u32[]', space=smem, size = 0x4, offset = 0x4, fixed_abs, tag = 'smem constant byte address 0x4 - core index']
  #allocation1 [shape = 'u32[144,128]{1,0:T(1,128)}', space=vmem, size = 0x12000, scoped, tag = 'internal scratch']
  %s0 = inlined_call_operand.vmem [shape: bf16[16,32], index: 0, kind: input, shape index: {}]
  %s1 = inlined_call_operand.vmem [shape: bf16[32,64], index: 1, kind: input, shape index: {}]
  %s2 = inlined_call_operand.hbm [shape: bf16[480,128], index: 2, kind: input, shape index: {}]
  %s3 = inlined_call_operand.vmem [shape: f32[48,128], index: 3, kind: input, shape index: {}]
  %s4 = inlined_call_operand.hbm [shape: f32[2,128], index: 4, kind: output, shape index: {}]
  %s5 = sld [smem:[#allocation0]]
  $region30: #{net_forward.1} parent=0
    _
  %s7 = ssub.s32 1, %s5
  %s8 = scalar_select 0, %s7, %s5
  $region1: #{net_forward.1} parent=0
    #allocation2 [shape = 'u8[122880]{0}', space=vmem, size = 0x1e000, scoped, tag = 'input window, operand 2, single buffered']
    #allocation3 [shape = 's32[1]{0}', space=sflag, size = 0x4, scoped, tag = 'scoped memory for net_forward.1']
    #allocation4 [shape = 's32[1]{0}', space=sflag, size = 0x4, scoped, tag = 'scoped memory for net_forward.1']
    #allocation5 [shape = 'u8[1024]{0}', space=vmem, size = 0x400, scoped, tag = 'output window, operand 0, single buffered']
    %9 = vsyncpa [#allocation3], 0
    %10 = vsyncpa [#allocation4], 0
    // Predicated region
    $region2: #{net_forward.1} parent=1 // pred_check
      _
    $region3: #{net_forward.1} parent=1 // pred_check_branch
      %12 = sbr.rel (0) target = $region5
    $region4: #{net_forward.1} parent=1 // pred_region
      _
    $region5: #{net_forward.1} parent=1 // pred_fallthru
      _
    // Predicated region
    $region6: #{net_forward.1} parent=1 // pred_check
      _
    $region7: #{net_forward.1} parent=1 // pred_check_branch
      %14 = sbr.rel (0) target = $region9
    $region8: #{net_forward.1} parent=1 // pred_region
      _
    $region9: #{net_forward.1} parent=1 // pred_fallthru
      _
    // Predicated region
    $region10: #{net_forward.1} parent=1 // pred_check
      _
    $region11: #{net_forward.1} parent=1 // pred_check_branch
      %16 = sbr.rel (0) target = $region13
    $region12: #{net_forward.1} parent=1 // pred_region
      %s18 = ssub.s32 3840, 3840
      %19 = vsyncadd [#allocation3], %s18
      %s20 = sshll.u32 [#allocation2], 4
      %s21 = int_to_ptr.vmem [resolvable:$true] %s20
      %26 = dma.hbm_to_vmem [thread:$0]  %s2, 3840, %s21, [#allocation3], 64, 64, 4
    $region13: #{net_forward.1} parent=1 // pred_fallthru
      _
    // Predicated region
    $region14: #{net_forward.1} parent=1 // pred_check
      _
    $region15: #{net_forward.1} parent=1 // pred_check_branch
      %28 = sbr.rel (0) target = $region17
    $region16: #{net_forward.1} parent=1 // pred_region
      _
    $region17: #{net_forward.1} parent=1 // pred_fallthru
      _
    // Predicated region
    $region18: #{net_forward.1} parent=1 // pred_check
      _
    $region19: #{net_forward.1} parent=1 // pred_check_branch
      %30 = sbr.rel (0) target = $region21
    $region20: #{net_forward.1} parent=1 // pred_region
      %31 = dma.done [#allocation3], 3840
    $region21: #{net_forward.1} parent=1 // pred_fallthru
      _
    %v33 = vld [vmem:[#allocation2] sm:$0xf]
    %v34 = vld [vmem:[#allocation2 + $0x4] sm:$0xf]
    %v35 = vld [vmem:[#allocation2 + $0x8] sm:$0xf]
    %v36 = vld [vmem:[#allocation2 + $0xc] sm:$0xf]
    %v37 = vld [vmem:[%s3 + $0x20] sm:$0x1]
    %v38 = vld [vmem:[%s0] sm:$0xf]
    %v39 = vld [vmem:[%s0 + $0x4] sm:$0xf]
    %v40 = vlaneseq
    %v41 = vshrl.u32 %v40, 7
    %v42 = vsub.s32 0, %v41
    %v43 = vrot.slane %v37, %v42
    %v46 = vunpack.c.l.b16 %v38
    %v47 = vunpack.c.l.b16 %v39
    %v48 = vpack.c.b16 %v47, %v46
    %v53 = vunpack.c.l.b16 %v33
    %v54 = vunpack.c.l.b16 %v34
    %v55 = vunpack.c.l.b16 %v35
    %v56 = vunpack.c.l.b16 %v36
    %v57 = vpack.c.b16 %v54, %v53
    %v58 = vpack.c.b16 %v56, %v55
    %vm61 = vcmask 261120
    %v63 = vsel %vm61, %v48, 0
    %65 = vmatprep.subr.bf16.mxu0 0
    %66 = vmatpush1.bf16.msra.mxu0 0
    %67 = vmatprep.subr.bf16.mxu0 0
    %68 = vmatpush1.bf16.msra.mxu0 0
    %69 = vmatprep.subr.bf16.mxu0 0
    %70 = vmatpush1.bf16.msra.mxu0 0
    %71 = vmatprep.subr.bf16.mxu0 0
    %72 = vmatpush1.bf16.msra.mxu0 0
    %73 = vmatprep.subr.bf16.mxu0 0
    %74 = vmatpush1.bf16.msra.mxu0 0
    %75 = vmatprep.subr.bf16.mxu0 0
    %76 = vmatpush1.bf16.msra.mxu0 0
    %77 = vmatprep.subr.bf16.mxu0 0
    %78 = vmatpush1.bf16.msra.mxu0 %v58
    %79 = vmatprep.subr.bf16.mxu0 0
    %80 = vmatpush1.bf16.msra.mxu0 %v57
    %81 = vmatprep.subr.bf16.mxu0 0
    %82 = vmatpush2.bf16.msra.mxu0 0
    %83 = vmatprep.subr.bf16.mxu0 0
    %84 = vmatpush2.bf16.msra.mxu0 0
    %85 = vmatprep.subr.bf16.mxu0 0
    %86 = vmatpush2.bf16.msra.mxu0 0
    %87 = vmatprep.subr.bf16.mxu0 0
    %88 = vmatpush2.bf16.msra.mxu0 0
    %89 = vmatprep.subr.bf16.mxu0 0
    %90 = vmatpush2.bf16.msra.mxu0 0
    %91 = vmatprep.subr.bf16.mxu0 0
    %92 = vmatpush2.bf16.msra.mxu0 0
    %93 = vmatprep.subr.bf16.mxu0 0
    %94 = vmatpush2.bf16.msra.mxu0 0
    %95 = vmatprep.subr.bf16.mxu0 0
    %96 = vmatpush2.bf16.msra.mxu0 0
    %97 = vmatprep.mubr.bf16.mxu0 0
    %98 = vmatmul.mubr.bf16.gmra.mxu0 %v63
    %v99 = vpop.f32.mrf.mxu0
    %v100 = vadd.f32 %v43, %v99
    %v101 = vpop.f32.mrf.mxu0
    %v102 = vpop.f32.mrf.mxu0
    %v103 = vadd.f32 %v43, %v102
    %v104 = vpop.f32.mrf.mxu0
    %105 = vdwg.mxu0
    %v108 = vcombine.high %v100, %v100
    %v110 = vunpack.c.l.s4 1983009808
    %v111 = vunpack.c.0.s8 %v110
    %v112 = vlaneseq
    %v113 = vshrl.u32 %v112, 7
    %v114 = vsub.s32 %v111, %v113
    %v115 = vrot.slane %v100, %v114
    %v117 = vunpack.c.l.s4 1983009808
    %v118 = vunpack.c.0.s8 %v117
    %v119 = vlaneseq
    %v120 = vshrl.u32 %v119, 7
    %v121 = vsub.s32 %v118, %v120
    %v122 = vrot.slane %v108, %v121
    %v123 = vcombine.high %v115, %v115
    %v124 = vcombine.high %v122, %v122
    %v125 = vcombine.high %v103, %v103
    %v127 = vunpack.c.l.s4 1983009808
    %v128 = vunpack.c.0.s8 %v127
    %v129 = vlaneseq
    %v130 = vshrl.u32 %v129, 7
    %v131 = vsub.s32 %v128, %v130
    %v132 = vrot.slane %v103, %v131
    %v134 = vunpack.c.l.s4 1983009808
    %v135 = vunpack.c.0.s8 %v134
    %v136 = vlaneseq
    %v137 = vshrl.u32 %v136, 7
    %v138 = vsub.s32 %v135, %v137
    %v139 = vrot.slane %v125, %v138
    %v140 = vcombine.high %v132, %v132
    %v141 = vcombine.high %v139, %v139
    %v150 = vld [vmem:[%s3] sm:$0xff]
    %v151 = vld [vmem:[%s3 + $0x8] sm:$0xff]
    %v152 = vld [vmem:[%s3 + $0x10] sm:$0xff]
    %v153 = vld [vmem:[%s3 + $0x18] sm:$0xff]
    %v154 = vld [vmem:[%s3 + $0x21] sm:$0x1]
    %v155 = vlaneseq
    %v156 = vshrl.u32 %v155, 7
    %v157 = vsub.s32 0, %v156
    %v158 = vrot.slane %v154, %v157
    %v160 = vsel %vm61, 0.0, 0
    %162 = vmatprep.subr.mxu0 0.0
    %163 = vmatpush1.msra.mxu0 0.0
    %164 = vmatprep.subr.mxu0 0.0
    %165 = vmatpush1.msra.mxu0 0.0
    %166 = vmatprep.subr.mxu0 0.0
    %167 = vmatpush1.msra.mxu0 0.0
    %168 = vmatprep.subr.mxu0 0.0
    %169 = vmatpush1.msra.mxu0 0.0
    %170 = vmatprep.subr.mxu0 0.0
    %171 = vmatpush1.msra.mxu0 0.0
    %172 = vmatprep.subr.mxu0 0.0
    %173 = vmatpush1.msra.mxu0 0.0
    %174 = vmatprep.subr.mxu0 0.0
    %175 = vmatpush1.msra.mxu0 0.0
    %176 = vmatprep.subr.mxu0 0.0
    %177 = vmatpush1.msra.mxu0 0.0
    %178 = vmatprep.subr.mxu0 0.0
    %179 = vmatpush1.msra.mxu0 0.0
    %180 = vmatprep.subr.mxu0 0.0
    %181 = vmatpush1.msra.mxu0 0.0
    %182 = vmatprep.subr.mxu0 0.0
    %183 = vmatpush1.msra.mxu0 0.0
    %184 = vmatprep.subr.mxu0 0.0
    %185 = vmatpush1.msra.mxu0 0.0
    %186 = vmatprep.subr.mxu0 0.0
    %187 = vmatpush1.msra.mxu0 %v153
    %188 = vmatprep.subr.mxu0 0.0
    %189 = vmatpush1.msra.mxu0 %v152
    %190 = vmatprep.subr.mxu0 0.0
    %191 = vmatpush1.msra.mxu0 %v151
    %192 = vmatprep.subr.mxu0 0.0
    %193 = vmatpush1.msra.mxu0 %v150
    %194 = vmatprep.subr.mxu0 0.0
    %195 = vmatpush2.msra.mxu0 0.0
    %196 = vmatprep.subr.mxu0 0.0
    %197 = vmatpush2.msra.mxu0 0.0
    %198 = vmatprep.subr.mxu0 0.0
    %199 = vmatpush2.msra.mxu0 0.0
    %200 = vmatprep.subr.mxu0 0.0
    %201 = vmatpush2.msra.mxu0 0.0
    %202 = vmatprep.subr.mxu0 0.0
    %203 = vmatpush2.msra.mxu0 0.0
    %204 = vmatprep.subr.mxu0 0.0
    %205 = vmatpush2.msra.mxu0 0.0
    %206 = vmatprep.subr.mxu0 0.0
    %207 = vmatpush2.msra.mxu0 0.0
    %208 = vmatprep.subr.mxu0 0.0
    %209 = vmatpush2.msra.mxu0 0.0
    %210 = vmatprep.subr.mxu0 0.0
    %211 = vmatpush2.msra.mxu0 0.0
    %212 = vmatprep.subr.mxu0 0.0
    %213 = vmatpush2.msra.mxu0 0.0
    %214 = vmatprep.subr.mxu0 0.0
    %215 = vmatpush2.msra.mxu0 0.0
    %216 = vmatprep.subr.mxu0 0.0
    %217 = vmatpush2.msra.mxu0 0.0
    %218 = vmatprep.subr.mxu0 0.0
    %219 = vmatpush2.msra.mxu0 0.0
    %220 = vmatprep.subr.mxu0 0.0
    %221 = vmatpush2.msra.mxu0 0.0
    %222 = vmatprep.subr.mxu0 0.0
    %223 = vmatpush2.msra.mxu0 0.0
    %224 = vmatprep.subr.mxu0 0.0
    %225 = vmatpush2.msra.mxu0 0.0
    %226 = vmatprep.mubr.f32.mxu0 0.0
    %227 = vmatmul.mubr.f32.gmra.mxu0 %v160
    %v228 = vpop.f32.mrf.mxu0
    %v229 = vadd.f32 %v158, %v228
    %v230 = vpop.f32.mrf.mxu0
    %231 = vdwg.mxu0
    %v232 = vadd.f32 %v115, %v229
    %v233 = vxor.u32 %v232, 2147483648
    %v234 = vmul.f32 %v233, 1.442695
    %v235 = vpow.pop %v234
    %v236 = vadd.f32 %v235, 1.0
    %v237 = vrcp.pop %v236
    %v238 = vmul.f32 1.0, %v237
    %v241 = vunpack.c.l.s4 1983009808
    %v242 = vunpack.c.0.s8 %v241
    %v243 = vlaneseq
    %v244 = vshrl.u32 %v243, 7
    %v245 = vsub.s32 %v242, %v244
    %v246 = vrot.slane %v229, %v245
    %247 = vrot.lane.b32.xlu0 %v246, 64
    %v248 = vpop.permute.xlu0 %247
    %v250 = vmul.f32 %v238, %v248
    %252 = vrot.lane.b32.xlu0 %v250, 64
    %v253 = vpop.permute.xlu0 %252
    %v255 = vadd.f32 %v115, %v253
    %v256 = vtanh.pop %v255
    %v257 = vsub.f32 1.0, %v238
    %259 = vrot.lane.b32.xlu0 %v256, 96
    %v260 = vpop.permute.xlu0 %259
    %v262 = vmul.f32 %v257, %v260
    %v263 = vmul.f32 %v238, 0.0
    %v264 = vadd.f32 %v262, %v263
    %v267 = vunpack.c.l.s4 1983009808
    %v268 = vunpack.c.0.s8 %v267
    %v269 = vlaneseq
    %v270 = vshrl.u32 %v269, 7
    %v271 = vsub.s32 %v268, %v270
    %v272 = vrot.slane %v264, %v271
    %273 = vrot.lane.b32.xlu0 %v272, 96
    %v274 = vpop.permute.xlu0 %273
    %v275 = vsel %vm61, %v274, 0
    %277 = vmatprep.subr.mxu0 0.0
    %278 = vmatpush1.msra.mxu0 0.0
    %279 = vmatprep.subr.mxu0 0.0
    %280 = vmatpush1.msra.mxu0 0.0
    %281 = vmatprep.subr.mxu0 0.0
    %282 = vmatpush1.msra.mxu0 0.0
    %283 = vmatprep.subr.mxu0 0.0
    %284 = vmatpush1.msra.mxu0 0.0
    %285 = vmatprep.subr.mxu0 0.0
    %286 = vmatpush1.msra.mxu0 0.0
    %287 = vmatprep.subr.mxu0 0.0
    %288 = vmatpush1.msra.mxu0 0.0
    %289 = vmatprep.subr.mxu0 0.0
    %290 = vmatpush1.msra.mxu0 0.0
    %291 = vmatprep.subr.mxu0 0.0
    %292 = vmatpush1.msra.mxu0 0.0
    %293 = vmatprep.subr.mxu0 0.0
    %294 = vmatpush1.msra.mxu0 0.0
    %295 = vmatprep.subr.mxu0 0.0
    %296 = vmatpush1.msra.mxu0 0.0
    %297 = vmatprep.subr.mxu0 0.0
    %298 = vmatpush1.msra.mxu0 0.0
    %299 = vmatprep.subr.mxu0 0.0
    %300 = vmatpush1.msra.mxu0 0.0
    %301 = vmatprep.subr.mxu0 0.0
    %302 = vmatpush1.msra.mxu0 %v153
    %303 = vmatprep.subr.mxu0 0.0
    %304 = vmatpush1.msra.mxu0 %v152
    %305 = vmatprep.subr.mxu0 0.0
    %306 = vmatpush1.msra.mxu0 %v151
    %307 = vmatprep.subr.mxu0 0.0
    %308 = vmatpush1.msra.mxu0 %v150
    %309 = vmatprep.subr.mxu0 0.0
    %310 = vmatpush2.msra.mxu0 0.0
    %311 = vmatprep.subr.mxu0 0.0
    %312 = vmatpush2.msra.mxu0 0.0
    %313 = vmatprep.subr.mxu0 0.0
    %314 = vmatpush2.msra.mxu0 0.0
    %315 = vmatprep.subr.mxu0 0.0
    %316 = vmatpush2.msra.mxu0 0.0
    %317 = vmatprep.subr.mxu0 0.0
    %318 = vmatpush2.msra.mxu0 0.0
    %319 = vmatprep.subr.mxu0 0.0
    %320 = vmatpush2.msra.mxu0 0.0
    %321 = vmatprep.subr.mxu0 0.0
    %322 = vmatpush2.msra.mxu0 0.0
    %323 = vmatprep.subr.mxu0 0.0
    %324 = vmatpush2.msra.mxu0 0.0
    %325 = vmatprep.subr.mxu0 0.0
    %326 = vmatpush2.msra.mxu0 0.0
    %327 = vmatprep.subr.mxu0 0.0
    %328 = vmatpush2.msra.mxu0 0.0
    %329 = vmatprep.subr.mxu0 0.0
    %330 = vmatpush2.msra.mxu0 0.0
    %331 = vmatprep.subr.mxu0 0.0
    %332 = vmatpush2.msra.mxu0 0.0
    %333 = vmatprep.subr.mxu0 0.0
    %334 = vmatpush2.msra.mxu0 0.0
    %335 = vmatprep.subr.mxu0 0.0
    %336 = vmatpush2.msra.mxu0 0.0
    %337 = vmatprep.subr.mxu0 0.0
    %338 = vmatpush2.msra.mxu0 0.0
    %339 = vmatprep.subr.mxu0 0.0
    %340 = vmatpush2.msra.mxu0 0.0
    %341 = vmatprep.mubr.f32.mxu0 0.0
    %342 = vmatmul.mubr.f32.gmra.mxu0 %v275
    %v343 = vpop.f32.mrf.mxu0
    %v344 = vadd.f32 %v158, %v343
    %v345 = vpop.f32.mrf.mxu0
    %346 = vdwg.mxu0
    %v347 = vadd.f32 %v123, %v344
    %v348 = vxor.u32 %v347, 2147483648
    %v349 = vmul.f32 %v348, 1.442695
    %v350 = vpow.pop %v349
    %v351 = vadd.f32 %v350, 1.0
    %v352 = vrcp.pop %v351
    %v353 = vmul.f32 1.0, %v352
    %v356 = vunpack.c.l.s4 1983009808
    %v357 = vunpack.c.0.s8 %v356
    %v358 = vlaneseq
    %v359 = vshrl.u32 %v358, 7
    %v360 = vsub.s32 %v357, %v359
    %v361 = vrot.slane %v344, %v360
    %362 = vrot.lane.b32.xlu0 %v361, 64
    %v363 = vpop.permute.xlu0 %362
    %v365 = vmul.f32 %v353, %v363
    %367 = vrot.lane.b32.xlu0 %v365, 64
    %v368 = vpop.permute.xlu0 %367
    %v370 = vadd.f32 %v123, %v368
    %v371 = vtanh.pop %v370
    %v372 = vsub.f32 1.0, %v353
    %374 = vrot.lane.b32.xlu0 %v371, 96
    %v375 = vpop.permute.xlu0 %374
    %v377 = vmul.f32 %v372, %v375
    %v378 = vmul.f32 %v353, %v264
    %v379 = vadd.f32 %v377, %v378
    %v382 = vunpack.c.l.s4 1983009808
    %v383 = vunpack.c.0.s8 %v382
    %v384 = vlaneseq
    %v385 = vshrl.u32 %v384, 7
    %v386 = vsub.s32 %v383, %v385
    %v387 = vrot.slane %v379, %v386
    %388 = vrot.lane.b32.xlu0 %v387, 96
    %v389 = vpop.permute.xlu0 %388
    %v390 = vsel %vm61, %v389, 0
    %392 = vmatprep.subr.mxu0 0.0
    %393 = vmatpush1.msra.mxu0 0.0
    %394 = vmatprep.subr.mxu0 0.0
    %395 = vmatpush1.msra.mxu0 0.0
    %396 = vmatprep.subr.mxu0 0.0
    %397 = vmatpush1.msra.mxu0 0.0
    %398 = vmatprep.subr.mxu0 0.0
    %399 = vmatpush1.msra.mxu0 0.0
    %400 = vmatprep.subr.mxu0 0.0
    %401 = vmatpush1.msra.mxu0 0.0
    %402 = vmatprep.subr.mxu0 0.0
    %403 = vmatpush1.msra.mxu0 0.0
    %404 = vmatprep.subr.mxu0 0.0
    %405 = vmatpush1.msra.mxu0 0.0
    %406 = vmatprep.subr.mxu0 0.0
    %407 = vmatpush1.msra.mxu0 0.0
    %408 = vmatprep.subr.mxu0 0.0
    %409 = vmatpush1.msra.mxu0 0.0
    %410 = vmatprep.subr.mxu0 0.0
    %411 = vmatpush1.msra.mxu0 0.0
    %412 = vmatprep.subr.mxu0 0.0
    %413 = vmatpush1.msra.mxu0 0.0
    %414 = vmatprep.subr.mxu0 0.0
    %415 = vmatpush1.msra.mxu0 0.0
    %416 = vmatprep.subr.mxu0 0.0
    %417 = vmatpush1.msra.mxu0 %v153
    %418 = vmatprep.subr.mxu0 0.0
    %419 = vmatpush1.msra.mxu0 %v152
    %420 = vmatprep.subr.mxu0 0.0
    %421 = vmatpush1.msra.mxu0 %v151
    %422 = vmatprep.subr.mxu0 0.0
    %423 = vmatpush1.msra.mxu0 %v150
    %424 = vmatprep.subr.mxu0 0.0
    %425 = vmatpush2.msra.mxu0 0.0
    %426 = vmatprep.subr.mxu0 0.0
    %427 = vmatpush2.msra.mxu0 0.0
    %428 = vmatprep.subr.mxu0 0.0
    %429 = vmatpush2.msra.mxu0 0.0
    %430 = vmatprep.subr.mxu0 0.0
    %431 = vmatpush2.msra.mxu0 0.0
    %432 = vmatprep.subr.mxu0 0.0
    %433 = vmatpush2.msra.mxu0 0.0
    %434 = vmatprep.subr.mxu0 0.0
    %435 = vmatpush2.msra.mxu0 0.0
    %436 = vmatprep.subr.mxu0 0.0
    %437 = vmatpush2.msra.mxu0 0.0
    %438 = vmatprep.subr.mxu0 0.0
    %439 = vmatpush2.msra.mxu0 0.0
    %440 = vmatprep.subr.mxu0 0.0
    %441 = vmatpush2.msra.mxu0 0.0
    %442 = vmatprep.subr.mxu0 0.0
    %443 = vmatpush2.msra.mxu0 0.0
    %444 = vmatprep.subr.mxu0 0.0
    %445 = vmatpush2.msra.mxu0 0.0
    %446 = vmatprep.subr.mxu0 0.0
    %447 = vmatpush2.msra.mxu0 0.0
    %448 = vmatprep.subr.mxu0 0.0
    %449 = vmatpush2.msra.mxu0 0.0
    %450 = vmatprep.subr.mxu0 0.0
    %451 = vmatpush2.msra.mxu0 0.0
    %452 = vmatprep.subr.mxu0 0.0
    %453 = vmatpush2.msra.mxu0 0.0
    %454 = vmatprep.subr.mxu0 0.0
    %455 = vmatpush2.msra.mxu0 0.0
    %456 = vmatprep.mubr.f32.mxu0 0.0
    %457 = vmatmul.mubr.f32.gmra.mxu0 %v390
    %v458 = vpop.f32.mrf.mxu0
    %v459 = vadd.f32 %v158, %v458
    %v460 = vpop.f32.mrf.mxu0
    %461 = vdwg.mxu0
    %v462 = vadd.f32 %v122, %v459
    %v463 = vxor.u32 %v462, 2147483648
    %v464 = vmul.f32 %v463, 1.442695
    %v465 = vpow.pop %v464
    %v466 = vadd.f32 %v465, 1.0
    %v467 = vrcp.pop %v466
    %v468 = vmul.f32 1.0, %v467
    %v471 = vunpack.c.l.s4 1983009808
    %v472 = vunpack.c.0.s8 %v471
    %v473 = vlaneseq
    %v474 = vshrl.u32 %v473, 7
    %v475 = vsub.s32 %v472, %v474
    %v476 = vrot.slane %v459, %v475
    %477 = vrot.lane.b32.xlu0 %v476, 64
    %v478 = vpop.permute.xlu0 %477
    %v480 = vmul.f32 %v468, %v478
    %482 = vrot.lane.b32.xlu0 %v480, 64
    %v483 = vpop.permute.xlu0 %482
    %v485 = vadd.f32 %v122, %v483
    %v486 = vtanh.pop %v485
    %v487 = vsub.f32 1.0, %v468
    %489 = vrot.lane.b32.xlu0 %v486, 96
    %v490 = vpop.permute.xlu0 %489
    %v492 = vmul.f32 %v487, %v490
    %v493 = vmul.f32 %v468, %v379
    %v494 = vadd.f32 %v492, %v493
    %v497 = vunpack.c.l.s4 1983009808
    %v498 = vunpack.c.0.s8 %v497
    %v499 = vlaneseq
    %v500 = vshrl.u32 %v499, 7
    %v501 = vsub.s32 %v498, %v500
    %v502 = vrot.slane %v494, %v501
    %503 = vrot.lane.b32.xlu0 %v502, 96
    %v504 = vpop.permute.xlu0 %503
    %v505 = vsel %vm61, %v504, 0
    %507 = vmatprep.subr.mxu0 0.0
    %508 = vmatpush1.msra.mxu0 0.0
    %509 = vmatprep.subr.mxu0 0.0
    %510 = vmatpush1.msra.mxu0 0.0
    %511 = vmatprep.subr.mxu0 0.0
    %512 = vmatpush1.msra.mxu0 0.0
    %513 = vmatprep.subr.mxu0 0.0
    %514 = vmatpush1.msra.mxu0 0.0
    %515 = vmatprep.subr.mxu0 0.0
    %516 = vmatpush1.msra.mxu0 0.0
    %517 = vmatprep.subr.mxu0 0.0
    %518 = vmatpush1.msra.mxu0 0.0
    %519 = vmatprep.subr.mxu0 0.0
    %520 = vmatpush1.msra.mxu0 0.0
    %521 = vmatprep.subr.mxu0 0.0
    %522 = vmatpush1.msra.mxu0 0.0
    %523 = vmatprep.subr.mxu0 0.0
    %524 = vmatpush1.msra.mxu0 0.0
    %525 = vmatprep.subr.mxu0 0.0
    %526 = vmatpush1.msra.mxu0 0.0
    %527 = vmatprep.subr.mxu0 0.0
    %528 = vmatpush1.msra.mxu0 0.0
    %529 = vmatprep.subr.mxu0 0.0
    %530 = vmatpush1.msra.mxu0 0.0
    %531 = vmatprep.subr.mxu0 0.0
    %532 = vmatpush1.msra.mxu0 %v153
    %533 = vmatprep.subr.mxu0 0.0
    %534 = vmatpush1.msra.mxu0 %v152
    %535 = vmatprep.subr.mxu0 0.0
    %536 = vmatpush1.msra.mxu0 %v151
    %537 = vmatprep.subr.mxu0 0.0
    %538 = vmatpush1.msra.mxu0 %v150
    %539 = vmatprep.subr.mxu0 0.0
    %540 = vmatpush2.msra.mxu0 0.0
    %541 = vmatprep.subr.mxu0 0.0
    %542 = vmatpush2.msra.mxu0 0.0
    %543 = vmatprep.subr.mxu0 0.0
    %544 = vmatpush2.msra.mxu0 0.0
    %545 = vmatprep.subr.mxu0 0.0
    %546 = vmatpush2.msra.mxu0 0.0
    %547 = vmatprep.subr.mxu0 0.0
    %548 = vmatpush2.msra.mxu0 0.0
    %549 = vmatprep.subr.mxu0 0.0
    %550 = vmatpush2.msra.mxu0 0.0
    %551 = vmatprep.subr.mxu0 0.0
    %552 = vmatpush2.msra.mxu0 0.0
    %553 = vmatprep.subr.mxu0 0.0
    %554 = vmatpush2.msra.mxu0 0.0
    %555 = vmatprep.subr.mxu0 0.0
    %556 = vmatpush2.msra.mxu0 0.0
    %557 = vmatprep.subr.mxu0 0.0
    %558 = vmatpush2.msra.mxu0 0.0
    %559 = vmatprep.subr.mxu0 0.0
    %560 = vmatpush2.msra.mxu0 0.0
    %561 = vmatprep.subr.mxu0 0.0
    %562 = vmatpush2.msra.mxu0 0.0
    %563 = vmatprep.subr.mxu0 0.0
    %564 = vmatpush2.msra.mxu0 0.0
    %565 = vmatprep.subr.mxu0 0.0
    %566 = vmatpush2.msra.mxu0 0.0
    %567 = vmatprep.subr.mxu0 0.0
    %568 = vmatpush2.msra.mxu0 0.0
    %569 = vmatprep.subr.mxu0 0.0
    %570 = vmatpush2.msra.mxu0 0.0
    %571 = vmatprep.mubr.f32.mxu0 0.0
    %572 = vmatmul.mubr.f32.gmra.mxu0 %v505
    %v573 = vpop.f32.mrf.mxu0
    %v574 = vadd.f32 %v158, %v573
    %v575 = vpop.f32.mrf.mxu0
    %576 = vdwg.mxu0
    %v577 = vadd.f32 %v124, %v574
    %v578 = vxor.u32 %v577, 2147483648
    %v579 = vmul.f32 %v578, 1.442695
    %v580 = vpow.pop %v579
    %v581 = vadd.f32 %v580, 1.0
    %v582 = vrcp.pop %v581
    %v583 = vmul.f32 1.0, %v582
    %v586 = vunpack.c.l.s4 1983009808
    %v587 = vunpack.c.0.s8 %v586
    %v588 = vlaneseq
    %v589 = vshrl.u32 %v588, 7
    %v590 = vsub.s32 %v587, %v589
    %v591 = vrot.slane %v574, %v590
    %592 = vrot.lane.b32.xlu0 %v591, 64
    %v593 = vpop.permute.xlu0 %592
    %v595 = vmul.f32 %v583, %v593
    %597 = vrot.lane.b32.xlu0 %v595, 64
    %v598 = vpop.permute.xlu0 %597
    %v600 = vadd.f32 %v124, %v598
    %v601 = vtanh.pop %v600
    %v602 = vsub.f32 1.0, %v583
    %604 = vrot.lane.b32.xlu0 %v601, 96
    %v605 = vpop.permute.xlu0 %604
    %v607 = vmul.f32 %v602, %v605
    %v608 = vmul.f32 %v583, %v494
    %v609 = vadd.f32 %v607, %v608
    %v612 = vunpack.c.l.s4 1983009808
    %v613 = vunpack.c.0.s8 %v612
    %v614 = vlaneseq
    %v615 = vshrl.u32 %v614, 7
    %v616 = vsub.s32 %v613, %v615
    %v617 = vrot.slane %v609, %v616
    %618 = vrot.lane.b32.xlu0 %v617, 96
    %v619 = vpop.permute.xlu0 %618
    %v620 = vsel %vm61, %v619, 0
    %622 = vmatprep.subr.mxu0 0.0
    %623 = vmatpush1.msra.mxu0 0.0
    %624 = vmatprep.subr.mxu0 0.0
    %625 = vmatpush1.msra.mxu0 0.0
    %626 = vmatprep.subr.mxu0 0.0
    %627 = vmatpush1.msra.mxu0 0.0
    %628 = vmatprep.subr.mxu0 0.0
    %629 = vmatpush1.msra.mxu0 0.0
    %630 = vmatprep.subr.mxu0 0.0
    %631 = vmatpush1.msra.mxu0 0.0
    %632 = vmatprep.subr.mxu0 0.0
    %633 = vmatpush1.msra.mxu0 0.0
    %634 = vmatprep.subr.mxu0 0.0
    %635 = vmatpush1.msra.mxu0 0.0
    %636 = vmatprep.subr.mxu0 0.0
    %637 = vmatpush1.msra.mxu0 0.0
    %638 = vmatprep.subr.mxu0 0.0
    %639 = vmatpush1.msra.mxu0 0.0
    %640 = vmatprep.subr.mxu0 0.0
    %641 = vmatpush1.msra.mxu0 0.0
    %642 = vmatprep.subr.mxu0 0.0
    %643 = vmatpush1.msra.mxu0 0.0
    %644 = vmatprep.subr.mxu0 0.0
    %645 = vmatpush1.msra.mxu0 0.0
    %646 = vmatprep.subr.mxu0 0.0
    %647 = vmatpush1.msra.mxu0 %v153
    %648 = vmatprep.subr.mxu0 0.0
    %649 = vmatpush1.msra.mxu0 %v152
    %650 = vmatprep.subr.mxu0 0.0
    %651 = vmatpush1.msra.mxu0 %v151
    %652 = vmatprep.subr.mxu0 0.0
    %653 = vmatpush1.msra.mxu0 %v150
    %654 = vmatprep.subr.mxu0 0.0
    %655 = vmatpush2.msra.mxu0 0.0
    %656 = vmatprep.subr.mxu0 0.0
    %657 = vmatpush2.msra.mxu0 0.0
    %658 = vmatprep.subr.mxu0 0.0
    %659 = vmatpush2.msra.mxu0 0.0
    %660 = vmatprep.subr.mxu0 0.0
    %661 = vmatpush2.msra.mxu0 0.0
    %662 = vmatprep.subr.mxu0 0.0
    %663 = vmatpush2.msra.mxu0 0.0
    %664 = vmatprep.subr.mxu0 0.0
    %665 = vmatpush2.msra.mxu0 0.0
    %666 = vmatprep.subr.mxu0 0.0
    %667 = vmatpush2.msra.mxu0 0.0
    %668 = vmatprep.subr.mxu0 0.0
    %669 = vmatpush2.msra.mxu0 0.0
    %670 = vmatprep.subr.mxu0 0.0
    %671 = vmatpush2.msra.mxu0 0.0
    %672 = vmatprep.subr.mxu0 0.0
    %673 = vmatpush2.msra.mxu0 0.0
    %674 = vmatprep.subr.mxu0 0.0
    %675 = vmatpush2.msra.mxu0 0.0
    %676 = vmatprep.subr.mxu0 0.0
    %677 = vmatpush2.msra.mxu0 0.0
    %678 = vmatprep.subr.mxu0 0.0
    %679 = vmatpush2.msra.mxu0 0.0
    %680 = vmatprep.subr.mxu0 0.0
    %681 = vmatpush2.msra.mxu0 0.0
    %682 = vmatprep.subr.mxu0 0.0
    %683 = vmatpush2.msra.mxu0 0.0
    %684 = vmatprep.subr.mxu0 0.0
    %685 = vmatpush2.msra.mxu0 0.0
    %686 = vmatprep.mubr.f32.mxu0 0.0
    %687 = vmatmul.mubr.f32.gmra.mxu0 %v620
    %v688 = vpop.f32.mrf.mxu0
    %v689 = vadd.f32 %v158, %v688
    %v690 = vpop.f32.mrf.mxu0
    %691 = vdwg.mxu0
    %v692 = vadd.f32 %v132, %v689
    %v693 = vxor.u32 %v692, 2147483648
    %v694 = vmul.f32 %v693, 1.442695
    %v695 = vpow.pop %v694
    %v696 = vadd.f32 %v695, 1.0
    %v697 = vrcp.pop %v696
    %v698 = vmul.f32 1.0, %v697
    %v701 = vunpack.c.l.s4 1983009808
    %v702 = vunpack.c.0.s8 %v701
    %v703 = vlaneseq
    %v704 = vshrl.u32 %v703, 7
    %v705 = vsub.s32 %v702, %v704
    %v706 = vrot.slane %v689, %v705
    %707 = vrot.lane.b32.xlu0 %v706, 64
    %v708 = vpop.permute.xlu0 %707
    %v710 = vmul.f32 %v698, %v708
    %712 = vrot.lane.b32.xlu0 %v710, 64
    %v713 = vpop.permute.xlu0 %712
    %v715 = vadd.f32 %v132, %v713
    %v716 = vtanh.pop %v715
    %v717 = vsub.f32 1.0, %v698
    %719 = vrot.lane.b32.xlu0 %v716, 96
    %v720 = vpop.permute.xlu0 %719
    %v722 = vmul.f32 %v717, %v720
    %v723 = vmul.f32 %v698, %v609
    %v724 = vadd.f32 %v722, %v723
    %v727 = vunpack.c.l.s4 1983009808
    %v728 = vunpack.c.0.s8 %v727
    %v729 = vlaneseq
    %v730 = vshrl.u32 %v729, 7
    %v731 = vsub.s32 %v728, %v730
    %v732 = vrot.slane %v724, %v731
    %733 = vrot.lane.b32.xlu0 %v732, 96
    %v734 = vpop.permute.xlu0 %733
    %v735 = vsel %vm61, %v734, 0
    %737 = vmatprep.subr.mxu0 0.0
    %738 = vmatpush1.msra.mxu0 0.0
    %739 = vmatprep.subr.mxu0 0.0
    %740 = vmatpush1.msra.mxu0 0.0
    %741 = vmatprep.subr.mxu0 0.0
    %742 = vmatpush1.msra.mxu0 0.0
    %743 = vmatprep.subr.mxu0 0.0
    %744 = vmatpush1.msra.mxu0 0.0
    %745 = vmatprep.subr.mxu0 0.0
    %746 = vmatpush1.msra.mxu0 0.0
    %747 = vmatprep.subr.mxu0 0.0
    %748 = vmatpush1.msra.mxu0 0.0
    %749 = vmatprep.subr.mxu0 0.0
    %750 = vmatpush1.msra.mxu0 0.0
    %751 = vmatprep.subr.mxu0 0.0
    %752 = vmatpush1.msra.mxu0 0.0
    %753 = vmatprep.subr.mxu0 0.0
    %754 = vmatpush1.msra.mxu0 0.0
    %755 = vmatprep.subr.mxu0 0.0
    %756 = vmatpush1.msra.mxu0 0.0
    %757 = vmatprep.subr.mxu0 0.0
    %758 = vmatpush1.msra.mxu0 0.0
    %759 = vmatprep.subr.mxu0 0.0
    %760 = vmatpush1.msra.mxu0 0.0
    %761 = vmatprep.subr.mxu0 0.0
    %762 = vmatpush1.msra.mxu0 %v153
    %763 = vmatprep.subr.mxu0 0.0
    %764 = vmatpush1.msra.mxu0 %v152
    %765 = vmatprep.subr.mxu0 0.0
    %766 = vmatpush1.msra.mxu0 %v151
    %767 = vmatprep.subr.mxu0 0.0
    %768 = vmatpush1.msra.mxu0 %v150
    %769 = vmatprep.subr.mxu0 0.0
    %770 = vmatpush2.msra.mxu0 0.0
    %771 = vmatprep.subr.mxu0 0.0
    %772 = vmatpush2.msra.mxu0 0.0
    %773 = vmatprep.subr.mxu0 0.0
    %774 = vmatpush2.msra.mxu0 0.0
    %775 = vmatprep.subr.mxu0 0.0
    %776 = vmatpush2.msra.mxu0 0.0
    %777 = vmatprep.subr.mxu0 0.0
    %778 = vmatpush2.msra.mxu0 0.0
    %779 = vmatprep.subr.mxu0 0.0
    %780 = vmatpush2.msra.mxu0 0.0
    %781 = vmatprep.subr.mxu0 0.0
    %782 = vmatpush2.msra.mxu0 0.0
    %783 = vmatprep.subr.mxu0 0.0
    %784 = vmatpush2.msra.mxu0 0.0
    %785 = vmatprep.subr.mxu0 0.0
    %786 = vmatpush2.msra.mxu0 0.0
    %787 = vmatprep.subr.mxu0 0.0
    %788 = vmatpush2.msra.mxu0 0.0
    %789 = vmatprep.subr.mxu0 0.0
    %790 = vmatpush2.msra.mxu0 0.0
    %791 = vmatprep.subr.mxu0 0.0
    %792 = vmatpush2.msra.mxu0 0.0
    %793 = vmatprep.subr.mxu0 0.0
    %794 = vmatpush2.msra.mxu0 0.0
    %795 = vmatprep.subr.mxu0 0.0
    %796 = vmatpush2.msra.mxu0 0.0
    %797 = vmatprep.subr.mxu0 0.0
    %798 = vmatpush2.msra.mxu0 0.0
    %799 = vmatprep.subr.mxu0 0.0
    %800 = vmatpush2.msra.mxu0 0.0
    %801 = vmatprep.mubr.f32.mxu0 0.0
    %802 = vmatmul.mubr.f32.gmra.mxu0 %v735
    %v803 = vpop.f32.mrf.mxu0
    %v804 = vadd.f32 %v158, %v803
    %v805 = vpop.f32.mrf.mxu0
    %806 = vdwg.mxu0
    %v807 = vadd.f32 %v140, %v804
    %v808 = vxor.u32 %v807, 2147483648
    %v809 = vmul.f32 %v808, 1.442695
    %v810 = vpow.pop %v809
    %v811 = vadd.f32 %v810, 1.0
    %v812 = vrcp.pop %v811
    %v813 = vmul.f32 1.0, %v812
    %v816 = vunpack.c.l.s4 1983009808
    %v817 = vunpack.c.0.s8 %v816
    %v818 = vlaneseq
    %v819 = vshrl.u32 %v818, 7
    %v820 = vsub.s32 %v817, %v819
    %v821 = vrot.slane %v804, %v820
    %822 = vrot.lane.b32.xlu0 %v821, 64
    %v823 = vpop.permute.xlu0 %822
    %v825 = vmul.f32 %v813, %v823
    %827 = vrot.lane.b32.xlu0 %v825, 64
    %v828 = vpop.permute.xlu0 %827
    %v830 = vadd.f32 %v140, %v828
    %v831 = vtanh.pop %v830
    %v832 = vsub.f32 1.0, %v813
    %834 = vrot.lane.b32.xlu0 %v831, 96
    %v835 = vpop.permute.xlu0 %834
    %v837 = vmul.f32 %v832, %v835
    %v838 = vmul.f32 %v813, %v724
    %v839 = vadd.f32 %v837, %v838
    %v842 = vunpack.c.l.s4 1983009808
    %v843 = vunpack.c.0.s8 %v842
    %v844 = vlaneseq
    %v845 = vshrl.u32 %v844, 7
    %v846 = vsub.s32 %v843, %v845
    %v847 = vrot.slane %v839, %v846
    %848 = vrot.lane.b32.xlu0 %v847, 96
    %v849 = vpop.permute.xlu0 %848
    %v850 = vsel %vm61, %v849, 0
    %852 = vmatprep.subr.mxu0 0.0
    %853 = vmatpush1.msra.mxu0 0.0
    %854 = vmatprep.subr.mxu0 0.0
    %855 = vmatpush1.msra.mxu0 0.0
    %856 = vmatprep.subr.mxu0 0.0
    %857 = vmatpush1.msra.mxu0 0.0
    %858 = vmatprep.subr.mxu0 0.0
    %859 = vmatpush1.msra.mxu0 0.0
    %860 = vmatprep.subr.mxu0 0.0
    %861 = vmatpush1.msra.mxu0 0.0
    %862 = vmatprep.subr.mxu0 0.0
    %863 = vmatpush1.msra.mxu0 0.0
    %864 = vmatprep.subr.mxu0 0.0
    %865 = vmatpush1.msra.mxu0 0.0
    %866 = vmatprep.subr.mxu0 0.0
    %867 = vmatpush1.msra.mxu0 0.0
    %868 = vmatprep.subr.mxu0 0.0
    %869 = vmatpush1.msra.mxu0 0.0
    %870 = vmatprep.subr.mxu0 0.0
    %871 = vmatpush1.msra.mxu0 0.0
    %872 = vmatprep.subr.mxu0 0.0
    %873 = vmatpush1.msra.mxu0 0.0
    %874 = vmatprep.subr.mxu0 0.0
    %875 = vmatpush1.msra.mxu0 0.0
    %876 = vmatprep.subr.mxu0 0.0
    %877 = vmatpush1.msra.mxu0 %v153
    %878 = vmatprep.subr.mxu0 0.0
    %879 = vmatpush1.msra.mxu0 %v152
    %880 = vmatprep.subr.mxu0 0.0
    %881 = vmatpush1.msra.mxu0 %v151
    %882 = vmatprep.subr.mxu0 0.0
    %883 = vmatpush1.msra.mxu0 %v150
    %884 = vmatprep.subr.mxu0 0.0
    %885 = vmatpush2.msra.mxu0 0.0
    %886 = vmatprep.subr.mxu0 0.0
    %887 = vmatpush2.msra.mxu0 0.0
    %888 = vmatprep.subr.mxu0 0.0
    %889 = vmatpush2.msra.mxu0 0.0
    %890 = vmatprep.subr.mxu0 0.0
    %891 = vmatpush2.msra.mxu0 0.0
    %892 = vmatprep.subr.mxu0 0.0
    %893 = vmatpush2.msra.mxu0 0.0
    %894 = vmatprep.subr.mxu0 0.0
    %895 = vmatpush2.msra.mxu0 0.0
    %896 = vmatprep.subr.mxu0 0.0
    %897 = vmatpush2.msra.mxu0 0.0
    %898 = vmatprep.subr.mxu0 0.0
    %899 = vmatpush2.msra.mxu0 0.0
    %900 = vmatprep.subr.mxu0 0.0
    %901 = vmatpush2.msra.mxu0 0.0
    %902 = vmatprep.subr.mxu0 0.0
    %903 = vmatpush2.msra.mxu0 0.0
    %904 = vmatprep.subr.mxu0 0.0
    %905 = vmatpush2.msra.mxu0 0.0
    %906 = vmatprep.subr.mxu0 0.0
    %907 = vmatpush2.msra.mxu0 0.0
    %908 = vmatprep.subr.mxu0 0.0
    %909 = vmatpush2.msra.mxu0 0.0
    %910 = vmatprep.subr.mxu0 0.0
    %911 = vmatpush2.msra.mxu0 0.0
    %912 = vmatprep.subr.mxu0 0.0
    %913 = vmatpush2.msra.mxu0 0.0
    %914 = vmatprep.subr.mxu0 0.0
    %915 = vmatpush2.msra.mxu0 0.0
    %916 = vmatprep.mubr.f32.mxu0 0.0
    %917 = vmatmul.mubr.f32.gmra.mxu0 %v850
    %v918 = vpop.f32.mrf.mxu0
    %v919 = vadd.f32 %v158, %v918
    %v920 = vpop.f32.mrf.mxu0
    %921 = vdwg.mxu0
    %v922 = vadd.f32 %v139, %v919
    %v923 = vxor.u32 %v922, 2147483648
    %v924 = vmul.f32 %v923, 1.442695
    %v925 = vpow.pop %v924
    %v926 = vadd.f32 %v925, 1.0
    %v927 = vrcp.pop %v926
    %v928 = vmul.f32 1.0, %v927
    %v931 = vunpack.c.l.s4 1983009808
    %v932 = vunpack.c.0.s8 %v931
    %v933 = vlaneseq
    %v934 = vshrl.u32 %v933, 7
    %v935 = vsub.s32 %v932, %v934
    %v936 = vrot.slane %v919, %v935
    %937 = vrot.lane.b32.xlu0 %v936, 64
    %v938 = vpop.permute.xlu0 %937
    %v940 = vmul.f32 %v928, %v938
    %942 = vrot.lane.b32.xlu0 %v940, 64
    %v943 = vpop.permute.xlu0 %942
    %v945 = vadd.f32 %v139, %v943
    %v946 = vtanh.pop %v945
    %v947 = vsub.f32 1.0, %v928
    %949 = vrot.lane.b32.xlu0 %v946, 96
    %v950 = vpop.permute.xlu0 %949
    %v952 = vmul.f32 %v947, %v950
    %v953 = vmul.f32 %v928, %v839
    %v954 = vadd.f32 %v952, %v953
    %v957 = vunpack.c.l.s4 1983009808
    %v958 = vunpack.c.0.s8 %v957
    %v959 = vlaneseq
    %v960 = vshrl.u32 %v959, 7
    %v961 = vsub.s32 %v958, %v960
    %v962 = vrot.slane %v954, %v961
    %963 = vrot.lane.b32.xlu0 %v962, 96
    %v964 = vpop.permute.xlu0 %963
    %v965 = vsel %vm61, %v964, 0
    %967 = vmatprep.subr.mxu0 0.0
    %968 = vmatpush1.msra.mxu0 0.0
    %969 = vmatprep.subr.mxu0 0.0
    %970 = vmatpush1.msra.mxu0 0.0
    %971 = vmatprep.subr.mxu0 0.0
    %972 = vmatpush1.msra.mxu0 0.0
    %973 = vmatprep.subr.mxu0 0.0
    %974 = vmatpush1.msra.mxu0 0.0
    %975 = vmatprep.subr.mxu0 0.0
    %976 = vmatpush1.msra.mxu0 0.0
    %977 = vmatprep.subr.mxu0 0.0
    %978 = vmatpush1.msra.mxu0 0.0
    %979 = vmatprep.subr.mxu0 0.0
    %980 = vmatpush1.msra.mxu0 0.0
    %981 = vmatprep.subr.mxu0 0.0
    %982 = vmatpush1.msra.mxu0 0.0
    %983 = vmatprep.subr.mxu0 0.0
    %984 = vmatpush1.msra.mxu0 0.0
    %985 = vmatprep.subr.mxu0 0.0
    %986 = vmatpush1.msra.mxu0 0.0
    %987 = vmatprep.subr.mxu0 0.0
    %988 = vmatpush1.msra.mxu0 0.0
    %989 = vmatprep.subr.mxu0 0.0
    %990 = vmatpush1.msra.mxu0 0.0
    %991 = vmatprep.subr.mxu0 0.0
    %992 = vmatpush1.msra.mxu0 %v153
    %993 = vmatprep.subr.mxu0 0.0
    %994 = vmatpush1.msra.mxu0 %v152
    %995 = vmatprep.subr.mxu0 0.0
    %996 = vmatpush1.msra.mxu0 %v151
    %997 = vmatprep.subr.mxu0 0.0
    %998 = vmatpush1.msra.mxu0 %v150
    %999 = vmatprep.subr.mxu0 0.0
    %1000 = vmatpush2.msra.mxu0 0.0
    %1001 = vmatprep.subr.mxu0 0.0
    %1002 = vmatpush2.msra.mxu0 0.0
    %1003 = vmatprep.subr.mxu0 0.0
    %1004 = vmatpush2.msra.mxu0 0.0
    %1005 = vmatprep.subr.mxu0 0.0
    %1006 = vmatpush2.msra.mxu0 0.0
    %1007 = vmatprep.subr.mxu0 0.0
    %1008 = vmatpush2.msra.mxu0 0.0
    %1009 = vmatprep.subr.mxu0 0.0
    %1010 = vmatpush2.msra.mxu0 0.0
    %1011 = vmatprep.subr.mxu0 0.0
    %1012 = vmatpush2.msra.mxu0 0.0
    %1013 = vmatprep.subr.mxu0 0.0
    %1014 = vmatpush2.msra.mxu0 0.0
    %1015 = vmatprep.subr.mxu0 0.0
    %1016 = vmatpush2.msra.mxu0 0.0
    %1017 = vmatprep.subr.mxu0 0.0
    %1018 = vmatpush2.msra.mxu0 0.0
    %1019 = vmatprep.subr.mxu0 0.0
    %1020 = vmatpush2.msra.mxu0 0.0
    %1021 = vmatprep.subr.mxu0 0.0
    %1022 = vmatpush2.msra.mxu0 0.0
    %1023 = vmatprep.subr.mxu0 0.0
    %1024 = vmatpush2.msra.mxu0 0.0
    %1025 = vmatprep.subr.mxu0 0.0
    %1026 = vmatpush2.msra.mxu0 0.0
    %1027 = vmatprep.subr.mxu0 0.0
    %1028 = vmatpush2.msra.mxu0 0.0
    %1029 = vmatprep.subr.mxu0 0.0
    %1030 = vmatpush2.msra.mxu0 0.0
    %1031 = vmatprep.mubr.f32.mxu0 0.0
    %1032 = vmatmul.mubr.f32.gmra.mxu0 %v965
    %v1033 = vpop.f32.mrf.mxu0
    %v1034 = vadd.f32 %v158, %v1033
    %v1035 = vpop.f32.mrf.mxu0
    %1036 = vdwg.mxu0
    %v1037 = vadd.f32 %v141, %v1034
    %v1038 = vxor.u32 %v1037, 2147483648
    %v1039 = vmul.f32 %v1038, 1.442695
    %v1040 = vpow.pop %v1039
    %v1041 = vadd.f32 %v1040, 1.0
    %v1042 = vrcp.pop %v1041
    %v1043 = vmul.f32 1.0, %v1042
    %v1046 = vunpack.c.l.s4 1983009808
    %v1047 = vunpack.c.0.s8 %v1046
    %v1048 = vlaneseq
    %v1049 = vshrl.u32 %v1048, 7
    %v1050 = vsub.s32 %v1047, %v1049
    %v1051 = vrot.slane %v1034, %v1050
    %1052 = vrot.lane.b32.xlu0 %v1051, 64
    %v1053 = vpop.permute.xlu0 %1052
    %v1055 = vmul.f32 %v1043, %v1053
    %1057 = vrot.lane.b32.xlu0 %v1055, 64
    %v1058 = vpop.permute.xlu0 %1057
    %v1060 = vadd.f32 %v141, %v1058
    %v1061 = vtanh.pop %v1060
    %v1062 = vsub.f32 1.0, %v1043
    %1064 = vrot.lane.b32.xlu0 %v1061, 96
    %v1065 = vpop.permute.xlu0 %1064
    %v1067 = vmul.f32 %v1062, %v1065
    %v1068 = vmul.f32 %v1043, %v954
    %v1069 = vadd.f32 %v1067, %v1068
    %v1071 = vunpack.c.l.s4 1966171168
    %v1072 = vunpack.c.0.s8 %v1071
    %v1073 = vlaneseq
    %v1074 = vshrl.u32 %v1073, 7
    %v1075 = vsub.s32 %v1072, %v1074
    %v1076 = vrot.slane %v264, %v1075
    %v1077 = vcombine.high %v1076, %v1076
    %v1081 = vunpack.c.l.s4 1966171168
    %v1082 = vunpack.c.0.s8 %v1081
    %v1083 = vlaneseq
    %v1084 = vshrl.u32 %v1083, 7
    %v1085 = vsub.s32 %v1082, %v1084
    %v1086 = vrot.slane %v379, %v1085
    %v1087 = vcombine.high %v1086, %v1086
    %v1089 = vunpack.c.l.s4 1966171168
    %v1090 = vunpack.c.0.s8 %v1089
    %v1091 = vlaneseq
    %v1092 = vshrl.u32 %v1091, 7
    %v1093 = vsub.s32 %v1090, %v1092
    %v1094 = vrot.slane %v494, %v1093
    %v1095 = vcombine.high %v1094, %v1094
    %v1097 = vunpack.c.l.s4 1966171168
    %v1098 = vunpack.c.0.s8 %v1097
    %v1099 = vlaneseq
    %v1100 = vshrl.u32 %v1099, 7
    %v1101 = vsub.s32 %v1098, %v1100
    %v1102 = vrot.slane %v609, %v1101
    %v1103 = vcombine.high %v1102, %v1102
    %v1105 = vunpack.c.l.s4 1966171168
    %v1106 = vunpack.c.0.s8 %v1105
    %v1107 = vlaneseq
    %v1108 = vshrl.u32 %v1107, 7
    %v1109 = vsub.s32 %v1106, %v1108
    %v1110 = vrot.slane %v724, %v1109
    %v1111 = vcombine.high %v1110, %v1110
    %v1113 = vunpack.c.l.s4 1966171168
    %v1114 = vunpack.c.0.s8 %v1113
    %v1115 = vlaneseq
    %v1116 = vshrl.u32 %v1115, 7
    %v1117 = vsub.s32 %v1114, %v1116
    %v1118 = vrot.slane %v839, %v1117
    %v1119 = vcombine.high %v1118, %v1118
    %v1121 = vunpack.c.l.s4 1966171168
    %v1122 = vunpack.c.0.s8 %v1121
    %v1123 = vlaneseq
    %v1124 = vshrl.u32 %v1123, 7
    %v1125 = vsub.s32 %v1122, %v1124
    %v1126 = vrot.slane %v954, %v1125
    %v1127 = vcombine.high %v1126, %v1126
    %v1130 = vunpack.c.l.s4 1966171168
    %v1131 = vunpack.c.0.s8 %v1130
    %v1132 = vlaneseq
    %v1133 = vshrl.u32 %v1132, 7
    %v1134 = vsub.s32 %v1131, %v1133
    %v1135 = vrot.slane %v1069, %v1134
    %v1136 = vcombine.high %v1135, %v1135
    %v1137 = vlaneseq
    %v1138 = vshrl.u32 %v1137, 7
    %v1139 = vsub.s32 0, %v1138
    %v1140 = vrot.slane %v1086, %v1139
    %v1141 = vlaneseq
    %v1142 = vshrl.u32 %v1141, 7
    %v1143 = vsub.s32 0, %v1142
    %v1144 = vrot.slane %v1087, %v1143
    %v1147 = vlaneseq
    %v1148 = vshrl.u32 %v1147, 7
    %v1149 = vsub.s32 0, %v1148
    %v1150 = vrot.slane %v1094, %v1149
    %v1151 = vlaneseq
    %v1152 = vshrl.u32 %v1151, 7
    %v1153 = vsub.s32 0, %v1152
    %v1154 = vrot.slane %v1095, %v1153
    %v1157 = vlaneseq
    %v1158 = vshrl.u32 %v1157, 7
    %v1159 = vsub.s32 0, %v1158
    %v1160 = vrot.slane %v1102, %v1159
    %v1161 = vlaneseq
    %v1162 = vshrl.u32 %v1161, 7
    %v1163 = vsub.s32 0, %v1162
    %v1164 = vrot.slane %v1103, %v1163
    %v1167 = vlaneseq
    %v1168 = vshrl.u32 %v1167, 7
    %v1169 = vsub.s32 0, %v1168
    %v1170 = vrot.slane %v1110, %v1169
    %v1171 = vlaneseq
    %v1172 = vshrl.u32 %v1171, 7
    %v1173 = vsub.s32 0, %v1172
    %v1174 = vrot.slane %v1111, %v1173
    %v1177 = vlaneseq
    %v1178 = vshrl.u32 %v1177, 7
    %v1179 = vsub.s32 0, %v1178
    %v1180 = vrot.slane %v1118, %v1179
    %v1181 = vlaneseq
    %v1182 = vshrl.u32 %v1181, 7
    %v1183 = vsub.s32 0, %v1182
    %v1184 = vrot.slane %v1119, %v1183
    %v1187 = vlaneseq
    %v1188 = vshrl.u32 %v1187, 7
    %v1189 = vsub.s32 0, %v1188
    %v1190 = vrot.slane %v1126, %v1189
    %v1191 = vlaneseq
    %v1192 = vshrl.u32 %v1191, 7
    %v1193 = vsub.s32 0, %v1192
    %v1194 = vrot.slane %v1127, %v1193
    %v1197 = vlaneseq
    %v1198 = vshrl.u32 %v1197, 7
    %v1199 = vsub.s32 0, %v1198
    %v1200 = vrot.slane %v1135, %v1199
    %v1201 = vlaneseq
    %v1202 = vshrl.u32 %v1201, 7
    %v1203 = vsub.s32 0, %v1202
    %v1204 = vrot.slane %v1136, %v1203
    %vm1207 = vcmask 1040384
    %v1208 = vsel %vm1207, %v1076, %v1140
    %v1209 = vsel %vm1207, %v1077, %v1144
    %vm1210 = vcmask 1041408
    %v1211 = vsel %vm1210, %v1208, %v1150
    %v1212 = vsel %vm1210, %v1209, %v1154
    %vm1213 = vcmask 1042432
    %v1214 = vsel %vm1213, %v1211, %v1160
    %v1215 = vsel %vm1213, %v1212, %v1164
    %vm1216 = vcmask 1043456
    %v1217 = vsel %vm1216, %v1214, %v1170
    %v1218 = vsel %vm1216, %v1215, %v1174
    %vm1219 = vcmask 1044480
    %v1220 = vsel %vm1219, %v1217, %v1180
    %v1221 = vsel %vm1219, %v1218, %v1184
    %vm1222 = vcmask 1045504
    %v1223 = vsel %vm1222, %v1220, %v1190
    %v1224 = vsel %vm1222, %v1221, %v1194
    %vm1225 = vcmask 1046528
    %v1226 = vsel %vm1225, %v1223, %v1200
    %v1227 = vsel %vm1225, %v1224, %v1204
    %v1228 = vld [vmem:[#allocation2 + $0x10] sm:$0xf]
    %v1229 = vld [vmem:[#allocation2 + $0x14] sm:$0xf]
    %v1230 = vld [vmem:[#allocation2 + $0x18] sm:$0xf]
    %v1231 = vld [vmem:[#allocation2 + $0x1c] sm:$0xf]
    %v1232 = vld [vmem:[#allocation2 + $0x20] sm:$0xf]
    %v1233 = vld [vmem:[#allocation2 + $0x24] sm:$0xf]
    %v1234 = vld [vmem:[#allocation2 + $0x28] sm:$0xf]
    %v1235 = vld [vmem:[#allocation2 + $0x2c] sm:$0xf]
    %v1236 = vld [vmem:[%s3 + $0x22] sm:$0x1]
    %v1237 = vld [vmem:[%s1] sm:$0xf]
    %v1238 = vld [vmem:[%s1 + $0x4] sm:$0xf]
    %v1239 = vld [vmem:[%s1 + $0x8] sm:$0xf]
    %v1240 = vld [vmem:[%s1 + $0xc] sm:$0xf]
    %v1241 = vlaneseq
    %v1242 = vshrl.u32 %v1241, 7
    %v1243 = vsub.s32 0, %v1242
    %v1244 = vrot.slane %v1236, %v1243
    %v1249 = vunpack.c.l.b16 %v1237
    %v1250 = vunpack.c.l.b16 %v1238
    %v1251 = vunpack.c.l.b16 %v1239
    %v1252 = vunpack.c.l.b16 %v1240
    %v1253 = vpack.c.b16 %v1250, %v1249
    %v1254 = vpack.c.b16 %v1252, %v1251
    %v1263 = vunpack.c.l.b16 %v1228
    %v1264 = vunpack.c.l.b16 %v1229
    %v1265 = vunpack.c.l.b16 %v1230
    %v1266 = vunpack.c.l.b16 %v1231
    %v1267 = vunpack.c.l.b16 %v1232
    %v1268 = vunpack.c.l.b16 %v1233
    %v1269 = vunpack.c.l.b16 %v1234
    %v1270 = vunpack.c.l.b16 %v1235
    %v1271 = vpack.c.b16 %v1264, %v1263
    %v1272 = vpack.c.b16 %v1266, %v1265
    %v1273 = vpack.c.b16 %v1268, %v1267
    %v1274 = vpack.c.b16 %v1270, %v1269
    %vm1279 = vcmask 523264
    %v1281 = vsel %vm1279, %v1253, 0
    %v1284 = vsel %vm1279, %v1254, 0
    %1286 = vmatprep.subr.bf16.mxu0 0
    %1287 = vmatpush1.bf16.msra.mxu0 0
    %1288 = vmatprep.subr.bf16.mxu0 0
    %1289 = vmatpush1.bf16.msra.mxu0 0
    %1290 = vmatprep.subr.bf16.mxu0 0
    %1291 = vmatpush1.bf16.msra.mxu0 0
    %1292 = vmatprep.subr.bf16.mxu0 0
    %1293 = vmatpush1.bf16.msra.mxu0 0
    %1294 = vmatprep.subr.bf16.mxu0 0
    %1295 = vmatpush1.bf16.msra.mxu0 %v1274
    %1296 = vmatprep.subr.bf16.mxu0 0
    %1297 = vmatpush1.bf16.msra.mxu0 %v1273
    %1298 = vmatprep.subr.bf16.mxu0 0
    %1299 = vmatpush1.bf16.msra.mxu0 %v1272
    %1300 = vmatprep.subr.bf16.mxu0 0
    %1301 = vmatpush1.bf16.msra.mxu0 %v1271
    %1302 = vmatprep.subr.bf16.mxu0 0
    %1303 = vmatpush2.bf16.msra.mxu0 0
    %1304 = vmatprep.subr.bf16.mxu0 0
    %1305 = vmatpush2.bf16.msra.mxu0 0
    %1306 = vmatprep.subr.bf16.mxu0 0
    %1307 = vmatpush2.bf16.msra.mxu0 0
    %1308 = vmatprep.subr.bf16.mxu0 0
    %1309 = vmatpush2.bf16.msra.mxu0 0
    %1310 = vmatprep.subr.bf16.mxu0 0
    %1311 = vmatpush2.bf16.msra.mxu0 0
    %1312 = vmatprep.subr.bf16.mxu0 0
    %1313 = vmatpush2.bf16.msra.mxu0 0
    %1314 = vmatprep.subr.bf16.mxu0 0
    %1315 = vmatpush2.bf16.msra.mxu0 0
    %1316 = vmatprep.subr.bf16.mxu0 0
    %1317 = vmatpush2.bf16.msra.mxu0 0
    %1318 = vmatprep.mubr.bf16.mxu0 0
    %1319 = vmatmul.mubr.bf16.gmra.mxu0 %v1281
    %v1320 = vpop.f32.mrf.mxu0
    %v1321 = vadd.f32 %v1244, %v1320
    %v1322 = vpop.f32.mrf.mxu0
    %v1323 = vpop.f32.mrf.mxu0
    %v1324 = vadd.f32 %v1244, %v1323
    %v1325 = vpop.f32.mrf.mxu0
    %1326 = vmatprep.mubr.bf16.mxu0 0
    %1327 = vmatmul.mubr.bf16.gmra.mxu0 %v1284
    %v1328 = vpop.f32.mrf.mxu0
    %v1329 = vadd.f32 %v1244, %v1328
    %v1330 = vpop.f32.mrf.mxu0
    %v1331 = vpop.f32.mrf.mxu0
    %v1332 = vadd.f32 %v1244, %v1331
    %v1333 = vpop.f32.mrf.mxu0
    %1334 = vdwg.mxu0
    %v1335 = vpack.c.bf16 %v1324, %v1321
    %v1336 = vpack.c.bf16 %v1332, %v1329
    %v1337 = vld [vmem:[#allocation2 + $0x30] sm:$0xf]
    %v1338 = vld [vmem:[#allocation2 + $0x34] sm:$0xf]
    %v1339 = vld [vmem:[#allocation2 + $0x38] sm:$0xf]
    %v1340 = vld [vmem:[#allocation2 + $0x3c] sm:$0xf]
    %v1341 = vld [vmem:[%s3 + $0x23] sm:$0x1]
    %v1342 = vld [vmem:[#allocation2 + $0x40] sm:$0xf]
    %v1343 = vld [vmem:[#allocation2 + $0x44] sm:$0xf]
    %v1344 = vld [vmem:[#allocation2 + $0x48] sm:$0xf]
    %v1345 = vld [vmem:[#allocation2 + $0x4c] sm:$0xf]
    %v1346 = vld [vmem:[%s3 + $0x24] sm:$0x1]
    %v1347 = vlaneseq
    %v1348 = vshrl.u32 %v1347, 7
    %v1349 = vsub.s32 0, %v1348
    %v1350 = vrot.slane %v1341, %v1349
    %v1355 = vunpack.c.l.b16 %v1337
    %v1356 = vunpack.c.l.b16 %v1338
    %v1357 = vunpack.c.l.b16 %v1339
    %v1358 = vunpack.c.l.b16 %v1340
    %v1359 = vpack.c.b16 %v1356, %v1355
    %v1360 = vpack.c.b16 %v1358, %v1357
    %v1364 = vsel %vm61, %v1335, 0
    %v1367 = vsel %vm61, %v1336, 0
    %1369 = vmatprep.subr.bf16.mxu0 0
    %1370 = vmatpush1.bf16.msra.mxu0 0
    %1371 = vmatprep.subr.bf16.mxu0 0
    %1372 = vmatpush1.bf16.msra.mxu0 0
    %1373 = vmatprep.subr.bf16.mxu0 0
    %1374 = vmatpush1.bf16.msra.mxu0 0
    %1375 = vmatprep.subr.bf16.mxu0 0
    %1376 = vmatpush1.bf16.msra.mxu0 0
    %1377 = vmatprep.subr.bf16.mxu0 0
    %1378 = vmatpush1.bf16.msra.mxu0 0
    %1379 = vmatprep.subr.bf16.mxu0 0
    %1380 = vmatpush1.bf16.msra.mxu0 0
    %1381 = vmatprep.subr.bf16.mxu0 0
    %1382 = vmatpush1.bf16.msra.mxu0 %v1360
    %1383 = vmatprep.subr.bf16.mxu0 0
    %1384 = vmatpush1.bf16.msra.mxu0 %v1359
    %1385 = vmatprep.subr.bf16.mxu0 0
    %1386 = vmatpush2.bf16.msra.mxu0 0
    %1387 = vmatprep.subr.bf16.mxu0 0
    %1388 = vmatpush2.bf16.msra.mxu0 0
    %1389 = vmatprep.subr.bf16.mxu0 0
    %1390 = vmatpush2.bf16.msra.mxu0 0
    %1391 = vmatprep.subr.bf16.mxu0 0
    %1392 = vmatpush2.bf16.msra.mxu0 0
    %1393 = vmatprep.subr.bf16.mxu0 0
    %1394 = vmatpush2.bf16.msra.mxu0 0
    %1395 = vmatprep.subr.bf16.mxu0 0
    %1396 = vmatpush2.bf16.msra.mxu0 0
    %1397 = vmatprep.subr.bf16.mxu0 0
    %1398 = vmatpush2.bf16.msra.mxu0 0
    %1399 = vmatprep.subr.bf16.mxu0 0
    %1400 = vmatpush2.bf16.msra.mxu0 0
    %1401 = vmatprep.mubr.bf16.mxu0 0
    %1402 = vmatmul.mubr.bf16.gmra.mxu0 %v1364
    %v1403 = vpop.f32.mrf.mxu0
    %v1404 = vadd.f32 %v1350, %v1403
    %v1405 = vpop.f32.mrf.mxu0
    %v1406 = vpop.f32.mrf.mxu0
    %v1407 = vadd.f32 %v1350, %v1406
    %v1408 = vpop.f32.mrf.mxu0
    %1409 = vmatprep.mubr.bf16.mxu0 0
    %1410 = vmatmul.mubr.bf16.gmra.mxu0 %v1367
    %v1411 = vpop.f32.mrf.mxu0
    %v1412 = vadd.f32 %v1350, %v1411
    %v1413 = vpop.f32.mrf.mxu0
    %v1414 = vpop.f32.mrf.mxu0
    %v1415 = vadd.f32 %v1350, %v1414
    %v1416 = vpop.f32.mrf.mxu0
    %1417 = vdwg.mxu0
    %v1418 = vmax.f32 %v1404, 0.0
    %v1419 = vmax.f32 %v1407, 0.0
    %v1420 = vmax.f32 %v1412, 0.0
    %v1421 = vmax.f32 %v1415, 0.0
    %v1422 = vpack.c.bf16 %v1227, %v1226
    %v1423 = vlaneseq
    %v1424 = vshrl.u32 %v1423, 7
    %v1425 = vsub.s32 0, %v1424
    %v1426 = vrot.slane %v1346, %v1425
    %1428 = vrot.lane.b32.xlu0 %v1422, 96
    %v1429 = vpop.permute.xlu0 %1428
    %v1434 = vunpack.c.l.b16 %v1342
    %v1435 = vunpack.c.l.b16 %v1343
    %v1436 = vunpack.c.l.b16 %v1344
    %v1437 = vunpack.c.l.b16 %v1345
    %v1438 = vpack.c.b16 %v1435, %v1434
    %v1439 = vpack.c.b16 %v1437, %v1436
    %v1443 = vsel %vm61, %v1429, 0
    %1445 = vmatprep.subr.bf16.mxu0 0
    %1446 = vmatpush1.bf16.msra.mxu0 0
    %1447 = vmatprep.subr.bf16.mxu0 0
    %1448 = vmatpush1.bf16.msra.mxu0 0
    %1449 = vmatprep.subr.bf16.mxu0 0
    %1450 = vmatpush1.bf16.msra.mxu0 0
    %1451 = vmatprep.subr.bf16.mxu0 0
    %1452 = vmatpush1.bf16.msra.mxu0 0
    %1453 = vmatprep.subr.bf16.mxu0 0
    %1454 = vmatpush1.bf16.msra.mxu0 0
    %1455 = vmatprep.subr.bf16.mxu0 0
    %1456 = vmatpush1.bf16.msra.mxu0 0
    %1457 = vmatprep.subr.bf16.mxu0 0
    %1458 = vmatpush1.bf16.msra.mxu0 %v1439
    %1459 = vmatprep.subr.bf16.mxu0 0
    %1460 = vmatpush1.bf16.msra.mxu0 %v1438
    %1461 = vmatprep.subr.bf16.mxu0 0
    %1462 = vmatpush2.bf16.msra.mxu0 0
    %1463 = vmatprep.subr.bf16.mxu0 0
    %1464 = vmatpush2.bf16.msra.mxu0 0
    %1465 = vmatprep.subr.bf16.mxu0 0
    %1466 = vmatpush2.bf16.msra.mxu0 0
    %1467 = vmatprep.subr.bf16.mxu0 0
    %1468 = vmatpush2.bf16.msra.mxu0 0
    %1469 = vmatprep.subr.bf16.mxu0 0
    %1470 = vmatpush2.bf16.msra.mxu0 0
    %1471 = vmatprep.subr.bf16.mxu0 0
    %1472 = vmatpush2.bf16.msra.mxu0 0
    %1473 = vmatprep.subr.bf16.mxu0 0
    %1474 = vmatpush2.bf16.msra.mxu0 0
    %1475 = vmatprep.subr.bf16.mxu0 0
    %1476 = vmatpush2.bf16.msra.mxu0 0
    %1477 = vmatprep.mubr.bf16.mxu0 0
    %1478 = vmatmul.mubr.bf16.gmra.mxu0 %v1443
    %v1479 = vpop.f32.mrf.mxu0
    %v1480 = vadd.f32 %v1426, %v1479
    %v1481 = vpop.f32.mrf.mxu0
    %v1482 = vpop.f32.mrf.mxu0
    %v1483 = vadd.f32 %v1426, %v1482
    %v1484 = vpop.f32.mrf.mxu0
    %1485 = vdwg.mxu0
    %v1486 = vmax.f32 %v1480, 0.0
    %v1487 = vmax.f32 %v1483, 0.0
    %v1488 = vld [vmem:[%s3 + $0x2c] sm:$0x3]
    %v1491 = vunpack.c.l.s4 1966171168
    %v1492 = vunpack.c.0.s8 %v1491
    %v1493 = vlaneseq
    %v1494 = vshrl.u32 %v1493, 7
    %v1495 = vsub.s32 %v1492, %v1494
    %v1496 = vrot.slane %v1488, %v1495
    %v1497 = vcombine.high %v1496, %v1496
    %v1499 = vunpack.c.l.s4 1966171168
    %v1500 = vunpack.c.0.s8 %v1499
    %v1501 = vlaneseq
    %v1502 = vshrl.u32 %v1501, 7
    %v1503 = vsub.s32 %v1500, %v1502
    %v1504 = vrot.slane %v1496, %v1503
    %v1506 = vunpack.c.l.s4 1966171168
    %v1507 = vunpack.c.0.s8 %v1506
    %v1508 = vlaneseq
    %v1509 = vshrl.u32 %v1508, 7
    %v1510 = vsub.s32 %v1507, %v1509
    %v1511 = vrot.slane %v1497, %v1510
    %v1512 = vlaneseq
    %v1513 = vshrl.u32 %v1512, 7
    %v1514 = vsub.s32 0, %v1513
    %v1515 = vrot.slane %v1504, %v1514
    %v1516 = vlaneseq
    %v1517 = vshrl.u32 %v1516, 7
    %v1518 = vsub.s32 0, %v1517
    %v1519 = vrot.slane %v1511, %v1518
    %v1522 = vmul.f32 %v1418, %v1515
    %v1523 = vmul.f32 %v1419, %v1515
    %v1524 = vmul.f32 %v1420, %v1515
    %v1525 = vmul.f32 %v1421, %v1515
    %v1526 = vmul.f32 %v1418, %v1519
    %v1527 = vmul.f32 %v1419, %v1519
    %v1528 = vmul.f32 %v1420, %v1519
    %v1529 = vmul.f32 %v1421, %v1519
    %v1530 = vpack.c.bf16 %v1523, %v1522
    %v1531 = vpack.c.bf16 %v1525, %v1524
    %v1532 = vpack.c.bf16 %v1527, %v1526
    %v1533 = vpack.c.bf16 %v1529, %v1528
    %v1534 = vpack.c.bf16 %v1486, %v1486
    %v1535 = vpack.c.bf16 %v1487, %v1487
    %vm1536 = vcmask 785408
    %v1538 = vsel %vm1536, %v1530, 0
    %v1541 = vsel %vm1536, %v1534, 0
    %1543 = vmatprep.subr.bf16.mxu0 0
    %1544 = vmatpush1.bf16.xpose.msra.mxu0 0
    %1545 = vmatprep.subr.bf16.mxu0 0
    %1546 = vmatpush1.bf16.xpose.msra.mxu0 0
    %1547 = vmatprep.subr.bf16.mxu0 0
    %1548 = vmatpush1.bf16.xpose.msra.mxu0 0
    %1549 = vmatprep.subr.bf16.mxu0 0
    %1550 = vmatpush1.bf16.xpose.msra.mxu0 0
    %1551 = vmatprep.subr.bf16.mxu0 0
    %1552 = vmatpush1.bf16.xpose.msra.mxu0 0
    %1553 = vmatprep.subr.bf16.mxu0 0
    %1554 = vmatpush1.bf16.xpose.msra.mxu0 0
    %1555 = vmatprep.subr.bf16.mxu0 0
    %1556 = vmatpush1.bf16.xpose.msra.mxu0 0
    %1557 = vmatprep.subr.bf16.mxu0 0
    %1558 = vmatpush1.bf16.xpose.msra.mxu0 %v1541
    %1559 = vmatprep.subr.bf16.mxu0 0
    %1560 = vmatpush2.bf16.xpose.msra.mxu0 0
    %1561 = vmatprep.subr.bf16.mxu0 0
    %1562 = vmatpush2.bf16.xpose.msra.mxu0 0
    %1563 = vmatprep.subr.bf16.mxu0 0
    %1564 = vmatpush2.bf16.xpose.msra.mxu0 0
    %1565 = vmatprep.subr.bf16.mxu0 0
    %1566 = vmatpush2.bf16.xpose.msra.mxu0 0
    %1567 = vmatprep.subr.bf16.mxu0 0
    %1568 = vmatpush2.bf16.xpose.msra.mxu0 0
    %1569 = vmatprep.subr.bf16.mxu0 0
    %1570 = vmatpush2.bf16.xpose.msra.mxu0 0
    %1571 = vmatprep.subr.bf16.mxu0 0
    %1572 = vmatpush2.bf16.xpose.msra.mxu0 0
    %1573 = vmatprep.subr.bf16.mxu0 0
    %1574 = vmatpush2.bf16.xpose.msra.mxu0 0
    %1575 = vmatprep.mubr.bf16.mxu0 0
    %1576 = vmatmul.mubr.bf16.gmra.mxu0 %v1538
    %v1577 = vpop.f32.mrf.mxu0
    %v1578 = vadd.f32 0.0, %v1577
    %v1579 = vpop.f32.mrf.mxu0
    %v1580 = vpop.f32.mrf.mxu0
    %v1581 = vadd.f32 0.0, %v1580
    %v1582 = vpop.f32.mrf.mxu0
    %1583 = vdwg.mxu0
    %v1585 = vsel %vm1536, %v1531, 0
    %v1588 = vsel %vm1536, %v1535, 0
    %1590 = vmatprep.subr.bf16.mxu0 0
    %1591 = vmatpush1.bf16.xpose.msra.mxu0 0
    %1592 = vmatprep.subr.bf16.mxu0 0
    %1593 = vmatpush1.bf16.xpose.msra.mxu0 0
    %1594 = vmatprep.subr.bf16.mxu0 0
    %1595 = vmatpush1.bf16.xpose.msra.mxu0 0
    %1596 = vmatprep.subr.bf16.mxu0 0
    %1597 = vmatpush1.bf16.xpose.msra.mxu0 0
    %1598 = vmatprep.subr.bf16.mxu0 0
    %1599 = vmatpush1.bf16.xpose.msra.mxu0 0
    %1600 = vmatprep.subr.bf16.mxu0 0
    %1601 = vmatpush1.bf16.xpose.msra.mxu0 0
    %1602 = vmatprep.subr.bf16.mxu0 0
    %1603 = vmatpush1.bf16.xpose.msra.mxu0 0
    %1604 = vmatprep.subr.bf16.mxu0 0
    %1605 = vmatpush1.bf16.xpose.msra.mxu0 %v1588
    %1606 = vmatprep.subr.bf16.mxu0 0
    %1607 = vmatpush2.bf16.xpose.msra.mxu0 0
    %1608 = vmatprep.subr.bf16.mxu0 0
    %1609 = vmatpush2.bf16.xpose.msra.mxu0 0
    %1610 = vmatprep.subr.bf16.mxu0 0
    %1611 = vmatpush2.bf16.xpose.msra.mxu0 0
    %1612 = vmatprep.subr.bf16.mxu0 0
    %1613 = vmatpush2.bf16.xpose.msra.mxu0 0
    %1614 = vmatprep.subr.bf16.mxu0 0
    %1615 = vmatpush2.bf16.xpose.msra.mxu0 0
    %1616 = vmatprep.subr.bf16.mxu0 0
    %1617 = vmatpush2.bf16.xpose.msra.mxu0 0
    %1618 = vmatprep.subr.bf16.mxu0 0
    %1619 = vmatpush2.bf16.xpose.msra.mxu0 0
    %1620 = vmatprep.subr.bf16.mxu0 0
    %1621 = vmatpush2.bf16.xpose.msra.mxu0 0
    %1622 = vmatprep.mubr.bf16.mxu0 0
    %1623 = vmatmul.mubr.bf16.gmra.mxu0 %v1585
    %v1624 = vpop.f32.mrf.mxu0
    %v1625 = vadd.f32 0.0, %v1624
    %v1626 = vpop.f32.mrf.mxu0
    %v1627 = vpop.f32.mrf.mxu0
    %v1628 = vadd.f32 0.0, %v1627
    %v1629 = vpop.f32.mrf.mxu0
    %1630 = vdwg.mxu0
    %v1632 = vsel %vm1536, %v1532, 0
    %1634 = vmatprep.subr.bf16.mxu0 0
    %1635 = vmatpush1.bf16.xpose.msra.mxu0 0
    %1636 = vmatprep.subr.bf16.mxu0 0
    %1637 = vmatpush1.bf16.xpose.msra.mxu0 0
    %1638 = vmatprep.subr.bf16.mxu0 0
    %1639 = vmatpush1.bf16.xpose.msra.mxu0 0
    %1640 = vmatprep.subr.bf16.mxu0 0
    %1641 = vmatpush1.bf16.xpose.msra.mxu0 0
    %1642 = vmatprep.subr.bf16.mxu0 0
    %1643 = vmatpush1.bf16.xpose.msra.mxu0 0
    %1644 = vmatprep.subr.bf16.mxu0 0
    %1645 = vmatpush1.bf16.xpose.msra.mxu0 0
    %1646 = vmatprep.subr.bf16.mxu0 0
    %1647 = vmatpush1.bf16.xpose.msra.mxu0 0
    %1648 = vmatprep.subr.bf16.mxu0 0
    %1649 = vmatpush1.bf16.xpose.msra.mxu0 %v1541
    %1650 = vmatprep.subr.bf16.mxu0 0
    %1651 = vmatpush2.bf16.xpose.msra.mxu0 0
    %1652 = vmatprep.subr.bf16.mxu0 0
    %1653 = vmatpush2.bf16.xpose.msra.mxu0 0
    %1654 = vmatprep.subr.bf16.mxu0 0
    %1655 = vmatpush2.bf16.xpose.msra.mxu0 0
    %1656 = vmatprep.subr.bf16.mxu0 0
    %1657 = vmatpush2.bf16.xpose.msra.mxu0 0
    %1658 = vmatprep.subr.bf16.mxu0 0
    %1659 = vmatpush2.bf16.xpose.msra.mxu0 0
    %1660 = vmatprep.subr.bf16.mxu0 0
    %1661 = vmatpush2.bf16.xpose.msra.mxu0 0
    %1662 = vmatprep.subr.bf16.mxu0 0
    %1663 = vmatpush2.bf16.xpose.msra.mxu0 0
    %1664 = vmatprep.subr.bf16.mxu0 0
    %1665 = vmatpush2.bf16.xpose.msra.mxu0 0
    %1666 = vmatprep.mubr.bf16.mxu0 0
    %1667 = vmatmul.mubr.bf16.gmra.mxu0 %v1632
    %v1668 = vpop.f32.mrf.mxu0
    %v1669 = vadd.f32 0.0, %v1668
    %v1670 = vpop.f32.mrf.mxu0
    %v1671 = vpop.f32.mrf.mxu0
    %v1672 = vadd.f32 0.0, %v1671
    %v1673 = vpop.f32.mrf.mxu0
    %1674 = vdwg.mxu0
    %v1676 = vsel %vm1536, %v1533, 0
    %1678 = vmatprep.subr.bf16.mxu0 0
    %1679 = vmatpush1.bf16.xpose.msra.mxu0 0
    %1680 = vmatprep.subr.bf16.mxu0 0
    %1681 = vmatpush1.bf16.xpose.msra.mxu0 0
    %1682 = vmatprep.subr.bf16.mxu0 0
    %1683 = vmatpush1.bf16.xpose.msra.mxu0 0
    %1684 = vmatprep.subr.bf16.mxu0 0
    %1685 = vmatpush1.bf16.xpose.msra.mxu0 0
    %1686 = vmatprep.subr.bf16.mxu0 0
    %1687 = vmatpush1.bf16.xpose.msra.mxu0 0
    %1688 = vmatprep.subr.bf16.mxu0 0
    %1689 = vmatpush1.bf16.xpose.msra.mxu0 0
    %1690 = vmatprep.subr.bf16.mxu0 0
    %1691 = vmatpush1.bf16.xpose.msra.mxu0 0
    %1692 = vmatprep.subr.bf16.mxu0 0
    %1693 = vmatpush1.bf16.xpose.msra.mxu0 %v1588
    %1694 = vmatprep.subr.bf16.mxu0 0
    %1695 = vmatpush2.bf16.xpose.msra.mxu0 0
    %1696 = vmatprep.subr.bf16.mxu0 0
    %1697 = vmatpush2.bf16.xpose.msra.mxu0 0
    %1698 = vmatprep.subr.bf16.mxu0 0
    %1699 = vmatpush2.bf16.xpose.msra.mxu0 0
    %1700 = vmatprep.subr.bf16.mxu0 0
    %1701 = vmatpush2.bf16.xpose.msra.mxu0 0
    %1702 = vmatprep.subr.bf16.mxu0 0
    %1703 = vmatpush2.bf16.xpose.msra.mxu0 0
    %1704 = vmatprep.subr.bf16.mxu0 0
    %1705 = vmatpush2.bf16.xpose.msra.mxu0 0
    %1706 = vmatprep.subr.bf16.mxu0 0
    %1707 = vmatpush2.bf16.xpose.msra.mxu0 0
    %1708 = vmatprep.subr.bf16.mxu0 0
    %1709 = vmatpush2.bf16.xpose.msra.mxu0 0
    %1710 = vmatprep.mubr.bf16.mxu0 0
    %1711 = vmatmul.mubr.bf16.gmra.mxu0 %v1676
    %v1712 = vpop.f32.mrf.mxu0
    %v1713 = vadd.f32 0.0, %v1712
    %v1714 = vpop.f32.mrf.mxu0
    %v1715 = vpop.f32.mrf.mxu0
    %v1716 = vadd.f32 0.0, %v1715
    %v1717 = vpop.f32.mrf.mxu0
    %1718 = vdwg.mxu0
    %v1719 = vand.u32 2147483647, %v1321
    %v1720 = vand.u32 2147483647, %v1324
    %v1721 = vand.u32 2147483647, %v1329
    %v1722 = vand.u32 2147483647, %v1332
    %v1723 = vsel %vm61, %v1719, 0.0
    %1724 = vadd.xlane.f32.xlu0 %v1723
    %v1725 = vpop.xlane.xlu0 %1724
    %v1726 = vsel %vm61, %v1720, 0.0
    %1727 = vadd.xlane.f32.xlu0 %v1726
    %v1728 = vpop.xlane.xlu0 %1727
    %v1729 = vsel %vm61, %v1721, 0.0
    %1730 = vadd.xlane.f32.xlu0 %v1729
    %v1731 = vpop.xlane.xlu0 %1730
    %v1732 = vsel %vm61, %v1722, 0.0
    %1733 = vadd.xlane.f32.xlu0 %v1732
    %v1734 = vpop.xlane.xlu0 %1733
    %vm1735 = vcmp.eq.f32.partialorder %v1725, 0.0
    %vm1736 = vcmp.eq.f32.partialorder %v1728, 0.0
    %vm1737 = vcmp.eq.f32.partialorder %v1731, 0.0
    %vm1738 = vcmp.eq.f32.partialorder %v1734, 0.0
    %v1739 = vsel %vm1735, 1, 0
    %v1740 = vsel %vm1736, 1, 0
    %v1741 = vsel %vm1737, 1, 0
    %v1742 = vsel %vm1738, 1, 0
    %vm1743 = vcmp.eq.s32.totalorder %v1739, 1
    %vm1744 = vcmp.eq.s32.totalorder %v1740, 1
    %vm1745 = vcmp.eq.s32.totalorder %v1741, 1
    %vm1746 = vcmp.eq.s32.totalorder %v1742, 1
    %v1747 = vsel %vm1743, 1, 0
    %v1748 = vsel %vm1744, 1, 0
    %v1749 = vsel %vm1745, 1, 0
    %v1750 = vsel %vm1746, 1, 0
    %vm1751 = vcmp.eq.s32.totalorder %v1747, 1
    %vm1752 = vcmp.eq.s32.totalorder %v1748, 1
    %vm1753 = vcmp.eq.s32.totalorder %v1749, 1
    %vm1754 = vcmp.eq.s32.totalorder %v1750, 1
    %v1755 = vsel %vm1751, -1e+30, %v1578
    %v1756 = vsel %vm1752, -1e+30, %v1581
    %v1757 = vsel %vm1753, -1e+30, %v1625
    %v1758 = vsel %vm1754, -1e+30, %v1628
    %v1759 = vsel %vm1751, -1e+30, %v1669
    %v1760 = vsel %vm1752, -1e+30, %v1672
    %v1761 = vsel %vm1753, -1e+30, %v1713
    %v1762 = vsel %vm1754, -1e+30, %v1716
    %v1763 = vcombine.low %v1755, %v1759
    %v1764 = vcombine.high %v1755, %v1759
    %v1766 = vunpack.c.l.s4 1983009808
    %v1767 = vunpack.c.0.s8 %v1766
    %v1768 = vlaneseq
    %v1769 = vshrl.u32 %v1768, 7
    %v1770 = vsub.s32 %v1767, %v1769
    %v1771 = vrot.slane %v1763, %v1770
    %v1773 = vunpack.c.l.s4 1983009808
    %v1774 = vunpack.c.0.s8 %v1773
    %v1775 = vlaneseq
    %v1776 = vshrl.u32 %v1775, 7
    %v1777 = vsub.s32 %v1774, %v1776
    %v1778 = vrot.slane %v1764, %v1777
    %v1779 = vcombine.low %v1757, %v1761
    %v1780 = vcombine.high %v1757, %v1761
    %v1782 = vunpack.c.l.s4 1983009808
    %v1783 = vunpack.c.0.s8 %v1782
    %v1784 = vlaneseq
    %v1785 = vshrl.u32 %v1784, 7
    %v1786 = vsub.s32 %v1783, %v1785
    %v1787 = vrot.slane %v1779, %v1786
    %v1789 = vunpack.c.l.s4 1983009808
    %v1790 = vunpack.c.0.s8 %v1789
    %v1791 = vlaneseq
    %v1792 = vshrl.u32 %v1791, 7
    %v1793 = vsub.s32 %v1790, %v1792
    %v1794 = vrot.slane %v1780, %v1793
    %v1795 = vcombine.low %v1771, %v1787
    %v1796 = vcombine.high %v1771, %v1787
    %v1798 = vunpack.c.l.s4 1934713408
    %v1799 = vunpack.c.0.s8 %v1798
    %v1800 = vlaneseq
    %v1801 = vshrl.u32 %v1800, 7
    %v1802 = vsub.s32 %v1799, %v1801
    %v1803 = vrot.slane %v1795, %v1802
    %v1805 = vunpack.c.l.s4 1934713408
    %v1806 = vunpack.c.0.s8 %v1805
    %v1807 = vlaneseq
    %v1808 = vshrl.u32 %v1807, 7
    %v1809 = vsub.s32 %v1806, %v1808
    %v1810 = vrot.slane %v1796, %v1809
    %v1811 = vcombine.low %v1778, %v1794
    %v1812 = vcombine.high %v1778, %v1794
    %v1814 = vunpack.c.l.s4 1934713408
    %v1815 = vunpack.c.0.s8 %v1814
    %v1816 = vlaneseq
    %v1817 = vshrl.u32 %v1816, 7
    %v1818 = vsub.s32 %v1815, %v1817
    %v1819 = vrot.slane %v1811, %v1818
    %v1821 = vunpack.c.l.s4 1934713408
    %v1822 = vunpack.c.0.s8 %v1821
    %v1823 = vlaneseq
    %v1824 = vshrl.u32 %v1823, 7
    %v1825 = vsub.s32 %v1822, %v1824
    %v1826 = vrot.slane %v1812, %v1825
    %v1827 = vcombine.high %v1803, 0.0
    %v1828 = vcombine.high %v1810, 0.0
    %v1829 = vcombine.high %v1819, 0.0
    %v1830 = vcombine.high %v1826, 0.0
    %v1831 = vcombine.low %v1756, %v1760
    %v1832 = vcombine.high %v1756, %v1760
    %v1834 = vunpack.c.l.s4 1983009808
    %v1835 = vunpack.c.0.s8 %v1834
    %v1836 = vlaneseq
    %v1837 = vshrl.u32 %v1836, 7
    %v1838 = vsub.s32 %v1835, %v1837
    %v1839 = vrot.slane %v1831, %v1838
    %v1841 = vunpack.c.l.s4 1983009808
    %v1842 = vunpack.c.0.s8 %v1841
    %v1843 = vlaneseq
    %v1844 = vshrl.u32 %v1843, 7
    %v1845 = vsub.s32 %v1842, %v1844
    %v1846 = vrot.slane %v1832, %v1845
    %v1847 = vcombine.low %v1758, %v1762
    %v1848 = vcombine.high %v1758, %v1762
    %v1850 = vunpack.c.l.s4 1983009808
    %v1851 = vunpack.c.0.s8 %v1850
    %v1852 = vlaneseq
    %v1853 = vshrl.u32 %v1852, 7
    %v1854 = vsub.s32 %v1851, %v1853
    %v1855 = vrot.slane %v1847, %v1854
    %v1857 = vunpack.c.l.s4 1983009808
    %v1858 = vunpack.c.0.s8 %v1857
    %v1859 = vlaneseq
    %v1860 = vshrl.u32 %v1859, 7
    %v1861 = vsub.s32 %v1858, %v1860
    %v1862 = vrot.slane %v1848, %v1861
    %v1863 = vcombine.low %v1839, %v1855
    %v1864 = vcombine.high %v1839, %v1855
    %v1866 = vunpack.c.l.s4 1934713408
    %v1867 = vunpack.c.0.s8 %v1866
    %v1868 = vlaneseq
    %v1869 = vshrl.u32 %v1868, 7
    %v1870 = vsub.s32 %v1867, %v1869
    %v1871 = vrot.slane %v1863, %v1870
    %v1873 = vunpack.c.l.s4 1934713408
    %v1874 = vunpack.c.0.s8 %v1873
    %v1875 = vlaneseq
    %v1876 = vshrl.u32 %v1875, 7
    %v1877 = vsub.s32 %v1874, %v1876
    %v1878 = vrot.slane %v1864, %v1877
    %v1879 = vcombine.low %v1846, %v1862
    %v1880 = vcombine.high %v1846, %v1862
    %v1882 = vunpack.c.l.s4 1934713408
    %v1883 = vunpack.c.0.s8 %v1882
    %v1884 = vlaneseq
    %v1885 = vshrl.u32 %v1884, 7
    %v1886 = vsub.s32 %v1883, %v1885
    %v1887 = vrot.slane %v1879, %v1886
    %v1889 = vunpack.c.l.s4 1934713408
    %v1890 = vunpack.c.0.s8 %v1889
    %v1891 = vlaneseq
    %v1892 = vshrl.u32 %v1891, 7
    %v1893 = vsub.s32 %v1890, %v1892
    %v1894 = vrot.slane %v1880, %v1893
    %v1895 = vcombine.high %v1871, 0.0
    %v1896 = vcombine.high %v1878, 0.0
    %v1897 = vcombine.high %v1887, 0.0
    %v1898 = vcombine.high %v1894, 0.0
    %1900 = vrot.lane.b32.xlu0 %v1827, 8
    %v1901 = vpop.permute.xlu0 %1900
    %1904 = vrot.lane.b32.xlu0 %v1810, 16
    %v1905 = vpop.permute.xlu0 %1904
    %1908 = vrot.lane.b32.xlu0 %v1828, 24
    %v1909 = vpop.permute.xlu0 %1908
    %1912 = vrot.lane.b32.xlu0 %v1819, 32
    %v1913 = vpop.permute.xlu0 %1912
    %1916 = vrot.lane.b32.xlu0 %v1829, 40
    %v1917 = vpop.permute.xlu0 %1916
    %1920 = vrot.lane.b32.xlu0 %v1826, 48
    %v1921 = vpop.permute.xlu0 %1920
    %1924 = vrot.lane.b32.xlu0 %v1830, 56
    %v1925 = vpop.permute.xlu0 %1924
    %1928 = vrot.lane.b32.xlu0 %v1871, 64
    %v1929 = vpop.permute.xlu0 %1928
    %1932 = vrot.lane.b32.xlu0 %v1895, 72
    %v1933 = vpop.permute.xlu0 %1932
    %1936 = vrot.lane.b32.xlu0 %v1878, 80
    %v1937 = vpop.permute.xlu0 %1936
    %1940 = vrot.lane.b32.xlu0 %v1896, 88
    %v1941 = vpop.permute.xlu0 %1940
    %1944 = vrot.lane.b32.xlu0 %v1887, 96
    %v1945 = vpop.permute.xlu0 %1944
    %1948 = vrot.lane.b32.xlu0 %v1897, 104
    %v1949 = vpop.permute.xlu0 %1948
    %1952 = vrot.lane.b32.xlu0 %v1894, 112
    %v1953 = vpop.permute.xlu0 %1952
    %1956 = vrot.lane.b32.xlu0 %v1898, 120
    %v1957 = vpop.permute.xlu0 %1956
    %vm1959 = vcmask 64512
    %v1960 = vsel %vm1959, %v1803, %v1901
    %vm1961 = vcmask 130048
    %v1962 = vsel %vm1961, %v1960, %v1905
    %vm1963 = vcmask 195584
    %v1964 = vsel %vm1963, %v1962, %v1909
    %v1965 = vsel %vm61, %v1964, %v1913
    %vm1966 = vcmask 326656
    %v1967 = vsel %vm1966, %v1965, %v1917
    %vm1968 = vcmask 392192
    %v1969 = vsel %vm1968, %v1967, %v1921
    %vm1970 = vcmask 457728
    %v1971 = vsel %vm1970, %v1969, %v1925
    %v1972 = vsel %vm1279, %v1971, %v1929
    %vm1973 = vcmask 588800
    %v1974 = vsel %vm1973, %v1972, %v1933
    %vm1975 = vcmask 654336
    %v1976 = vsel %vm1975, %v1974, %v1937
    %vm1977 = vcmask 719872
    %v1978 = vsel %vm1977, %v1976, %v1941
    %v1979 = vsel %vm1536, %v1978, %v1945
    %vm1980 = vcmask 850944
    %v1981 = vsel %vm1980, %v1979, %v1949
    %vm1982 = vcmask 916480
    %v1983 = vsel %vm1982, %v1981, %v1953
    %vm1984 = vcmask 982016
    %v1985 = vsel %vm1984, %v1983, %v1957
    %v1986 = vsel %vm1216, %v1985, -inf
    %1987 = vmax.xlane.f32.xlu0 %v1986
    %v1988 = vpop.xlane.xlu0 %1987
    %v1989 = vsub.f32 %v1985, %v1988
    %v1990 = vmul.f32 %v1989, 1.442695
    %v1991 = vpow.pop %v1990
    %v1992 = vsel %vm1216, %v1991, 0.0
    %1993 = vadd.xlane.f32.xlu0 %v1992
    %v1994 = vpop.xlane.xlu0 %1993
    %v1995 = vrcp.pop %v1994
    %v1996 = vmul.f32 %v1991, %v1995
    %v1997 = vpack.c.bf16 %v1996, %v1996
    %1999 = vrot.lane.b32.xlu0 %v1997, 120
    %v2000 = vpop.permute.xlu0 %1999
    %2002 = vrot.lane.b32.xlu0 %v1997, 112
    %v2003 = vpop.permute.xlu0 %2002
    %2005 = vrot.lane.b32.xlu0 %v1997, 104
    %v2006 = vpop.permute.xlu0 %2005
    %2008 = vrot.lane.b32.xlu0 %v1997, 96
    %v2009 = vpop.permute.xlu0 %2008
    %2011 = vrot.lane.b32.xlu0 %v1997, 88
    %v2012 = vpop.permute.xlu0 %2011
    %2014 = vrot.lane.b32.xlu0 %v1997, 80
    %v2015 = vpop.permute.xlu0 %2014
    %2017 = vrot.lane.b32.xlu0 %v1997, 72
    %v2018 = vpop.permute.xlu0 %2017
    %2020 = vrot.lane.b32.xlu0 %v1997, 64
    %v2021 = vpop.permute.xlu0 %2020
    %2023 = vrot.lane.b32.xlu0 %v1997, 56
    %v2024 = vpop.permute.xlu0 %2023
    %2026 = vrot.lane.b32.xlu0 %v1997, 48
    %v2027 = vpop.permute.xlu0 %2026
    %2029 = vrot.lane.b32.xlu0 %v1997, 40
    %v2030 = vpop.permute.xlu0 %2029
    %2032 = vrot.lane.b32.xlu0 %v1997, 32
    %v2033 = vpop.permute.xlu0 %2032
    %2035 = vrot.lane.b32.xlu0 %v1997, 24
    %v2036 = vpop.permute.xlu0 %2035
    %2038 = vrot.lane.b32.xlu0 %v1997, 16
    %v2039 = vpop.permute.xlu0 %2038
    %2041 = vrot.lane.b32.xlu0 %v1997, 8
    %v2042 = vpop.permute.xlu0 %2041
    %v2044 = vcombine.low %v1997, %v2009
    %v2046 = vunpack.c.l.s4 1983009808
    %v2047 = vunpack.c.0.s8 %v2046
    %v2048 = vlaneseq
    %v2049 = vshrl.u32 %v2048, 7
    %v2050 = vsub.s32 %v2047, %v2049
    %v2051 = vrot.slane %v2044, %v2050
    %v2052 = vcombine.low %v2003, %v2015
    %v2054 = vunpack.c.l.s4 1983009808
    %v2055 = vunpack.c.0.s8 %v2054
    %v2056 = vlaneseq
    %v2057 = vshrl.u32 %v2056, 7
    %v2058 = vsub.s32 %v2055, %v2057
    %v2059 = vrot.slane %v2052, %v2058
    %v2060 = vcombine.low %v2021, %v2033
    %v2062 = vunpack.c.l.s4 1983009808
    %v2063 = vunpack.c.0.s8 %v2062
    %v2064 = vlaneseq
    %v2065 = vshrl.u32 %v2064, 7
    %v2066 = vsub.s32 %v2063, %v2065
    %v2067 = vrot.slane %v2060, %v2066
    %v2068 = vcombine.low %v2027, %v2039
    %v2070 = vunpack.c.l.s4 1983009808
    %v2071 = vunpack.c.0.s8 %v2070
    %v2072 = vlaneseq
    %v2073 = vshrl.u32 %v2072, 7
    %v2074 = vsub.s32 %v2071, %v2073
    %v2075 = vrot.slane %v2068, %v2074
    %v2076 = vcombine.low %v2051, %v2059
    %v2078 = vunpack.c.l.s4 1934713408
    %v2079 = vunpack.c.0.s8 %v2078
    %v2080 = vlaneseq
    %v2081 = vshrl.u32 %v2080, 7
    %v2082 = vsub.s32 %v2079, %v2081
    %v2083 = vrot.slane %v2076, %v2082
    %v2084 = vcombine.low %v2067, %v2075
    %v2086 = vunpack.c.l.s4 1934713408
    %v2087 = vunpack.c.0.s8 %v2086
    %v2088 = vlaneseq
    %v2089 = vshrl.u32 %v2088, 7
    %v2090 = vsub.s32 %v2087, %v2089
    %v2091 = vrot.slane %v2084, %v2090
    %v2092 = vcombine.low %v2083, %v2091
    %v2093 = vcombine.high %v2083, %v2091
    %v2094 = vcombine.low %v2000, %v2012
    %v2096 = vunpack.c.l.s4 1983009808
    %v2097 = vunpack.c.0.s8 %v2096
    %v2098 = vlaneseq
    %v2099 = vshrl.u32 %v2098, 7
    %v2100 = vsub.s32 %v2097, %v2099
    %v2101 = vrot.slane %v2094, %v2100
    %v2102 = vcombine.low %v2006, %v2018
    %v2104 = vunpack.c.l.s4 1983009808
    %v2105 = vunpack.c.0.s8 %v2104
    %v2106 = vlaneseq
    %v2107 = vshrl.u32 %v2106, 7
    %v2108 = vsub.s32 %v2105, %v2107
    %v2109 = vrot.slane %v2102, %v2108
    %v2110 = vcombine.low %v2024, %v2036
    %v2112 = vunpack.c.l.s4 1983009808
    %v2113 = vunpack.c.0.s8 %v2112
    %v2114 = vlaneseq
    %v2115 = vshrl.u32 %v2114, 7
    %v2116 = vsub.s32 %v2113, %v2115
    %v2117 = vrot.slane %v2110, %v2116
    %v2118 = vcombine.low %v2030, %v2042
    %v2120 = vunpack.c.l.s4 1983009808
    %v2121 = vunpack.c.0.s8 %v2120
    %v2122 = vlaneseq
    %v2123 = vshrl.u32 %v2122, 7
    %v2124 = vsub.s32 %v2121, %v2123
    %v2125 = vrot.slane %v2118, %v2124
    %v2126 = vcombine.low %v2101, %v2109
    %v2128 = vunpack.c.l.s4 1934713408
    %v2129 = vunpack.c.0.s8 %v2128
    %v2130 = vlaneseq
    %v2131 = vshrl.u32 %v2130, 7
    %v2132 = vsub.s32 %v2129, %v2131
    %v2133 = vrot.slane %v2126, %v2132
    %v2134 = vcombine.low %v2117, %v2125
    %v2136 = vunpack.c.l.s4 1934713408
    %v2137 = vunpack.c.0.s8 %v2136
    %v2138 = vlaneseq
    %v2139 = vshrl.u32 %v2138, 7
    %v2140 = vsub.s32 %v2137, %v2139
    %v2141 = vrot.slane %v2134, %v2140
    %v2142 = vcombine.low %v2133, %v2141
    %v2143 = vcombine.high %v2133, %v2141
    %v2146 = vpack.i.b16 %v2142, %v2092
    %v2147 = vshrl.u32 %v2092, 16
    %v2148 = vshrl.u32 %v2142, 16
    %v2149 = vpack.i.b16 %v2148, %v2147
    %v2152 = vpack.i.b16 %v2143, %v2093
    %v2153 = vshrl.u32 %v2093, 16
    %v2154 = vshrl.u32 %v2143, 16
    %v2155 = vpack.i.b16 %v2154, %v2153
    %v2156 = vld [vmem:[#allocation2 + $0x50] sm:$0xf]
    %v2157 = vld [vmem:[#allocation2 + $0x54] sm:$0xf]
    %v2158 = vld [vmem:[#allocation2 + $0x58] sm:$0xf]
    %v2159 = vld [vmem:[#allocation2 + $0x5c] sm:$0xf]
    %v2160 = vld [vmem:[%s3 + $0x25] sm:$0x1]
    %v2161 = vlaneseq
    %v2162 = vshrl.u32 %v2161, 7
    %v2163 = vsub.s32 0, %v2162
    %v2164 = vrot.slane %v2160, %v2163
    %v2169 = vunpack.c.l.b16 %v2156
    %v2170 = vunpack.c.l.b16 %v2157
    %v2171 = vunpack.c.l.b16 %v2158
    %v2172 = vunpack.c.l.b16 %v2159
    %v2173 = vpack.c.b16 %v2170, %v2169
    %v2174 = vpack.c.b16 %v2172, %v2171
    %2177 = vmatprep.subr.bf16.mxu0 0
    %2178 = vmatpush1.bf16.msra.mxu0 0
    %2179 = vmatprep.subr.bf16.mxu0 0
    %2180 = vmatpush1.bf16.msra.mxu0 0
    %2181 = vmatprep.subr.bf16.mxu0 0
    %2182 = vmatpush1.bf16.msra.mxu0 0
    %2183 = vmatprep.subr.bf16.mxu0 0
    %2184 = vmatpush1.bf16.msra.mxu0 0
    %2185 = vmatprep.subr.bf16.mxu0 0
    %2186 = vmatpush1.bf16.msra.mxu0 0
    %2187 = vmatprep.subr.bf16.mxu0 0
    %2188 = vmatpush1.bf16.msra.mxu0 0
    %2189 = vmatprep.subr.bf16.mxu0 0
    %2190 = vmatpush1.bf16.msra.mxu0 %v2174
    %2191 = vmatprep.subr.bf16.mxu0 0
    %2192 = vmatpush1.bf16.msra.mxu0 %v2173
    %2193 = vmatprep.subr.bf16.mxu0 0
    %2194 = vmatpush2.bf16.msra.mxu0 0
    %2195 = vmatprep.subr.bf16.mxu0 0
    %2196 = vmatpush2.bf16.msra.mxu0 0
    %2197 = vmatprep.subr.bf16.mxu0 0
    %2198 = vmatpush2.bf16.msra.mxu0 0
    %2199 = vmatprep.subr.bf16.mxu0 0
    %2200 = vmatpush2.bf16.msra.mxu0 0
    %2201 = vmatprep.subr.bf16.mxu0 0
    %2202 = vmatpush2.bf16.msra.mxu0 0
    %2203 = vmatprep.subr.bf16.mxu0 0
    %2204 = vmatpush2.bf16.msra.mxu0 0
    %2205 = vmatprep.subr.bf16.mxu0 0
    %2206 = vmatpush2.bf16.msra.mxu0 0
    %2207 = vmatprep.subr.bf16.mxu0 0
    %2208 = vmatpush2.bf16.msra.mxu0 0
    %2209 = vmatprep.mubr.bf16.mxu0 0
    %2210 = vmatmul.mubr.bf16.gmra.mxu0 %v1364
    %v2211 = vpop.f32.mrf.mxu0
    %v2212 = vadd.f32 %v2164, %v2211
    %v2213 = vpop.f32.mrf.mxu0
    %v2214 = vpop.f32.mrf.mxu0
    %v2215 = vadd.f32 %v2164, %v2214
    %v2216 = vpop.f32.mrf.mxu0
    %2217 = vmatprep.mubr.bf16.mxu0 0
    %2218 = vmatmul.mubr.bf16.gmra.mxu0 %v1367
    %v2219 = vpop.f32.mrf.mxu0
    %v2220 = vadd.f32 %v2164, %v2219
    %v2221 = vpop.f32.mrf.mxu0
    %v2222 = vpop.f32.mrf.mxu0
    %v2223 = vadd.f32 %v2164, %v2222
    %v2224 = vpop.f32.mrf.mxu0
    %2225 = vdwg.mxu0
    %v2226 = vmax.f32 %v2212, 0.0
    %v2227 = vmax.f32 %v2215, 0.0
    %v2228 = vmax.f32 %v2220, 0.0
    %v2229 = vmax.f32 %v2223, 0.0
    %v2230 = vld [vmem:[#allocation2 + $0x60] sm:$0xf]
    %v2231 = vld [vmem:[#allocation2 + $0x64] sm:$0xf]
    %v2232 = vld [vmem:[#allocation2 + $0x68] sm:$0xf]
    %v2233 = vld [vmem:[#allocation2 + $0x6c] sm:$0xf]
    %v2234 = vld [vmem:[%s3 + $0x26] sm:$0x1]
    %v2235 = vlaneseq
    %v2236 = vshrl.u32 %v2235, 7
    %v2237 = vsub.s32 0, %v2236
    %v2238 = vrot.slane %v2234, %v2237
    %v2243 = vunpack.c.l.b16 %v2230
    %v2244 = vunpack.c.l.b16 %v2231
    %v2245 = vunpack.c.l.b16 %v2232
    %v2246 = vunpack.c.l.b16 %v2233
    %v2247 = vpack.c.b16 %v2244, %v2243
    %v2248 = vpack.c.b16 %v2246, %v2245
    %2251 = vmatprep.subr.bf16.mxu0 0
    %2252 = vmatpush1.bf16.msra.mxu0 0
    %2253 = vmatprep.subr.bf16.mxu0 0
    %2254 = vmatpush1.bf16.msra.mxu0 0
    %2255 = vmatprep.subr.bf16.mxu0 0
    %2256 = vmatpush1.bf16.msra.mxu0 0
    %2257 = vmatprep.subr.bf16.mxu0 0
    %2258 = vmatpush1.bf16.msra.mxu0 0
    %2259 = vmatprep.subr.bf16.mxu0 0
    %2260 = vmatpush1.bf16.msra.mxu0 0
    %2261 = vmatprep.subr.bf16.mxu0 0
    %2262 = vmatpush1.bf16.msra.mxu0 0
    %2263 = vmatprep.subr.bf16.mxu0 0
    %2264 = vmatpush1.bf16.msra.mxu0 %v2248
    %2265 = vmatprep.subr.bf16.mxu0 0
    %2266 = vmatpush1.bf16.msra.mxu0 %v2247
    %2267 = vmatprep.subr.bf16.mxu0 0
    %2268 = vmatpush2.bf16.msra.mxu0 0
    %2269 = vmatprep.subr.bf16.mxu0 0
    %2270 = vmatpush2.bf16.msra.mxu0 0
    %2271 = vmatprep.subr.bf16.mxu0 0
    %2272 = vmatpush2.bf16.msra.mxu0 0
    %2273 = vmatprep.subr.bf16.mxu0 0
    %2274 = vmatpush2.bf16.msra.mxu0 0
    %2275 = vmatprep.subr.bf16.mxu0 0
    %2276 = vmatpush2.bf16.msra.mxu0 0
    %2277 = vmatprep.subr.bf16.mxu0 0
    %2278 = vmatpush2.bf16.msra.mxu0 0
    %2279 = vmatprep.subr.bf16.mxu0 0
    %2280 = vmatpush2.bf16.msra.mxu0 0
    %2281 = vmatprep.subr.bf16.mxu0 0
    %2282 = vmatpush2.bf16.msra.mxu0 0
    %2283 = vmatprep.mubr.bf16.mxu0 0
    %2284 = vmatmul.mubr.bf16.gmra.mxu0 %v1443
    %v2285 = vpop.f32.mrf.mxu0
    %v2286 = vadd.f32 %v2238, %v2285
    %v2287 = vpop.f32.mrf.mxu0
    %v2288 = vpop.f32.mrf.mxu0
    %v2289 = vadd.f32 %v2238, %v2288
    %v2290 = vpop.f32.mrf.mxu0
    %2291 = vdwg.mxu0
    %v2292 = vmax.f32 %v2286, 0.0
    %v2293 = vmax.f32 %v2289, 0.0
    %v2294 = vpack.c.bf16 %v2292, %v2292
    %v2295 = vpack.c.bf16 %v2293, %v2293
    %v2297 = vsel %vm1959, %v2146, 0
    %v2300 = vsel %vm1216, %v2294, 0
    %2302 = vmatprep.subr.bf16.mxu0 0
    %2303 = vmatpush1.bf16.msra.mxu0 0
    %2304 = vmatprep.subr.bf16.mxu0 0
    %2305 = vmatpush1.bf16.msra.mxu0 0
    %2306 = vmatprep.subr.bf16.mxu0 0
    %2307 = vmatpush1.bf16.msra.mxu0 0
    %2308 = vmatprep.subr.bf16.mxu0 0
    %2309 = vmatpush1.bf16.msra.mxu0 0
    %2310 = vmatprep.subr.bf16.mxu0 0
    %2311 = vmatpush1.bf16.msra.mxu0 0
    %2312 = vmatprep.subr.bf16.mxu0 0
    %2313 = vmatpush1.bf16.msra.mxu0 0
    %2314 = vmatprep.subr.bf16.mxu0 0
    %2315 = vmatpush1.bf16.msra.mxu0 0
    %2316 = vmatprep.subr.bf16.mxu0 0
    %2317 = vmatpush1.bf16.msra.mxu0 %v2300
    %2318 = vmatprep.subr.bf16.mxu0 0
    %2319 = vmatpush2.bf16.msra.mxu0 0
    %2320 = vmatprep.subr.bf16.mxu0 0
    %2321 = vmatpush2.bf16.msra.mxu0 0
    %2322 = vmatprep.subr.bf16.mxu0 0
    %2323 = vmatpush2.bf16.msra.mxu0 0
    %2324 = vmatprep.subr.bf16.mxu0 0
    %2325 = vmatpush2.bf16.msra.mxu0 0
    %2326 = vmatprep.subr.bf16.mxu0 0
    %2327 = vmatpush2.bf16.msra.mxu0 0
    %2328 = vmatprep.subr.bf16.mxu0 0
    %2329 = vmatpush2.bf16.msra.mxu0 0
    %2330 = vmatprep.subr.bf16.mxu0 0
    %2331 = vmatpush2.bf16.msra.mxu0 0
    %2332 = vmatprep.subr.bf16.mxu0 0
    %2333 = vmatpush2.bf16.msra.mxu0 0
    %2334 = vmatprep.mubr.bf16.mxu0 0
    %2335 = vmatmul.mubr.bf16.gmra.mxu0 %v2297
    %v2336 = vpop.f32.mrf.mxu0
    %v2337 = vadd.f32 0.0, %v2336
    %v2338 = vpop.f32.mrf.mxu0
    %v2339 = vpop.f32.mrf.mxu0
    %v2340 = vadd.f32 0.0, %v2339
    %v2341 = vpop.f32.mrf.mxu0
    %2342 = vdwg.mxu0
    %v2344 = vsel %vm1959, %v2149, 0
    %v2347 = vsel %vm1216, %v2295, 0
    %2349 = vmatprep.subr.bf16.mxu0 0
    %2350 = vmatpush1.bf16.msra.mxu0 0
    %2351 = vmatprep.subr.bf16.mxu0 0
    %2352 = vmatpush1.bf16.msra.mxu0 0
    %2353 = vmatprep.subr.bf16.mxu0 0
    %2354 = vmatpush1.bf16.msra.mxu0 0
    %2355 = vmatprep.subr.bf16.mxu0 0
    %2356 = vmatpush1.bf16.msra.mxu0 0
    %2357 = vmatprep.subr.bf16.mxu0 0
    %2358 = vmatpush1.bf16.msra.mxu0 0
    %2359 = vmatprep.subr.bf16.mxu0 0
    %2360 = vmatpush1.bf16.msra.mxu0 0
    %2361 = vmatprep.subr.bf16.mxu0 0
    %2362 = vmatpush1.bf16.msra.mxu0 0
    %2363 = vmatprep.subr.bf16.mxu0 0
    %2364 = vmatpush1.bf16.msra.mxu0 %v2347
    %2365 = vmatprep.subr.bf16.mxu0 0
    %2366 = vmatpush2.bf16.msra.mxu0 0
    %2367 = vmatprep.subr.bf16.mxu0 0
    %2368 = vmatpush2.bf16.msra.mxu0 0
    %2369 = vmatprep.subr.bf16.mxu0 0
    %2370 = vmatpush2.bf16.msra.mxu0 0
    %2371 = vmatprep.subr.bf16.mxu0 0
    %2372 = vmatpush2.bf16.msra.mxu0 0
    %2373 = vmatprep.subr.bf16.mxu0 0
    %2374 = vmatpush2.bf16.msra.mxu0 0
    %2375 = vmatprep.subr.bf16.mxu0 0
    %2376 = vmatpush2.bf16.msra.mxu0 0
    %2377 = vmatprep.subr.bf16.mxu0 0
    %2378 = vmatpush2.bf16.msra.mxu0 0
    %2379 = vmatprep.subr.bf16.mxu0 0
    %2380 = vmatpush2.bf16.msra.mxu0 0
    %2381 = vmatprep.mubr.bf16.mxu0 0
    %2382 = vmatmul.mubr.bf16.gmra.mxu0 %v2344
    %v2383 = vpop.f32.mrf.mxu0
    %v2384 = vadd.f32 0.0, %v2383
    %v2385 = vpop.f32.mrf.mxu0
    %v2386 = vpop.f32.mrf.mxu0
    %v2387 = vadd.f32 0.0, %v2386
    %v2388 = vpop.f32.mrf.mxu0
    %2389 = vdwg.mxu0
    %v2390 = vmul.f32 %v2226, %v2337
    %v2391 = vmul.f32 %v2227, %v2340
    %v2392 = vmul.f32 %v2228, %v2384
    %v2393 = vmul.f32 %v2229, %v2387
    %v2394 = vsel %vm1279, %v2390, 0.0
    %v2395 = vsel %vm1279, %v2391, 0.0
    %v2396 = vadd.f32 %v2394, %v2395
    %v2397 = vrot.slane %v2396, 4
    %v2398 = vadd.f32 %v2396, %v2397
    %v2399 = vrot.slane %v2398, 2
    %v2400 = vadd.f32 %v2398, %v2399
    %v2401 = vrot.slane %v2400, 1
    %v2402 = vadd.f32 %v2400, %v2401
    %v2403 = vsel %vm1279, %v2392, 0.0
    %v2404 = vsel %vm1279, %v2393, 0.0
    %v2405 = vadd.f32 %v2403, %v2404
    %v2406 = vrot.slane %v2405, 4
    %v2407 = vadd.f32 %v2405, %v2406
    %v2408 = vrot.slane %v2407, 2
    %v2409 = vadd.f32 %v2407, %v2408
    %v2410 = vrot.slane %v2409, 1
    %v2411 = vadd.f32 %v2409, %v2410
    %v2412 = vld [vmem:[#allocation2 + $0x80] sm:$0xf]
    %v2413 = vld [vmem:[#allocation2 + $0x84] sm:$0xf]
    %v2414 = vld [vmem:[#allocation2 + $0x88] sm:$0xf]
    %v2415 = vld [vmem:[#allocation2 + $0x8c] sm:$0xf]
    %v2416 = vld [vmem:[#allocation2 + $0x90] sm:$0xf]
    %v2417 = vld [vmem:[#allocation2 + $0x94] sm:$0xf]
    %v2418 = vld [vmem:[#allocation2 + $0x98] sm:$0xf]
    %v2419 = vld [vmem:[#allocation2 + $0x9c] sm:$0xf]
    %v2420 = vld [vmem:[%s3 + $0x28] sm:$0x1]
    %v2421 = vpack.c.bf16 %v2402, %v2402
    %v2422 = vpack.c.bf16 %v2411, %v2411
    %v2423 = vlaneseq
    %v2424 = vshrl.u32 %v2423, 7
    %v2425 = vsub.s32 0, %v2424
    %v2426 = vrot.slane %v2420, %v2425
    %v2429 = vunpack.c.l.b16 %v2421
    %v2430 = vunpack.c.l.b16 %v2422
    %vm2431 = vcmask 1041409
    %v2432 = vsel %vm2431, %v2430, %v2429
    %v2433 = vpack.c.b16 %v2432, %v2432
    %v2442 = vunpack.c.l.b16 %v2412
    %v2443 = vunpack.c.l.b16 %v2413
    %v2444 = vunpack.c.l.b16 %v2414
    %v2445 = vunpack.c.l.b16 %v2415
    %v2446 = vunpack.c.l.b16 %v2416
    %v2447 = vunpack.c.l.b16 %v2417
    %v2448 = vunpack.c.l.b16 %v2418
    %v2449 = vunpack.c.l.b16 %v2419
    %v2450 = vpack.c.b16 %v2443, %v2442
    %v2451 = vpack.c.b16 %v2445, %v2444
    %v2452 = vpack.c.b16 %v2447, %v2446
    %v2453 = vpack.c.b16 %v2449, %v2448
    %v2459 = vsel %vm1279, %v2433, 0
    %2461 = vmatprep.subr.bf16.mxu0 0
    %2462 = vmatpush1.bf16.msra.mxu0 0
    %2463 = vmatprep.subr.bf16.mxu0 0
    %2464 = vmatpush1.bf16.msra.mxu0 0
    %2465 = vmatprep.subr.bf16.mxu0 0
    %2466 = vmatpush1.bf16.msra.mxu0 0
    %2467 = vmatprep.subr.bf16.mxu0 0
    %2468 = vmatpush1.bf16.msra.mxu0 0
    %2469 = vmatprep.subr.bf16.mxu0 0
    %2470 = vmatpush1.bf16.msra.mxu0 %v2453
    %2471 = vmatprep.subr.bf16.mxu0 0
    %2472 = vmatpush1.bf16.msra.mxu0 %v2452
    %2473 = vmatprep.subr.bf16.mxu0 0
    %2474 = vmatpush1.bf16.msra.mxu0 %v2451
    %2475 = vmatprep.subr.bf16.mxu0 0
    %2476 = vmatpush1.bf16.msra.mxu0 %v2450
    %2477 = vmatprep.subr.bf16.mxu0 0
    %2478 = vmatpush2.bf16.msra.mxu0 0
    %2479 = vmatprep.subr.bf16.mxu0 0
    %2480 = vmatpush2.bf16.msra.mxu0 0
    %2481 = vmatprep.subr.bf16.mxu0 0
    %2482 = vmatpush2.bf16.msra.mxu0 0
    %2483 = vmatprep.subr.bf16.mxu0 0
    %2484 = vmatpush2.bf16.msra.mxu0 0
    %2485 = vmatprep.subr.bf16.mxu0 0
    %2486 = vmatpush2.bf16.msra.mxu0 0
    %2487 = vmatprep.subr.bf16.mxu0 0
    %2488 = vmatpush2.bf16.msra.mxu0 0
    %2489 = vmatprep.subr.bf16.mxu0 0
    %2490 = vmatpush2.bf16.msra.mxu0 0
    %2491 = vmatprep.subr.bf16.mxu0 0
    %2492 = vmatpush2.bf16.msra.mxu0 0
    %2493 = vmatprep.mubr.bf16.mxu0 0
    %2494 = vmatmul.mubr.bf16.gmra.mxu0 %v2459
    %v2495 = vpop.f32.mrf.mxu0
    %v2496 = vadd.f32 %v2426, %v2495
    %v2497 = vpop.f32.mrf.mxu0
    %v2498 = vpop.f32.mrf.mxu0
    %v2499 = vpop.f32.mrf.mxu0
    %2500 = vdwg.mxu0
    %v2503 = vunpack.c.l.s4 1966171168
    %v2504 = vunpack.c.0.s8 %v2503
    %v2505 = vlaneseq
    %v2506 = vshrl.u32 %v2505, 7
    %v2507 = vsub.s32 %v2504, %v2506
    %v2508 = vrot.slane %v2496, %v2507
    %v2509 = vcombine.high %v2508, %v2508
    %v2511 = vunpack.c.l.s4 1966171168
    %v2512 = vunpack.c.0.s8 %v2511
    %v2513 = vlaneseq
    %v2514 = vshrl.u32 %v2513, 7
    %v2515 = vsub.s32 %v2512, %v2514
    %v2516 = vrot.slane %v2508, %v2515
    %v2518 = vunpack.c.l.s4 1966171168
    %v2519 = vunpack.c.0.s8 %v2518
    %v2520 = vlaneseq
    %v2521 = vshrl.u32 %v2520, 7
    %v2522 = vsub.s32 %v2519, %v2521
    %v2523 = vrot.slane %v2509, %v2522
    %v2524 = vlaneseq
    %v2525 = vshrl.u32 %v2524, 7
    %v2526 = vsub.s32 0, %v2525
    %v2527 = vrot.slane %v2516, %v2526
    %v2528 = vlaneseq
    %v2529 = vshrl.u32 %v2528, 7
    %v2530 = vsub.s32 0, %v2529
    %v2531 = vrot.slane %v2523, %v2530
    %2532 = vrot.lane.b32.xlu0 %v2527, 32
    %v2533 = vpop.permute.xlu0 %2532
    %2534 = vrot.lane.b32.xlu0 %v2531, 32
    %v2535 = vpop.permute.xlu0 %2534
    %v2538 = vadd.f32 %v1226, %v2533
    %v2539 = vadd.f32 %v1227, %v2535
    %v2540 = vld [vmem:[#allocation2 + $0x70] sm:$0xf]
    %v2541 = vld [vmem:[#allocation2 + $0x74] sm:$0xf]
    %v2542 = vld [vmem:[#allocation2 + $0x78] sm:$0xf]
    %v2543 = vld [vmem:[#allocation2 + $0x7c] sm:$0xf]
    %v2544 = vld [vmem:[%s3 + $0x27] sm:$0x1]
    %v2545 = vpack.c.bf16 %v2539, %v2538
    %v2546 = vlaneseq
    %v2547 = vshrl.u32 %v2546, 7
    %v2548 = vsub.s32 0, %v2547
    %v2549 = vrot.slane %v2544, %v2548
    %2551 = vrot.lane.b32.xlu0 %v2545, 96
    %v2552 = vpop.permute.xlu0 %2551
    %v2557 = vunpack.c.l.b16 %v2540
    %v2558 = vunpack.c.l.b16 %v2541
    %v2559 = vunpack.c.l.b16 %v2542
    %v2560 = vunpack.c.l.b16 %v2543
    %v2561 = vpack.c.b16 %v2558, %v2557
    %v2562 = vpack.c.b16 %v2560, %v2559
    %v2566 = vsel %vm61, %v2552, 0
    %2568 = vmatprep.subr.bf16.mxu0 0
    %2569 = vmatpush1.bf16.msra.mxu0 0
    %2570 = vmatprep.subr.bf16.mxu0 0
    %2571 = vmatpush1.bf16.msra.mxu0 0
    %2572 = vmatprep.subr.bf16.mxu0 0
    %2573 = vmatpush1.bf16.msra.mxu0 0
    %2574 = vmatprep.subr.bf16.mxu0 0
    %2575 = vmatpush1.bf16.msra.mxu0 0
    %2576 = vmatprep.subr.bf16.mxu0 0
    %2577 = vmatpush1.bf16.msra.mxu0 0
    %2578 = vmatprep.subr.bf16.mxu0 0
    %2579 = vmatpush1.bf16.msra.mxu0 0
    %2580 = vmatprep.subr.bf16.mxu0 0
    %2581 = vmatpush1.bf16.msra.mxu0 %v2562
    %2582 = vmatprep.subr.bf16.mxu0 0
    %2583 = vmatpush1.bf16.msra.mxu0 %v2561
    %2584 = vmatprep.subr.bf16.mxu0 0
    %2585 = vmatpush2.bf16.msra.mxu0 0
    %2586 = vmatprep.subr.bf16.mxu0 0
    %2587 = vmatpush2.bf16.msra.mxu0 0
    %2588 = vmatprep.subr.bf16.mxu0 0
    %2589 = vmatpush2.bf16.msra.mxu0 0
    %2590 = vmatprep.subr.bf16.mxu0 0
    %2591 = vmatpush2.bf16.msra.mxu0 0
    %2592 = vmatprep.subr.bf16.mxu0 0
    %2593 = vmatpush2.bf16.msra.mxu0 0
    %2594 = vmatprep.subr.bf16.mxu0 0
    %2595 = vmatpush2.bf16.msra.mxu0 0
    %2596 = vmatprep.subr.bf16.mxu0 0
    %2597 = vmatpush2.bf16.msra.mxu0 0
    %2598 = vmatprep.subr.bf16.mxu0 0
    %2599 = vmatpush2.bf16.msra.mxu0 0
    %2600 = vmatprep.mubr.bf16.mxu0 0
    %2601 = vmatmul.mubr.bf16.gmra.mxu0 %v2566
    %v2602 = vpop.f32.mrf.mxu0
    %v2603 = vadd.f32 %v2549, %v2602
    %v2604 = vpop.f32.mrf.mxu0
    %v2605 = vpop.f32.mrf.mxu0
    %v2606 = vadd.f32 %v2549, %v2605
    %v2607 = vpop.f32.mrf.mxu0
    %2608 = vdwg.mxu0
    %v2609 = vmax.f32 %v2603, 0.0
    %v2610 = vmax.f32 %v2606, 0.0
    %v2611 = vpack.c.bf16 %v2609, %v2609
    %v2612 = vpack.c.bf16 %v2610, %v2610
    %v2614 = vsel %vm1959, %v2152, 0
    %v2617 = vsel %vm1216, %v2611, 0
    %2619 = vmatprep.subr.bf16.mxu0 0
    %2620 = vmatpush1.bf16.msra.mxu0 0
    %2621 = vmatprep.subr.bf16.mxu0 0
    %2622 = vmatpush1.bf16.msra.mxu0 0
    %2623 = vmatprep.subr.bf16.mxu0 0
    %2624 = vmatpush1.bf16.msra.mxu0 0
    %2625 = vmatprep.subr.bf16.mxu0 0
    %2626 = vmatpush1.bf16.msra.mxu0 0
    %2627 = vmatprep.subr.bf16.mxu0 0
    %2628 = vmatpush1.bf16.msra.mxu0 0
    %2629 = vmatprep.subr.bf16.mxu0 0
    %2630 = vmatpush1.bf16.msra.mxu0 0
    %2631 = vmatprep.subr.bf16.mxu0 0
    %2632 = vmatpush1.bf16.msra.mxu0 0
    %2633 = vmatprep.subr.bf16.mxu0 0
    %2634 = vmatpush1.bf16.msra.mxu0 %v2617
    %2635 = vmatprep.subr.bf16.mxu0 0
    %2636 = vmatpush2.bf16.msra.mxu0 0
    %2637 = vmatprep.subr.bf16.mxu0 0
    %2638 = vmatpush2.bf16.msra.mxu0 0
    %2639 = vmatprep.subr.bf16.mxu0 0
    %2640 = vmatpush2.bf16.msra.mxu0 0
    %2641 = vmatprep.subr.bf16.mxu0 0
    %2642 = vmatpush2.bf16.msra.mxu0 0
    %2643 = vmatprep.subr.bf16.mxu0 0
    %2644 = vmatpush2.bf16.msra.mxu0 0
    %2645 = vmatprep.subr.bf16.mxu0 0
    %2646 = vmatpush2.bf16.msra.mxu0 0
    %2647 = vmatprep.subr.bf16.mxu0 0
    %2648 = vmatpush2.bf16.msra.mxu0 0
    %2649 = vmatprep.subr.bf16.mxu0 0
    %2650 = vmatpush2.bf16.msra.mxu0 0
    %2651 = vmatprep.mubr.bf16.mxu0 0
    %2652 = vmatmul.mubr.bf16.gmra.mxu0 %v2614
    %v2653 = vpop.f32.mrf.mxu0
    %v2654 = vadd.f32 0.0, %v2653
    %v2655 = vpop.f32.mrf.mxu0
    %v2656 = vpop.f32.mrf.mxu0
    %v2657 = vadd.f32 0.0, %v2656
    %v2658 = vpop.f32.mrf.mxu0
    %2659 = vdwg.mxu0
    %v2661 = vsel %vm1959, %v2155, 0
    %v2664 = vsel %vm1216, %v2612, 0
    %2666 = vmatprep.subr.bf16.mxu0 0
    %2667 = vmatpush1.bf16.msra.mxu0 0
    %2668 = vmatprep.subr.bf16.mxu0 0
    %2669 = vmatpush1.bf16.msra.mxu0 0
    %2670 = vmatprep.subr.bf16.mxu0 0
    %2671 = vmatpush1.bf16.msra.mxu0 0
    %2672 = vmatprep.subr.bf16.mxu0 0
    %2673 = vmatpush1.bf16.msra.mxu0 0
    %2674 = vmatprep.subr.bf16.mxu0 0
    %2675 = vmatpush1.bf16.msra.mxu0 0
    %2676 = vmatprep.subr.bf16.mxu0 0
    %2677 = vmatpush1.bf16.msra.mxu0 0
    %2678 = vmatprep.subr.bf16.mxu0 0
    %2679 = vmatpush1.bf16.msra.mxu0 0
    %2680 = vmatprep.subr.bf16.mxu0 0
    %2681 = vmatpush1.bf16.msra.mxu0 %v2664
    %2682 = vmatprep.subr.bf16.mxu0 0
    %2683 = vmatpush2.bf16.msra.mxu0 0
    %2684 = vmatprep.subr.bf16.mxu0 0
    %2685 = vmatpush2.bf16.msra.mxu0 0
    %2686 = vmatprep.subr.bf16.mxu0 0
    %2687 = vmatpush2.bf16.msra.mxu0 0
    %2688 = vmatprep.subr.bf16.mxu0 0
    %2689 = vmatpush2.bf16.msra.mxu0 0
    %2690 = vmatprep.subr.bf16.mxu0 0
    %2691 = vmatpush2.bf16.msra.mxu0 0
    %2692 = vmatprep.subr.bf16.mxu0 0
    %2693 = vmatpush2.bf16.msra.mxu0 0
    %2694 = vmatprep.subr.bf16.mxu0 0
    %2695 = vmatpush2.bf16.msra.mxu0 0
    %2696 = vmatprep.subr.bf16.mxu0 0
    %2697 = vmatpush2.bf16.msra.mxu0 0
    %2698 = vmatprep.mubr.bf16.mxu0 0
    %2699 = vmatmul.mubr.bf16.gmra.mxu0 %v2661
    %v2700 = vpop.f32.mrf.mxu0
    %v2701 = vadd.f32 0.0, %v2700
    %v2702 = vpop.f32.mrf.mxu0
    %v2703 = vpop.f32.mrf.mxu0
    %v2704 = vadd.f32 0.0, %v2703
    %v2705 = vpop.f32.mrf.mxu0
    %2706 = vdwg.mxu0
    %2711 = vrot.lane.b32.xlu0 %v2654, 64
    %v2712 = vpop.permute.xlu0 %2711
    %2713 = vrot.lane.b32.xlu0 %v2657, 64
    %v2714 = vpop.permute.xlu0 %2713
    %2715 = vrot.lane.b32.xlu0 %v2701, 64
    %v2716 = vpop.permute.xlu0 %2715
    %2717 = vrot.lane.b32.xlu0 %v2704, 64
    %v2718 = vpop.permute.xlu0 %2717
    %v2723 = vmul.f32 %v2226, %v2712
    %v2724 = vmul.f32 %v2227, %v2714
    %v2725 = vmul.f32 %v2228, %v2716
    %v2726 = vmul.f32 %v2229, %v2718
    %vm2727 = vcmask 1048064
    %v2728 = vsel %vm2727, %v2723, 0.0
    %v2729 = vsel %vm2727, %v2724, 0.0
    %v2730 = vadd.f32 %v2728, %v2729
    %v2731 = vrot.slane %v2730, 4
    %v2732 = vadd.f32 %v2730, %v2731
    %v2733 = vrot.slane %v2732, 2
    %v2734 = vadd.f32 %v2732, %v2733
    %v2735 = vrot.slane %v2734, 1
    %v2736 = vadd.f32 %v2734, %v2735
    %v2737 = vsel %vm2727, %v2725, 0.0
    %v2738 = vsel %vm2727, %v2726, 0.0
    %v2739 = vadd.f32 %v2737, %v2738
    %v2740 = vrot.slane %v2739, 4
    %v2741 = vadd.f32 %v2739, %v2740
    %v2742 = vrot.slane %v2741, 2
    %v2743 = vadd.f32 %v2741, %v2742
    %v2744 = vrot.slane %v2743, 1
    %v2745 = vadd.f32 %v2743, %v2744
    %v2746 = vld [vmem:[#allocation2 + $0xa0] sm:$0xf]
    %v2747 = vld [vmem:[#allocation2 + $0xa4] sm:$0xf]
    %v2748 = vld [vmem:[#allocation2 + $0xa8] sm:$0xf]
    %v2749 = vld [vmem:[#allocation2 + $0xac] sm:$0xf]
    %v2750 = vld [vmem:[#allocation2 + $0xb0] sm:$0xf]
    %v2751 = vld [vmem:[#allocation2 + $0xb4] sm:$0xf]
    %v2752 = vld [vmem:[#allocation2 + $0xb8] sm:$0xf]
    %v2753 = vld [vmem:[#allocation2 + $0xbc] sm:$0xf]
    %v2754 = vld [vmem:[%s3 + $0x29] sm:$0x1]
    %v2755 = vpack.c.bf16 %v2736, %v2736
    %v2756 = vpack.c.bf16 %v2745, %v2745
    %v2757 = vlaneseq
    %v2758 = vshrl.u32 %v2757, 7
    %v2759 = vsub.s32 0, %v2758
    %v2760 = vrot.slane %v2754, %v2759
    %v2763 = vunpack.c.l.b16 %v2755
    %v2764 = vunpack.c.l.b16 %v2756
    %v2765 = vsel %vm2431, %v2764, %v2763
    %v2766 = vpack.c.b16 %v2765, %v2765
    %2767 = vrot.lane.b32.xlu0 %v2766, 64
    %v2768 = vpop.permute.xlu0 %2767
    %v2777 = vunpack.c.l.b16 %v2746
    %v2778 = vunpack.c.l.b16 %v2747
    %v2779 = vunpack.c.l.b16 %v2748
    %v2780 = vunpack.c.l.b16 %v2749
    %v2781 = vunpack.c.l.b16 %v2750
    %v2782 = vunpack.c.l.b16 %v2751
    %v2783 = vunpack.c.l.b16 %v2752
    %v2784 = vunpack.c.l.b16 %v2753
    %v2785 = vpack.c.b16 %v2778, %v2777
    %v2786 = vpack.c.b16 %v2780, %v2779
    %v2787 = vpack.c.b16 %v2782, %v2781
    %v2788 = vpack.c.b16 %v2784, %v2783
    %v2794 = vsel %vm1279, %v2768, 0
    %2796 = vmatprep.subr.bf16.mxu0 0
    %2797 = vmatpush1.bf16.msra.mxu0 0
    %2798 = vmatprep.subr.bf16.mxu0 0
    %2799 = vmatpush1.bf16.msra.mxu0 0
    %2800 = vmatprep.subr.bf16.mxu0 0
    %2801 = vmatpush1.bf16.msra.mxu0 0
    %2802 = vmatprep.subr.bf16.mxu0 0
    %2803 = vmatpush1.bf16.msra.mxu0 0
    %2804 = vmatprep.subr.bf16.mxu0 0
    %2805 = vmatpush1.bf16.msra.mxu0 %v2788
    %2806 = vmatprep.subr.bf16.mxu0 0
    %2807 = vmatpush1.bf16.msra.mxu0 %v2787
    %2808 = vmatprep.subr.bf16.mxu0 0
    %2809 = vmatpush1.bf16.msra.mxu0 %v2786
    %2810 = vmatprep.subr.bf16.mxu0 0
    %2811 = vmatpush1.bf16.msra.mxu0 %v2785
    %2812 = vmatprep.subr.bf16.mxu0 0
    %2813 = vmatpush2.bf16.msra.mxu0 0
    %2814 = vmatprep.subr.bf16.mxu0 0
    %2815 = vmatpush2.bf16.msra.mxu0 0
    %2816 = vmatprep.subr.bf16.mxu0 0
    %2817 = vmatpush2.bf16.msra.mxu0 0
    %2818 = vmatprep.subr.bf16.mxu0 0
    %2819 = vmatpush2.bf16.msra.mxu0 0
    %2820 = vmatprep.subr.bf16.mxu0 0
    %2821 = vmatpush2.bf16.msra.mxu0 0
    %2822 = vmatprep.subr.bf16.mxu0 0
    %2823 = vmatpush2.bf16.msra.mxu0 0
    %2824 = vmatprep.subr.bf16.mxu0 0
    %2825 = vmatpush2.bf16.msra.mxu0 0
    %2826 = vmatprep.subr.bf16.mxu0 0
    %2827 = vmatpush2.bf16.msra.mxu0 0
    %2828 = vmatprep.mubr.bf16.mxu0 0
    %2829 = vmatmul.mubr.bf16.gmra.mxu0 %v2794
    %v2830 = vpop.f32.mrf.mxu0
    %v2831 = vadd.f32 %v2760, %v2830
    %v2832 = vpop.f32.mrf.mxu0
    %v2833 = vpop.f32.mrf.mxu0
    %v2834 = vpop.f32.mrf.mxu0
    %2835 = vdwg.mxu0
    %v2838 = vunpack.c.l.s4 1966171168
    %v2839 = vunpack.c.0.s8 %v2838
    %v2840 = vlaneseq
    %v2841 = vshrl.u32 %v2840, 7
    %v2842 = vsub.s32 %v2839, %v2841
    %v2843 = vrot.slane %v2831, %v2842
    %v2844 = vcombine.high %v2843, %v2843
    %v2846 = vunpack.c.l.s4 1966171168
    %v2847 = vunpack.c.0.s8 %v2846
    %v2848 = vlaneseq
    %v2849 = vshrl.u32 %v2848, 7
    %v2850 = vsub.s32 %v2847, %v2849
    %v2851 = vrot.slane %v2843, %v2850
    %v2853 = vunpack.c.l.s4 1966171168
    %v2854 = vunpack.c.0.s8 %v2853
    %v2855 = vlaneseq
    %v2856 = vshrl.u32 %v2855, 7
    %v2857 = vsub.s32 %v2854, %v2856
    %v2858 = vrot.slane %v2844, %v2857
    %v2859 = vlaneseq
    %v2860 = vshrl.u32 %v2859, 7
    %v2861 = vsub.s32 0, %v2860
    %v2862 = vrot.slane %v2851, %v2861
    %v2863 = vlaneseq
    %v2864 = vshrl.u32 %v2863, 7
    %v2865 = vsub.s32 0, %v2864
    %v2866 = vrot.slane %v2858, %v2865
    %2867 = vrot.lane.b32.xlu0 %v2862, 32
    %v2868 = vpop.permute.xlu0 %2867
    %2869 = vrot.lane.b32.xlu0 %v2866, 32
    %v2870 = vpop.permute.xlu0 %2869
    %v2873 = vadd.f32 %v2538, %v2868
    %v2874 = vadd.f32 %v2539, %v2870
    %vm2875 = vcmask 523520
    %v2876 = vsel %vm2875, %v2873, 0.0
    %v2877 = vrot.slane %v2876, 4
    %v2878 = vadd.f32 %v2876, %v2877
    %v2879 = vrot.slane %v2878, 2
    %v2880 = vadd.f32 %v2878, %v2879
    %v2881 = vrot.slane %v2880, 1
    %v2882 = vadd.f32 %v2880, %v2881
    %v2883 = vsel %vm2875, %v2874, 0.0
    %v2884 = vrot.slane %v2883, 4
    %v2885 = vadd.f32 %v2883, %v2884
    %v2886 = vrot.slane %v2885, 2
    %v2887 = vadd.f32 %v2885, %v2886
    %v2888 = vrot.slane %v2887, 1
    %v2889 = vadd.f32 %v2887, %v2888
    %v2890 = vld [vmem:[#allocation2 + $0xc0] sm:$0xf]
    %v2891 = vld [vmem:[#allocation2 + $0xc4] sm:$0xf]
    %v2892 = vld [vmem:[#allocation2 + $0xc8] sm:$0xf]
    %v2893 = vld [vmem:[#allocation2 + $0xcc] sm:$0xf]
    %v2894 = vld [vmem:[%s3 + $0x2a] sm:$0x1]
    %v2895 = vpack.c.bf16 %v2882, %v2882
    %v2896 = vpack.c.bf16 %v2889, %v2889
    %v2897 = vlaneseq
    %v2898 = vshrl.u32 %v2897, 7
    %v2899 = vsub.s32 0, %v2898
    %v2900 = vrot.slane %v2894, %v2899
    %v2903 = vunpack.c.l.b16 %v2895
    %v2904 = vunpack.c.l.b16 %v2896
    %v2905 = vsel %vm2431, %v2904, %v2903
    %v2906 = vpack.c.b16 %v2905, %v2905
    %2907 = vrot.lane.b32.xlu0 %v2906, 96
    %v2908 = vpop.permute.xlu0 %2907
    %v2913 = vunpack.c.l.b16 %v2890
    %v2914 = vunpack.c.l.b16 %v2891
    %v2915 = vunpack.c.l.b16 %v2892
    %v2916 = vunpack.c.l.b16 %v2893
    %v2917 = vpack.c.b16 %v2914, %v2913
    %v2918 = vpack.c.b16 %v2916, %v2915
    %v2922 = vsel %vm61, %v2908, 0
    %2924 = vmatprep.subr.bf16.mxu0 0
    %2925 = vmatpush1.bf16.msra.mxu0 0
    %2926 = vmatprep.subr.bf16.mxu0 0
    %2927 = vmatpush1.bf16.msra.mxu0 0
    %2928 = vmatprep.subr.bf16.mxu0 0
    %2929 = vmatpush1.bf16.msra.mxu0 0
    %2930 = vmatprep.subr.bf16.mxu0 0
    %2931 = vmatpush1.bf16.msra.mxu0 0
    %2932 = vmatprep.subr.bf16.mxu0 0
    %2933 = vmatpush1.bf16.msra.mxu0 0
    %2934 = vmatprep.subr.bf16.mxu0 0
    %2935 = vmatpush1.bf16.msra.mxu0 0
    %2936 = vmatprep.subr.bf16.mxu0 0
    %2937 = vmatpush1.bf16.msra.mxu0 %v2918
    %2938 = vmatprep.subr.bf16.mxu0 0
    %2939 = vmatpush1.bf16.msra.mxu0 %v2917
    %2940 = vmatprep.subr.bf16.mxu0 0
    %2941 = vmatpush2.bf16.msra.mxu0 0
    %2942 = vmatprep.subr.bf16.mxu0 0
    %2943 = vmatpush2.bf16.msra.mxu0 0
    %2944 = vmatprep.subr.bf16.mxu0 0
    %2945 = vmatpush2.bf16.msra.mxu0 0
    %2946 = vmatprep.subr.bf16.mxu0 0
    %2947 = vmatpush2.bf16.msra.mxu0 0
    %2948 = vmatprep.subr.bf16.mxu0 0
    %2949 = vmatpush2.bf16.msra.mxu0 0
    %2950 = vmatprep.subr.bf16.mxu0 0
    %2951 = vmatpush2.bf16.msra.mxu0 0
    %2952 = vmatprep.subr.bf16.mxu0 0
    %2953 = vmatpush2.bf16.msra.mxu0 0
    %2954 = vmatprep.subr.bf16.mxu0 0
    %2955 = vmatpush2.bf16.msra.mxu0 0
    %2956 = vmatprep.mubr.bf16.mxu0 0
    %2957 = vmatmul.mubr.bf16.gmra.mxu0 %v2922
    %v2958 = vpop.f32.mrf.mxu0
    %v2959 = vadd.f32 %v2900, %v2958
    %v2960 = vpop.f32.mrf.mxu0
    %v2961 = vpop.f32.mrf.mxu0
    %v2962 = vpop.f32.mrf.mxu0
    %2963 = vdwg.mxu0
    %v2964 = vmax.f32 %v2959, 0.0
    %v2965 = vld [vmem:[#allocation2 + $0xd0] sm:$0xf]
    %v2966 = vld [vmem:[#allocation2 + $0xd4] sm:$0xf]
    %v2967 = vld [vmem:[#allocation2 + $0xd8] sm:$0xf]
    %v2968 = vld [vmem:[#allocation2 + $0xdc] sm:$0xf]
    %v2969 = vld [vmem:[#allocation2 + $0xe0] sm:$0xf]
    %v2970 = vld [vmem:[#allocation2 + $0xe4] sm:$0xf]
    %v2971 = vld [vmem:[#allocation2 + $0xe8] sm:$0xf]
    %v2972 = vld [vmem:[#allocation2 + $0xec] sm:$0xf]
    %v2973 = vld [vmem:[%s3 + $0x2b] sm:$0x1]
    %v2974 = vpack.c.bf16 %v2964, %v2964
    %v2975 = vlaneseq
    %v2976 = vshrl.u32 %v2975, 7
    %v2977 = vsub.s32 0, %v2976
    %v2978 = vrot.slane %v2973, %v2977
    %v2987 = vunpack.c.l.b16 %v2965
    %v2988 = vunpack.c.l.b16 %v2966
    %v2989 = vunpack.c.l.b16 %v2967
    %v2990 = vunpack.c.l.b16 %v2968
    %v2991 = vunpack.c.l.b16 %v2969
    %v2992 = vunpack.c.l.b16 %v2970
    %v2993 = vunpack.c.l.b16 %v2971
    %v2994 = vunpack.c.l.b16 %v2972
    %v2995 = vpack.c.b16 %v2988, %v2987
    %v2996 = vpack.c.b16 %v2990, %v2989
    %v2997 = vpack.c.b16 %v2992, %v2991
    %v2998 = vpack.c.b16 %v2994, %v2993
    %v3004 = vsel %vm1279, %v2974, 0
    %3006 = vmatprep.subr.bf16.mxu0 0
    %3007 = vmatpush1.bf16.msra.mxu0 0
    %3008 = vmatprep.subr.bf16.mxu0 0
    %3009 = vmatpush1.bf16.msra.mxu0 0
    %3010 = vmatprep.subr.bf16.mxu0 0
    %3011 = vmatpush1.bf16.msra.mxu0 0
    %3012 = vmatprep.subr.bf16.mxu0 0
    %3013 = vmatpush1.bf16.msra.mxu0 0
    %3014 = vmatprep.subr.bf16.mxu0 0
    %3015 = vmatpush1.bf16.msra.mxu0 %v2998
    %3016 = vmatprep.subr.bf16.mxu0 0
    %3017 = vmatpush1.bf16.msra.mxu0 %v2997
    %3018 = vmatprep.subr.bf16.mxu0 0
    %3019 = vmatpush1.bf16.msra.mxu0 %v2996
    %3020 = vmatprep.subr.bf16.mxu0 0
    %3021 = vmatpush1.bf16.msra.mxu0 %v2995
    %3022 = vmatprep.subr.bf16.mxu0 0
    %3023 = vmatpush2.bf16.msra.mxu0 0
    %3024 = vmatprep.subr.bf16.mxu0 0
    %3025 = vmatpush2.bf16.msra.mxu0 0
    %3026 = vmatprep.subr.bf16.mxu0 0
    %3027 = vmatpush2.bf16.msra.mxu0 0
    %3028 = vmatprep.subr.bf16.mxu0 0
    %3029 = vmatpush2.bf16.msra.mxu0 0
    %3030 = vmatprep.subr.bf16.mxu0 0
    %3031 = vmatpush2.bf16.msra.mxu0 0
    %3032 = vmatprep.subr.bf16.mxu0 0
    %3033 = vmatpush2.bf16.msra.mxu0 0
    %3034 = vmatprep.subr.bf16.mxu0 0
    %3035 = vmatpush2.bf16.msra.mxu0 0
    %3036 = vmatprep.subr.bf16.mxu0 0
    %3037 = vmatpush2.bf16.msra.mxu0 0
    %3038 = vmatprep.mubr.bf16.mxu0 0
    %3039 = vmatmul.mubr.bf16.gmra.mxu0 %v3004
    %v3040 = vpop.f32.mrf.mxu0
    %v3041 = vadd.f32 %v2978, %v3040
    %v3042 = vpop.f32.mrf.mxu0
    %v3043 = vpop.f32.mrf.mxu0
    %v3044 = vpop.f32.mrf.mxu0
    %3045 = vdwg.mxu0
    %3046 = vst [vmem:[#allocation5] sm:$0x3] %v3041
    // Predicated region
    $region22: #{net_forward.1} parent=1 // pred_check
      _
    $region23: #{net_forward.1} parent=1 // pred_check_branch
      %3048 = sbr.rel (0) target = $region25
    $region24: #{net_forward.1} parent=1 // pred_region
      %s3050 = ssub.s32 32, 32
      %3051 = vsyncadd [#allocation4], %s3050
      %s3053 = sshll.u32 [#allocation5], 4
      %s3054 = int_to_ptr.vmem [resolvable:$true] %s3053
      %3056 = dma.vmem_to_hbm [thread:$0]  %s3054, 32, %s4, [#allocation4]
    $region25: #{net_forward.1} parent=1 // pred_fallthru
      _
    // Predicated region
    $region26: #{net_forward.1} parent=1 // pred_check
      _
    $region27: #{net_forward.1} parent=1 // pred_check_branch
      %3058 = sbr.rel (0) target = $region29
    $region28: #{net_forward.1} parent=1 // pred_region
      %3059 = dma.done [#allocation4], 32
    $region29: #{net_forward.1} parent=1 // pred_fallthru
      _
    %3060 = vsyncpa [#allocation3], 1
    %3061 = vsyncpa [#allocation4], 1

</llo_original>
